<compile_context>
chip_gen: v6e
topology: v6e:2x2x1
jax: 0.10.0
libtpu: 0.0.40
codegen_flags: <defaults>
</compile_context>

<pallas_src>
import jax
import jax.numpy as jnp
import numpy as np
from jax.experimental import pallas as pl
from jax.experimental.pallas import tpu as pltpu


def _relu(x):
    return jnp.maximum(x, 0.0)


# ------------------------------------------------------------------ fused kernel
def _make_fused_kernel(T, num_gcn, num_lstm, activation):
    """Fused GCN-stack + LSTM-stack forward over T time steps.

    Positional refs:
      a_ref                : (T, N, N)
      x_ref                : (T, N, F0)
      gcn_w[i]             : (F_in_i, F_out_i)     for i in [0, num_gcn)
      per LSTM layer l:
        wih_ref            : (F_in_l, 4H)
        whh_ref            : (H, 4H)
        b_ref              : (1, 4H)               folded bias (b_ih + b_hh)
      out_ref              : (N, H)                out[-1] (only output)
    """

    def kernel(*refs):
        a_ref, x_ref = refs[0], refs[1]
        gcn_w_refs = refs[2:2 + num_gcn]
        lstm_refs = []
        idx = 2 + num_gcn
        for _ in range(num_lstm):
            lstm_refs.append((refs[idx], refs[idx + 1], refs[idx + 2]))
            idx += 3
        out_ref = refs[idx]

        N, H = out_ref.shape

        # Weights loaded once, hoisted out of all loops.
        gcn_ws = [w_ref[...] for w_ref in gcn_w_refs]

        # ---- GCN stack per time step:  h = act(Ahat @ (h @ W_i)) ----
        seq = []
        for t in range(T):                       # static trip count -> unrolled
            a = a_ref[t]                         # (N, N)
            h = x_ref[t]                         # (N, F0)
            for w in gcn_ws:
                hw = jnp.dot(h, w, preferred_element_type=jnp.float32)
                h = activation(jnp.dot(a, hw, preferred_element_type=jnp.float32))
            seq.append(h)                        # (N, F_out_last)

        # ---- LSTM stack, layer by layer (PyTorch gate order i, f, g, o) ----
        for (wih_ref, whh_ref, b_ref) in lstm_refs:
            w_ih = wih_ref[...]                  # (F_in, 4H)
            w_hh = whh_ref[...]                  # (H, 4H)
            bias = b_ref[...]                    # (1, 4H)

            # Input projection for all time steps hoisted off the recurrence.
            prea = [jnp.dot(seq[t], w_ih, preferred_element_type=jnp.float32) + bias
                    for t in range(T)]           # T x (N, 4H)

            h = jnp.zeros((N, H), jnp.float32)
            c = jnp.zeros((N, H), jnp.float32)
            outs = []
            for t in range(T):
                z = prea[t] + jnp.dot(h, w_hh, preferred_element_type=jnp.float32)
                i_g = jax.nn.sigmoid(z[:, 0 * H:1 * H])
                f_g = jax.nn.sigmoid(z[:, 1 * H:2 * H])
                g_g = jnp.tanh(z[:, 2 * H:3 * H])
                o_g = jax.nn.sigmoid(z[:, 3 * H:4 * H])
                c = f_g * c + i_g * g_g
                h = o_g * jnp.tanh(c)
                outs.append(h)
            seq = outs                           # becomes input of the next layer

        # Only out[-1] (last time step, last LSTM layer) leaves the kernel.
        out_ref[...] = seq[-1].astype(out_ref.dtype)

    return kernel


# ------------------------------------------------------------------ full model
def sp_gcn_lstm_a_forward(A_all, Nodes_all, w_list, lstm_params, activation=_relu):
    """Fused forward matching Sp_GCN_LSTM_A.forward (returns out[-1])."""
    T, N, _ = A_all.shape
    H = lstm_params[0][1].shape[0]

    inputs = [A_all.astype(jnp.float32), Nodes_all.astype(jnp.float32)]
    inputs += [w.astype(jnp.float32) for w in w_list]
    for (W_ih, W_hh, b) in lstm_params:
        inputs += [W_ih.astype(jnp.float32),
                   W_hh.astype(jnp.float32),
                   b.astype(jnp.float32).reshape(1, -1)]

    kernel = _make_fused_kernel(T, len(w_list), len(lstm_params), activation)

    vmem = pltpu.MemorySpace.VMEM
    return pl.pallas_call(
        kernel,
        out_shape=jax.ShapeDtypeStruct((N, H), jnp.float32),
        # No grid: every operand is whole-array resident in VMEM (total < 60 KB),
        # the kernel body runs exactly once.
        in_specs=[pl.BlockSpec(memory_space=vmem) for _ in inputs],
        out_specs=pl.BlockSpec(memory_space=vmem),
    )(*inputs)


# ------------------------------------------------------------------ reference
def reference_forward(A_all, Nodes_all, w_list, lstm_params, activation=_relu):
    T = A_all.shape[0]
    seq = []
    for t in range(T):
        h = activation(A_all[t] @ (Nodes_all[t] @ w_list[0]))
        for w in w_list[1:]:
            h = activation(A_all[t] @ (h @ w))
        seq.append(h)
    x = jnp.stack(seq)
    for (W_ih, W_hh, b) in lstm_params:
        H = W_hh.shape[0]
        hs = jnp.zeros((x.shape[1], H), jnp.float32)
        cs = jnp.zeros_like(hs)
        outs = []
        for t in range(x.shape[0]):
            z = x[t] @ W_ih + hs @ W_hh + b[0]
            i = jax.nn.sigmoid(z[:, :H])
            f = jax.nn.sigmoid(z[:, H:2 * H])
            g = jnp.tanh(z[:, 2 * H:3 * H])
            o = jax.nn.sigmoid(z[:, 3 * H:])
            cs = f * cs + i * g
            hs = o * jnp.tanh(cs)
            outs.append(hs)
        x = jnp.stack(outs)
    return x[-1]


if __name__ == "__main__":
    # args: feats_per_node=8, layer_1_feats=16, layer_2_feats=16, num_layers=2,
    #       lstm_l2_feats=32, lstm_l2_layers=2; T=6 time steps, N=16 nodes.
    T, N = 6, 16
    F0, L1, L2 = 8, 16, 16
    H, LSTM_LAYERS = 32, 2

    key = jax.random.PRNGKey(0)
    ks = jax.random.split(key, 16)

    # Dense "Ahat" per time step (synthetic, row-normalized positive adjacency).
    A_raw = jax.random.uniform(ks[0], (T, N, N), jnp.float32)
    A_all = A_raw / jnp.sum(A_raw, axis=-1, keepdims=True)
    Nodes_all = jax.random.normal(ks[1], (T, N, F0), jnp.float32)

    # GCN weights (synthetic init, shapes per module __init__).
    w_list = [
        0.3 * jax.random.normal(ks[2], (F0, L1), jnp.float32),
        0.3 * jax.random.normal(ks[3], (L1, L2), jnp.float32),
    ]

    # LSTM weights: layer 0 input L2, layer >=1 input H. Bias = b_ih + b_hh folded.
    lstm_params = []
    for layer in range(LSTM_LAYERS):
        f_in = L2 if layer == 0 else H
        k_a, k_b, k_c = jax.random.split(ks[4 + layer], 3)
        W_ih = 0.2 * jax.random.normal(k_a, (f_in, 4 * H), jnp.float32)
        W_hh = 0.2 * jax.random.normal(k_b, (H, 4 * H), jnp.float32)
        b = 0.1 * jax.random.normal(k_c, (1, 4 * H), jnp.float32)
        lstm_params.append((W_ih, W_hh, b))

    out = sp_gcn_lstm_a_forward(A_all, Nodes_all, w_list, lstm_params)
    out = jax.block_until_ready(out)

    ref = reference_forward(A_all, Nodes_all, w_list, lstm_params)
    np.testing.assert_allclose(np.asarray(out), np.asarray(ref),
                               rtol=1e-4, atol=1e-4)
    assert out.shape == (N, H)
    print("KERNEL_OK")
</pallas_src>

<mosaic_0001>
module attributes {stable_mosaic.version = 11 : i64} {
  func.func @kernel(%arg0: memref<6x16x16xf32, #tpu.memory_space<vmem>>, %arg1: memref<6x16x8xf32, #tpu.memory_space<vmem>>, %arg2: memref<8x16xf32, #tpu.memory_space<vmem>>, %arg3: memref<16x16xf32, #tpu.memory_space<vmem>>, %arg4: memref<16x128xf32, #tpu.memory_space<vmem>>, %arg5: memref<32x128xf32, #tpu.memory_space<vmem>>, %arg6: memref<1x128xf32, #tpu.memory_space<vmem>>, %arg7: memref<32x128xf32, #tpu.memory_space<vmem>>, %arg8: memref<32x128xf32, #tpu.memory_space<vmem>>, %arg9: memref<1x128xf32, #tpu.memory_space<vmem>>, %arg10: memref<16x32xf32, #tpu.memory_space<vmem>>) attributes {dimension_semantics = [], scalar_prefetch = 0 : i64, scratch_operands = 0 : i64, tpu.core_type = #tpu.core_type<tc>} {
    %c0 = arith.constant 0 : index
    %c0_0 = arith.constant 0 : index
    %0 = vector.load %arg2[%c0, %c0_0] : memref<8x16xf32, #tpu.memory_space<vmem>>, vector<8x16xf32>
    %c0_1 = arith.constant 0 : index
    %c0_2 = arith.constant 0 : index
    %1 = vector.load %arg3[%c0_1, %c0_2] : memref<16x16xf32, #tpu.memory_space<vmem>>, vector<16x16xf32>
    %c0_3 = arith.constant 0 : index
    %c0_4 = arith.constant 0 : index
    %c0_5 = arith.constant 0 : index
    %2 = vector.load %arg0[%c0_3, %c0_4, %c0_5] : memref<6x16x16xf32, #tpu.memory_space<vmem>>, vector<1x16x16xf32>
    %3 = vector.shape_cast %2 : vector<1x16x16xf32> to vector<16x16xf32>
    %c0_6 = arith.constant 0 : index
    %c0_7 = arith.constant 0 : index
    %c0_8 = arith.constant 0 : index
    %4 = vector.load %arg1[%c0_6, %c0_7, %c0_8] : memref<6x16x8xf32, #tpu.memory_space<vmem>>, vector<1x16x8xf32>
    %5 = vector.shape_cast %4 : vector<1x16x8xf32> to vector<16x8xf32>
    %cst = arith.constant dense<0.000000e+00> : vector<16x16xf32>
    %6 = tpu.matmul %5, %0, %cst {dimension_numbers = #tpu.dot_dimension_numbers<[1], [0], [0], [1], [0, 0, 1, 1], [], []>} : vector<16x8xf32>, vector<8x16xf32>, vector<16x16xf32> -> vector<16x16xf32>
    %cst_9 = arith.constant dense<0.000000e+00> : vector<16x16xf32>
    %7 = tpu.matmul %3, %6, %cst_9 {dimension_numbers = #tpu.dot_dimension_numbers<[1], [0], [0], [1], [0, 0, 1, 1], [], []>} : vector<16x16xf32>, vector<16x16xf32>, vector<16x16xf32> -> vector<16x16xf32>
    %cst_10 = arith.constant 0.000000e+00 : f32
    %8 = vector.broadcast %cst_10 : f32 to vector<16x16xf32>
    %9 = arith.maximumf %7, %8 : vector<16x16xf32>
    %cst_11 = arith.constant dense<0.000000e+00> : vector<16x16xf32>
    %10 = tpu.matmul %9, %1, %cst_11 {dimension_numbers = #tpu.dot_dimension_numbers<[1], [0], [0], [1], [0, 0, 1, 1], [], []>} : vector<16x16xf32>, vector<16x16xf32>, vector<16x16xf32> -> vector<16x16xf32>
    %cst_12 = arith.constant dense<0.000000e+00> : vector<16x16xf32>
    %11 = tpu.matmul %3, %10, %cst_12 {dimension_numbers = #tpu.dot_dimension_numbers<[1], [0], [0], [1], [0, 0, 1, 1], [], []>} : vector<16x16xf32>, vector<16x16xf32>, vector<16x16xf32> -> vector<16x16xf32>
    %cst_13 = arith.constant 0.000000e+00 : f32
    %12 = vector.broadcast %cst_13 : f32 to vector<16x16xf32>
    %13 = arith.maximumf %11, %12 : vector<16x16xf32>
    %c1 = arith.constant 1 : index
    %c0_14 = arith.constant 0 : index
    %c0_15 = arith.constant 0 : index
    %14 = vector.load %arg0[%c1, %c0_14, %c0_15] : memref<6x16x16xf32, #tpu.memory_space<vmem>>, vector<1x16x16xf32>
    %15 = vector.shape_cast %14 : vector<1x16x16xf32> to vector<16x16xf32>
    %c1_16 = arith.constant 1 : index
    %c0_17 = arith.constant 0 : index
    %c0_18 = arith.constant 0 : index
    %16 = vector.load %arg1[%c1_16, %c0_17, %c0_18] : memref<6x16x8xf32, #tpu.memory_space<vmem>>, vector<1x16x8xf32>
    %17 = vector.shape_cast %16 : vector<1x16x8xf32> to vector<16x8xf32>
    %cst_19 = arith.constant dense<0.000000e+00> : vector<16x16xf32>
    %18 = tpu.matmul %17, %0, %cst_19 {dimension_numbers = #tpu.dot_dimension_numbers<[1], [0], [0], [1], [0, 0, 1, 1], [], []>} : vector<16x8xf32>, vector<8x16xf32>, vector<16x16xf32> -> vector<16x16xf32>
    %cst_20 = arith.constant dense<0.000000e+00> : vector<16x16xf32>
    %19 = tpu.matmul %15, %18, %cst_20 {dimension_numbers = #tpu.dot_dimension_numbers<[1], [0], [0], [1], [0, 0, 1, 1], [], []>} : vector<16x16xf32>, vector<16x16xf32>, vector<16x16xf32> -> vector<16x16xf32>
    %cst_21 = arith.constant 0.000000e+00 : f32
    %20 = vector.broadcast %cst_21 : f32 to vector<16x16xf32>
    %21 = arith.maximumf %19, %20 : vector<16x16xf32>
    %cst_22 = arith.constant dense<0.000000e+00> : vector<16x16xf32>
    %22 = tpu.matmul %21, %1, %cst_22 {dimension_numbers = #tpu.dot_dimension_numbers<[1], [0], [0], [1], [0, 0, 1, 1], [], []>} : vector<16x16xf32>, vector<16x16xf32>, vector<16x16xf32> -> vector<16x16xf32>
    %cst_23 = arith.constant dense<0.000000e+00> : vector<16x16xf32>
    %23 = tpu.matmul %15, %22, %cst_23 {dimension_numbers = #tpu.dot_dimension_numbers<[1], [0], [0], [1], [0, 0, 1, 1], [], []>} : vector<16x16xf32>, vector<16x16xf32>, vector<16x16xf32> -> vector<16x16xf32>
    %cst_24 = arith.constant 0.000000e+00 : f32
    %24 = vector.broadcast %cst_24 : f32 to vector<16x16xf32>
    %25 = arith.maximumf %23, %24 : vector<16x16xf32>
    %c2 = arith.constant 2 : index
    %c0_25 = arith.constant 0 : index
    %c0_26 = arith.constant 0 : index
    %26 = vector.load %arg0[%c2, %c0_25, %c0_26] : memref<6x16x16xf32, #tpu.memory_space<vmem>>, vector<1x16x16xf32>
    %27 = vector.shape_cast %26 : vector<1x16x16xf32> to vector<16x16xf32>
    %c2_27 = arith.constant 2 : index
    %c0_28 = arith.constant 0 : index
    %c0_29 = arith.constant 0 : index
    %28 = vector.load %arg1[%c2_27, %c0_28, %c0_29] : memref<6x16x8xf32, #tpu.memory_space<vmem>>, vector<1x16x8xf32>
    %29 = vector.shape_cast %28 : vector<1x16x8xf32> to vector<16x8xf32>
    %cst_30 = arith.constant dense<0.000000e+00> : vector<16x16xf32>
    %30 = tpu.matmul %29, %0, %cst_30 {dimension_numbers = #tpu.dot_dimension_numbers<[1], [0], [0], [1], [0, 0, 1, 1], [], []>} : vector<16x8xf32>, vector<8x16xf32>, vector<16x16xf32> -> vector<16x16xf32>
    %cst_31 = arith.constant dense<0.000000e+00> : vector<16x16xf32>
    %31 = tpu.matmul %27, %30, %cst_31 {dimension_numbers = #tpu.dot_dimension_numbers<[1], [0], [0], [1], [0, 0, 1, 1], [], []>} : vector<16x16xf32>, vector<16x16xf32>, vector<16x16xf32> -> vector<16x16xf32>
    %cst_32 = arith.constant 0.000000e+00 : f32
    %32 = vector.broadcast %cst_32 : f32 to vector<16x16xf32>
    %33 = arith.maximumf %31, %32 : vector<16x16xf32>
    %cst_33 = arith.constant dense<0.000000e+00> : vector<16x16xf32>
    %34 = tpu.matmul %33, %1, %cst_33 {dimension_numbers = #tpu.dot_dimension_numbers<[1], [0], [0], [1], [0, 0, 1, 1], [], []>} : vector<16x16xf32>, vector<16x16xf32>, vector<16x16xf32> -> vector<16x16xf32>
    %cst_34 = arith.constant dense<0.000000e+00> : vector<16x16xf32>
    %35 = tpu.matmul %27, %34, %cst_34 {dimension_numbers = #tpu.dot_dimension_numbers<[1], [0], [0], [1], [0, 0, 1, 1], [], []>} : vector<16x16xf32>, vector<16x16xf32>, vector<16x16xf32> -> vector<16x16xf32>
    %cst_35 = arith.constant 0.000000e+00 : f32
    %36 = vector.broadcast %cst_35 : f32 to vector<16x16xf32>
    %37 = arith.maximumf %35, %36 : vector<16x16xf32>
    %c3 = arith.constant 3 : index
    %c0_36 = arith.constant 0 : index
    %c0_37 = arith.constant 0 : index
    %38 = vector.load %arg0[%c3, %c0_36, %c0_37] : memref<6x16x16xf32, #tpu.memory_space<vmem>>, vector<1x16x16xf32>
    %39 = vector.shape_cast %38 : vector<1x16x16xf32> to vector<16x16xf32>
    %c3_38 = arith.constant 3 : index
    %c0_39 = arith.constant 0 : index
    %c0_40 = arith.constant 0 : index
    %40 = vector.load %arg1[%c3_38, %c0_39, %c0_40] : memref<6x16x8xf32, #tpu.memory_space<vmem>>, vector<1x16x8xf32>
    %41 = vector.shape_cast %40 : vector<1x16x8xf32> to vector<16x8xf32>
    %cst_41 = arith.constant dense<0.000000e+00> : vector<16x16xf32>
    %42 = tpu.matmul %41, %0, %cst_41 {dimension_numbers = #tpu.dot_dimension_numbers<[1], [0], [0], [1], [0, 0, 1, 1], [], []>} : vector<16x8xf32>, vector<8x16xf32>, vector<16x16xf32> -> vector<16x16xf32>
    %cst_42 = arith.constant dense<0.000000e+00> : vector<16x16xf32>
    %43 = tpu.matmul %39, %42, %cst_42 {dimension_numbers = #tpu.dot_dimension_numbers<[1], [0], [0], [1], [0, 0, 1, 1], [], []>} : vector<16x16xf32>, vector<16x16xf32>, vector<16x16xf32> -> vector<16x16xf32>
    %cst_43 = arith.constant 0.000000e+00 : f32
    %44 = vector.broadcast %cst_43 : f32 to vector<16x16xf32>
    %45 = arith.maximumf %43, %44 : vector<16x16xf32>
    %cst_44 = arith.constant dense<0.000000e+00> : vector<16x16xf32>
    %46 = tpu.matmul %45, %1, %cst_44 {dimension_numbers = #tpu.dot_dimension_numbers<[1], [0], [0], [1], [0, 0, 1, 1], [], []>} : vector<16x16xf32>, vector<16x16xf32>, vector<16x16xf32> -> vector<16x16xf32>
    %cst_45 = arith.constant dense<0.000000e+00> : vector<16x16xf32>
    %47 = tpu.matmul %39, %46, %cst_45 {dimension_numbers = #tpu.dot_dimension_numbers<[1], [0], [0], [1], [0, 0, 1, 1], [], []>} : vector<16x16xf32>, vector<16x16xf32>, vector<16x16xf32> -> vector<16x16xf32>
    %cst_46 = arith.constant 0.000000e+00 : f32
    %48 = vector.broadcast %cst_46 : f32 to vector<16x16xf32>
    %49 = arith.maximumf %47, %48 : vector<16x16xf32>
    %c4 = arith.constant 4 : index
    %c0_47 = arith.constant 0 : index
    %c0_48 = arith.constant 0 : index
    %50 = vector.load %arg0[%c4, %c0_47, %c0_48] : memref<6x16x16xf32, #tpu.memory_space<vmem>>, vector<1x16x16xf32>
    %51 = vector.shape_cast %50 : vector<1x16x16xf32> to vector<16x16xf32>
    %c4_49 = arith.constant 4 : index
    %c0_50 = arith.constant 0 : index
    %c0_51 = arith.constant 0 : index
    %52 = vector.load %arg1[%c4_49, %c0_50, %c0_51] : memref<6x16x8xf32, #tpu.memory_space<vmem>>, vector<1x16x8xf32>
    %53 = vector.shape_cast %52 : vector<1x16x8xf32> to vector<16x8xf32>
    %cst_52 = arith.constant dense<0.000000e+00> : vector<16x16xf32>
    %54 = tpu.matmul %53, %0, %cst_52 {dimension_numbers = #tpu.dot_dimension_numbers<[1], [0], [0], [1], [0, 0, 1, 1], [], []>} : vector<16x8xf32>, vector<8x16xf32>, vector<16x16xf32> -> vector<16x16xf32>
    %cst_53 = arith.constant dense<0.000000e+00> : vector<16x16xf32>
    %55 = tpu.matmul %51, %54, %cst_53 {dimension_numbers = #tpu.dot_dimension_numbers<[1], [0], [0], [1], [0, 0, 1, 1], [], []>} : vector<16x16xf32>, vector<16x16xf32>, vector<16x16xf32> -> vector<16x16xf32>
    %cst_54 = arith.constant 0.000000e+00 : f32
    %56 = vector.broadcast %cst_54 : f32 to vector<16x16xf32>
    %57 = arith.maximumf %55, %56 : vector<16x16xf32>
    %cst_55 = arith.constant dense<0.000000e+00> : vector<16x16xf32>
    %58 = tpu.matmul %57, %1, %cst_55 {dimension_numbers = #tpu.dot_dimension_numbers<[1], [0], [0], [1], [0, 0, 1, 1], [], []>} : vector<16x16xf32>, vector<16x16xf32>, vector<16x16xf32> -> vector<16x16xf32>
    %cst_56 = arith.constant dense<0.000000e+00> : vector<16x16xf32>
    %59 = tpu.matmul %51, %58, %cst_56 {dimension_numbers = #tpu.dot_dimension_numbers<[1], [0], [0], [1], [0, 0, 1, 1], [], []>} : vector<16x16xf32>, vector<16x16xf32>, vector<16x16xf32> -> vector<16x16xf32>
    %cst_57 = arith.constant 0.000000e+00 : f32
    %60 = vector.broadcast %cst_57 : f32 to vector<16x16xf32>
    %61 = arith.maximumf %59, %60 : vector<16x16xf32>
    %c5 = arith.constant 5 : index
    %c0_58 = arith.constant 0 : index
    %c0_59 = arith.constant 0 : index
    %62 = vector.load %arg0[%c5, %c0_58, %c0_59] : memref<6x16x16xf32, #tpu.memory_space<vmem>>, vector<1x16x16xf32>
    %63 = vector.shape_cast %62 : vector<1x16x16xf32> to vector<16x16xf32>
    %c5_60 = arith.constant 5 : index
    %c0_61 = arith.constant 0 : index
    %c0_62 = arith.constant 0 : index
    %64 = vector.load %arg1[%c5_60, %c0_61, %c0_62] : memref<6x16x8xf32, #tpu.memory_space<vmem>>, vector<1x16x8xf32>
    %65 = vector.shape_cast %64 : vector<1x16x8xf32> to vector<16x8xf32>
    %cst_63 = arith.constant dense<0.000000e+00> : vector<16x16xf32>
    %66 = tpu.matmul %65, %0, %cst_63 {dimension_numbers = #tpu.dot_dimension_numbers<[1], [0], [0], [1], [0, 0, 1, 1], [], []>} : vector<16x8xf32>, vector<8x16xf32>, vector<16x16xf32> -> vector<16x16xf32>
    %cst_64 = arith.constant dense<0.000000e+00> : vector<16x16xf32>
    %67 = tpu.matmul %63, %66, %cst_64 {dimension_numbers = #tpu.dot_dimension_numbers<[1], [0], [0], [1], [0, 0, 1, 1], [], []>} : vector<16x16xf32>, vector<16x16xf32>, vector<16x16xf32> -> vector<16x16xf32>
    %cst_65 = arith.constant 0.000000e+00 : f32
    %68 = vector.broadcast %cst_65 : f32 to vector<16x16xf32>
    %69 = arith.maximumf %67, %68 : vector<16x16xf32>
    %cst_66 = arith.constant dense<0.000000e+00> : vector<16x16xf32>
    %70 = tpu.matmul %69, %1, %cst_66 {dimension_numbers = #tpu.dot_dimension_numbers<[1], [0], [0], [1], [0, 0, 1, 1], [], []>} : vector<16x16xf32>, vector<16x16xf32>, vector<16x16xf32> -> vector<16x16xf32>
    %cst_67 = arith.constant dense<0.000000e+00> : vector<16x16xf32>
    %71 = tpu.matmul %63, %70, %cst_67 {dimension_numbers = #tpu.dot_dimension_numbers<[1], [0], [0], [1], [0, 0, 1, 1], [], []>} : vector<16x16xf32>, vector<16x16xf32>, vector<16x16xf32> -> vector<16x16xf32>
    %cst_68 = arith.constant 0.000000e+00 : f32
    %72 = vector.broadcast %cst_68 : f32 to vector<16x16xf32>
    %73 = arith.maximumf %71, %72 : vector<16x16xf32>
    %c0_69 = arith.constant 0 : index
    %c0_70 = arith.constant 0 : index
    %74 = vector.load %arg4[%c0_69, %c0_70] : memref<16x128xf32, #tpu.memory_space<vmem>>, vector<16x128xf32>
    %c0_71 = arith.constant 0 : index
    %c0_72 = arith.constant 0 : index
    %75 = vector.load %arg5[%c0_71, %c0_72] : memref<32x128xf32, #tpu.memory_space<vmem>>, vector<32x128xf32>
    %c0_73 = arith.constant 0 : index
    %c0_74 = arith.constant 0 : index
    %76 = vector.load %arg6[%c0_73, %c0_74] : memref<1x128xf32, #tpu.memory_space<vmem>>, vector<1x128xf32>
    %cst_75 = arith.constant dense<0.000000e+00> : vector<16x128xf32>
    %77 = tpu.matmul %13, %74, %cst_75 {dimension_numbers = #tpu.dot_dimension_numbers<[1], [0], [0], [1], [0, 0, 1, 1], [], []>} : vector<16x16xf32>, vector<16x128xf32>, vector<16x128xf32> -> vector<16x128xf32>
    %78 = vector.broadcast %76 : vector<1x128xf32> to vector<16x128xf32>
    %79 = arith.addf %77, %78 : vector<16x128xf32>
    %cst_76 = arith.constant dense<0.000000e+00> : vector<16x128xf32>
    %80 = tpu.matmul %25, %74, %cst_76 {dimension_numbers = #tpu.dot_dimension_numbers<[1], [0], [0], [1], [0, 0, 1, 1], [], []>} : vector<16x16xf32>, vector<16x128xf32>, vector<16x128xf32> -> vector<16x128xf32>
    %81 = vector.broadcast %76 : vector<1x128xf32> to vector<16x128xf32>
    %82 = arith.addf %80, %81 : vector<16x128xf32>
    %cst_77 = arith.constant dense<0.000000e+00> : vector<16x128xf32>
    %83 = tpu.matmul %37, %74, %cst_77 {dimension_numbers = #tpu.dot_dimension_numbers<[1], [0], [0], [1], [0, 0, 1, 1], [], []>} : vector<16x16xf32>, vector<16x128xf32>, vector<16x128xf32> -> vector<16x128xf32>
    %84 = vector.broadcast %76 : vector<1x128xf32> to vector<16x128xf32>
    %85 = arith.addf %83, %84 : vector<16x128xf32>
    %cst_78 = arith.constant dense<0.000000e+00> : vector<16x128xf32>
    %86 = tpu.matmul %49, %74, %cst_78 {dimension_numbers = #tpu.dot_dimension_numbers<[1], [0], [0], [1], [0, 0, 1, 1], [], []>} : vector<16x16xf32>, vector<16x128xf32>, vector<16x128xf32> -> vector<16x128xf32>
    %87 = vector.broadcast %76 : vector<1x128xf32> to vector<16x128xf32>
    %88 = arith.addf %86, %87 : vector<16x128xf32>
    %cst_79 = arith.constant dense<0.000000e+00> : vector<16x128xf32>
    %89 = tpu.matmul %61, %74, %cst_79 {dimension_numbers = #tpu.dot_dimension_numbers<[1], [0], [0], [1], [0, 0, 1, 1], [], []>} : vector<16x16xf32>, vector<16x128xf32>, vector<16x128xf32> -> vector<16x128xf32>
    %90 = vector.broadcast %76 : vector<1x128xf32> to vector<16x128xf32>
    %91 = arith.addf %89, %90 : vector<16x128xf32>
    %cst_80 = arith.constant dense<0.000000e+00> : vector<16x128xf32>
    %92 = tpu.matmul %73, %74, %cst_80 {dimension_numbers = #tpu.dot_dimension_numbers<[1], [0], [0], [1], [0, 0, 1, 1], [], []>} : vector<16x16xf32>, vector<16x128xf32>, vector<16x128xf32> -> vector<16x128xf32>
    %93 = vector.broadcast %76 : vector<1x128xf32> to vector<16x128xf32>
    %94 = arith.addf %92, %93 : vector<16x128xf32>
    %cst_81 = arith.constant 0.000000e+00 : f32
    %95 = vector.broadcast %cst_81 : f32 to vector<16x32xf32>
    %cst_82 = arith.constant 0.000000e+00 : f32
    %96 = vector.broadcast %cst_82 : f32 to vector<16x32xf32>
    %cst_83 = arith.constant dense<0.000000e+00> : vector<16x128xf32>
    %97 = tpu.matmul %95, %75, %cst_83 {dimension_numbers = #tpu.dot_dimension_numbers<[1], [0], [0], [1], [0, 0, 1, 1], [], []>} : vector<16x32xf32>, vector<32x128xf32>, vector<16x128xf32> -> vector<16x128xf32>
    %98 = arith.addf %79, %97 : vector<16x128xf32>
    %99 = vector.extract_strided_slice %98 {offsets = [0, 0], sizes = [16, 32], strides = [1, 1]} : vector<16x128xf32> to vector<16x32xf32>
    %100 = arith.negf %99 : vector<16x32xf32>
    %101 = math.exp %100 : vector<16x32xf32>
    %cst_84 = arith.constant 1.000000e+00 : f32
    %102 = vector.broadcast %cst_84 : f32 to vector<16x32xf32>
    %103 = arith.addf %102, %101 : vector<16x32xf32>
    %104 = arith.divf %102, %103 : vector<16x32xf32>
    %105 = vector.extract_strided_slice %98 {offsets = [0, 32], sizes = [16, 32], strides = [1, 1]} : vector<16x128xf32> to vector<16x32xf32>
    %106 = arith.negf %105 : vector<16x32xf32>
    %107 = math.exp %106 : vector<16x32xf32>
    %cst_85 = arith.constant 1.000000e+00 : f32
    %108 = vector.broadcast %cst_85 : f32 to vector<16x32xf32>
    %109 = arith.addf %108, %107 : vector<16x32xf32>
    %110 = arith.divf %108, %109 : vector<16x32xf32>
    %111 = vector.extract_strided_slice %98 {offsets = [0, 64], sizes = [16, 32], strides = [1, 1]} : vector<16x128xf32> to vector<16x32xf32>
    %112 = math.tanh %111 : vector<16x32xf32>
    %113 = vector.extract_strided_slice %98 {offsets = [0, 96], sizes = [16, 32], strides = [1, 1]} : vector<16x128xf32> to vector<16x32xf32>
    %114 = arith.negf %113 : vector<16x32xf32>
    %115 = math.exp %114 : vector<16x32xf32>
    %cst_86 = arith.constant 1.000000e+00 : f32
    %116 = vector.broadcast %cst_86 : f32 to vector<16x32xf32>
    %117 = arith.addf %116, %115 : vector<16x32xf32>
    %118 = arith.divf %116, %117 : vector<16x32xf32>
    %119 = arith.mulf %110, %96 : vector<16x32xf32>
    %120 = arith.mulf %104, %112 : vector<16x32xf32>
    %121 = arith.addf %119, %120 : vector<16x32xf32>
    %122 = math.tanh %121 : vector<16x32xf32>
    %123 = arith.mulf %118, %122 : vector<16x32xf32>
    %cst_87 = arith.constant dense<0.000000e+00> : vector<16x128xf32>
    %124 = tpu.matmul %123, %75, %cst_87 {dimension_numbers = #tpu.dot_dimension_numbers<[1], [0], [0], [1], [0, 0, 1, 1], [], []>} : vector<16x32xf32>, vector<32x128xf32>, vector<16x128xf32> -> vector<16x128xf32>
    %125 = arith.addf %82, %124 : vector<16x128xf32>
    %126 = vector.extract_strided_slice %125 {offsets = [0, 0], sizes = [16, 32], strides = [1, 1]} : vector<16x128xf32> to vector<16x32xf32>
    %127 = arith.negf %126 : vector<16x32xf32>
    %128 = math.exp %127 : vector<16x32xf32>
    %cst_88 = arith.constant 1.000000e+00 : f32
    %129 = vector.broadcast %cst_88 : f32 to vector<16x32xf32>
    %130 = arith.addf %129, %128 : vector<16x32xf32>
    %131 = arith.divf %129, %130 : vector<16x32xf32>
    %132 = vector.extract_strided_slice %125 {offsets = [0, 32], sizes = [16, 32], strides = [1, 1]} : vector<16x128xf32> to vector<16x32xf32>
    %133 = arith.negf %132 : vector<16x32xf32>
    %134 = math.exp %133 : vector<16x32xf32>
    %cst_89 = arith.constant 1.000000e+00 : f32
    %135 = vector.broadcast %cst_89 : f32 to vector<16x32xf32>
    %136 = arith.addf %135, %134 : vector<16x32xf32>
    %137 = arith.divf %135, %136 : vector<16x32xf32>
    %138 = vector.extract_strided_slice %125 {offsets = [0, 64], sizes = [16, 32], strides = [1, 1]} : vector<16x128xf32> to vector<16x32xf32>
    %139 = math.tanh %138 : vector<16x32xf32>
    %140 = vector.extract_strided_slice %125 {offsets = [0, 96], sizes = [16, 32], strides = [1, 1]} : vector<16x128xf32> to vector<16x32xf32>
    %141 = arith.negf %140 : vector<16x32xf32>
    %142 = math.exp %141 : vector<16x32xf32>
    %cst_90 = arith.constant 1.000000e+00 : f32
    %143 = vector.broadcast %cst_90 : f32 to vector<16x32xf32>
    %144 = arith.addf %143, %142 : vector<16x32xf32>
    %145 = arith.divf %143, %144 : vector<16x32xf32>
    %146 = arith.mulf %137, %121 : vector<16x32xf32>
    %147 = arith.mulf %131, %139 : vector<16x32xf32>
    %148 = arith.addf %146, %147 : vector<16x32xf32>
    %149 = math.tanh %148 : vector<16x32xf32>
    %150 = arith.mulf %145, %149 : vector<16x32xf32>
    %cst_91 = arith.constant dense<0.000000e+00> : vector<16x128xf32>
    %151 = tpu.matmul %150, %75, %cst_91 {dimension_numbers = #tpu.dot_dimension_numbers<[1], [0], [0], [1], [0, 0, 1, 1], [], []>} : vector<16x32xf32>, vector<32x128xf32>, vector<16x128xf32> -> vector<16x128xf32>
    %152 = arith.addf %85, %151 : vector<16x128xf32>
    %153 = vector.extract_strided_slice %152 {offsets = [0, 0], sizes = [16, 32], strides = [1, 1]} : vector<16x128xf32> to vector<16x32xf32>
    %154 = arith.negf %153 : vector<16x32xf32>
    %155 = math.exp %154 : vector<16x32xf32>
    %cst_92 = arith.constant 1.000000e+00 : f32
    %156 = vector.broadcast %cst_92 : f32 to vector<16x32xf32>
    %157 = arith.addf %156, %155 : vector<16x32xf32>
    %158 = arith.divf %156, %157 : vector<16x32xf32>
    %159 = vector.extract_strided_slice %152 {offsets = [0, 32], sizes = [16, 32], strides = [1, 1]} : vector<16x128xf32> to vector<16x32xf32>
    %160 = arith.negf %159 : vector<16x32xf32>
    %161 = math.exp %160 : vector<16x32xf32>
    %cst_93 = arith.constant 1.000000e+00 : f32
    %162 = vector.broadcast %cst_93 : f32 to vector<16x32xf32>
    %163 = arith.addf %162, %161 : vector<16x32xf32>
    %164 = arith.divf %162, %163 : vector<16x32xf32>
    %165 = vector.extract_strided_slice %152 {offsets = [0, 64], sizes = [16, 32], strides = [1, 1]} : vector<16x128xf32> to vector<16x32xf32>
    %166 = math.tanh %165 : vector<16x32xf32>
    %167 = vector.extract_strided_slice %152 {offsets = [0, 96], sizes = [16, 32], strides = [1, 1]} : vector<16x128xf32> to vector<16x32xf32>
    %168 = arith.negf %167 : vector<16x32xf32>
    %169 = math.exp %168 : vector<16x32xf32>
    %cst_94 = arith.constant 1.000000e+00 : f32
    %170 = vector.broadcast %cst_94 : f32 to vector<16x32xf32>
    %171 = arith.addf %170, %169 : vector<16x32xf32>
    %172 = arith.divf %170, %171 : vector<16x32xf32>
    %173 = arith.mulf %164, %148 : vector<16x32xf32>
    %174 = arith.mulf %158, %166 : vector<16x32xf32>
    %175 = arith.addf %173, %174 : vector<16x32xf32>
    %176 = math.tanh %175 : vector<16x32xf32>
    %177 = arith.mulf %172, %176 : vector<16x32xf32>
    %cst_95 = arith.constant dense<0.000000e+00> : vector<16x128xf32>
    %178 = tpu.matmul %177, %75, %cst_95 {dimension_numbers = #tpu.dot_dimension_numbers<[1], [0], [0], [1], [0, 0, 1, 1], [], []>} : vector<16x32xf32>, vector<32x128xf32>, vector<16x128xf32> -> vector<16x128xf32>
    %179 = arith.addf %88, %178 : vector<16x128xf32>
    %180 = vector.extract_strided_slice %179 {offsets = [0, 0], sizes = [16, 32], strides = [1, 1]} : vector<16x128xf32> to vector<16x32xf32>
    %181 = arith.negf %180 : vector<16x32xf32>
    %182 = math.exp %181 : vector<16x32xf32>
    %cst_96 = arith.constant 1.000000e+00 : f32
    %183 = vector.broadcast %cst_96 : f32 to vector<16x32xf32>
    %184 = arith.addf %183, %182 : vector<16x32xf32>
    %185 = arith.divf %183, %184 : vector<16x32xf32>
    %186 = vector.extract_strided_slice %179 {offsets = [0, 32], sizes = [16, 32], strides = [1, 1]} : vector<16x128xf32> to vector<16x32xf32>
    %187 = arith.negf %186 : vector<16x32xf32>
    %188 = math.exp %187 : vector<16x32xf32>
    %cst_97 = arith.constant 1.000000e+00 : f32
    %189 = vector.broadcast %cst_97 : f32 to vector<16x32xf32>
    %190 = arith.addf %189, %188 : vector<16x32xf32>
    %191 = arith.divf %189, %190 : vector<16x32xf32>
    %192 = vector.extract_strided_slice %179 {offsets = [0, 64], sizes = [16, 32], strides = [1, 1]} : vector<16x128xf32> to vector<16x32xf32>
    %193 = math.tanh %192 : vector<16x32xf32>
    %194 = vector.extract_strided_slice %179 {offsets = [0, 96], sizes = [16, 32], strides = [1, 1]} : vector<16x128xf32> to vector<16x32xf32>
    %195 = arith.negf %194 : vector<16x32xf32>
    %196 = math.exp %195 : vector<16x32xf32>
    %cst_98 = arith.constant 1.000000e+00 : f32
    %197 = vector.broadcast %cst_98 : f32 to vector<16x32xf32>
    %198 = arith.addf %197, %196 : vector<16x32xf32>
    %199 = arith.divf %197, %198 : vector<16x32xf32>
    %200 = arith.mulf %191, %175 : vector<16x32xf32>
    %201 = arith.mulf %185, %193 : vector<16x32xf32>
    %202 = arith.addf %200, %201 : vector<16x32xf32>
    %203 = math.tanh %202 : vector<16x32xf32>
    %204 = arith.mulf %199, %203 : vector<16x32xf32>
    %cst_99 = arith.constant dense<0.000000e+00> : vector<16x128xf32>
    %205 = tpu.matmul %204, %75, %cst_99 {dimension_numbers = #tpu.dot_dimension_numbers<[1], [0], [0], [1], [0, 0, 1, 1], [], []>} : vector<16x32xf32>, vector<32x128xf32>, vector<16x128xf32> -> vector<16x128xf32>
    %206 = arith.addf %91, %205 : vector<16x128xf32>
    %207 = vector.extract_strided_slice %206 {offsets = [0, 0], sizes = [16, 32], strides = [1, 1]} : vector<16x128xf32> to vector<16x32xf32>
    %208 = arith.negf %207 : vector<16x32xf32>
    %209 = math.exp %208 : vector<16x32xf32>
    %cst_100 = arith.constant 1.000000e+00 : f32
    %210 = vector.broadcast %cst_100 : f32 to vector<16x32xf32>
    %211 = arith.addf %210, %209 : vector<16x32xf32>
    %212 = arith.divf %210, %211 : vector<16x32xf32>
    %213 = vector.extract_strided_slice %206 {offsets = [0, 32], sizes = [16, 32], strides = [1, 1]} : vector<16x128xf32> to vector<16x32xf32>
    %214 = arith.negf %213 : vector<16x32xf32>
    %215 = math.exp %214 : vector<16x32xf32>
    %cst_101 = arith.constant 1.000000e+00 : f32
    %216 = vector.broadcast %cst_101 : f32 to vector<16x32xf32>
    %217 = arith.addf %216, %215 : vector<16x32xf32>
    %218 = arith.divf %216, %217 : vector<16x32xf32>
    %219 = vector.extract_strided_slice %206 {offsets = [0, 64], sizes = [16, 32], strides = [1, 1]} : vector<16x128xf32> to vector<16x32xf32>
    %220 = math.tanh %219 : vector<16x32xf32>
    %221 = vector.extract_strided_slice %206 {offsets = [0, 96], sizes = [16, 32], strides = [1, 1]} : vector<16x128xf32> to vector<16x32xf32>
    %222 = arith.negf %221 : vector<16x32xf32>
    %223 = math.exp %222 : vector<16x32xf32>
    %cst_102 = arith.constant 1.000000e+00 : f32
    %224 = vector.broadcast %cst_102 : f32 to vector<16x32xf32>
    %225 = arith.addf %224, %223 : vector<16x32xf32>
    %226 = arith.divf %224, %225 : vector<16x32xf32>
    %227 = arith.mulf %218, %202 : vector<16x32xf32>
    %228 = arith.mulf %212, %220 : vector<16x32xf32>
    %229 = arith.addf %227, %228 : vector<16x32xf32>
    %230 = math.tanh %229 : vector<16x32xf32>
    %231 = arith.mulf %226, %230 : vector<16x32xf32>
    %cst_103 = arith.constant dense<0.000000e+00> : vector<16x128xf32>
    %232 = tpu.matmul %231, %75, %cst_103 {dimension_numbers = #tpu.dot_dimension_numbers<[1], [0], [0], [1], [0, 0, 1, 1], [], []>} : vector<16x32xf32>, vector<32x128xf32>, vector<16x128xf32> -> vector<16x128xf32>
    %233 = arith.addf %94, %232 : vector<16x128xf32>
    %234 = vector.extract_strided_slice %233 {offsets = [0, 0], sizes = [16, 32], strides = [1, 1]} : vector<16x128xf32> to vector<16x32xf32>
    %235 = arith.negf %234 : vector<16x32xf32>
    %236 = math.exp %235 : vector<16x32xf32>
    %cst_104 = arith.constant 1.000000e+00 : f32
    %237 = vector.broadcast %cst_104 : f32 to vector<16x32xf32>
    %238 = arith.addf %237, %236 : vector<16x32xf32>
    %239 = arith.divf %237, %238 : vector<16x32xf32>
    %240 = vector.extract_strided_slice %233 {offsets = [0, 32], sizes = [16, 32], strides = [1, 1]} : vector<16x128xf32> to vector<16x32xf32>
    %241 = arith.negf %240 : vector<16x32xf32>
    %242 = math.exp %241 : vector<16x32xf32>
    %cst_105 = arith.constant 1.000000e+00 : f32
    %243 = vector.broadcast %cst_105 : f32 to vector<16x32xf32>
    %244 = arith.addf %243, %242 : vector<16x32xf32>
    %245 = arith.divf %243, %244 : vector<16x32xf32>
    %246 = vector.extract_strided_slice %233 {offsets = [0, 64], sizes = [16, 32], strides = [1, 1]} : vector<16x128xf32> to vector<16x32xf32>
    %247 = math.tanh %246 : vector<16x32xf32>
    %248 = vector.extract_strided_slice %233 {offsets = [0, 96], sizes = [16, 32], strides = [1, 1]} : vector<16x128xf32> to vector<16x32xf32>
    %249 = arith.negf %248 : vector<16x32xf32>
    %250 = math.exp %249 : vector<16x32xf32>
    %cst_106 = arith.constant 1.000000e+00 : f32
    %251 = vector.broadcast %cst_106 : f32 to vector<16x32xf32>
    %252 = arith.addf %251, %250 : vector<16x32xf32>
    %253 = arith.divf %251, %252 : vector<16x32xf32>
    %254 = arith.mulf %245, %229 : vector<16x32xf32>
    %255 = arith.mulf %239, %247 : vector<16x32xf32>
    %256 = arith.addf %254, %255 : vector<16x32xf32>
    %257 = math.tanh %256 : vector<16x32xf32>
    %258 = arith.mulf %253, %257 : vector<16x32xf32>
    %c0_107 = arith.constant 0 : index
    %c0_108 = arith.constant 0 : index
    %259 = vector.load %arg7[%c0_107, %c0_108] : memref<32x128xf32, #tpu.memory_space<vmem>>, vector<32x128xf32>
    %c0_109 = arith.constant 0 : index
    %c0_110 = arith.constant 0 : index
    %260 = vector.load %arg8[%c0_109, %c0_110] : memref<32x128xf32, #tpu.memory_space<vmem>>, vector<32x128xf32>
    %c0_111 = arith.constant 0 : index
    %c0_112 = arith.constant 0 : index
    %261 = vector.load %arg9[%c0_111, %c0_112] : memref<1x128xf32, #tpu.memory_space<vmem>>, vector<1x128xf32>
    %cst_113 = arith.constant dense<0.000000e+00> : vector<16x128xf32>
    %262 = tpu.matmul %123, %259, %cst_113 {dimension_numbers = #tpu.dot_dimension_numbers<[1], [0], [0], [1], [0, 0, 1, 1], [], []>} : vector<16x32xf32>, vector<32x128xf32>, vector<16x128xf32> -> vector<16x128xf32>
    %263 = vector.broadcast %261 : vector<1x128xf32> to vector<16x128xf32>
    %264 = arith.addf %262, %263 : vector<16x128xf32>
    %cst_114 = arith.constant dense<0.000000e+00> : vector<16x128xf32>
    %265 = tpu.matmul %150, %259, %cst_114 {dimension_numbers = #tpu.dot_dimension_numbers<[1], [0], [0], [1], [0, 0, 1, 1], [], []>} : vector<16x32xf32>, vector<32x128xf32>, vector<16x128xf32> -> vector<16x128xf32>
    %266 = vector.broadcast %261 : vector<1x128xf32> to vector<16x128xf32>
    %267 = arith.addf %265, %266 : vector<16x128xf32>
    %cst_115 = arith.constant dense<0.000000e+00> : vector<16x128xf32>
    %268 = tpu.matmul %177, %259, %cst_115 {dimension_numbers = #tpu.dot_dimension_numbers<[1], [0], [0], [1], [0, 0, 1, 1], [], []>} : vector<16x32xf32>, vector<32x128xf32>, vector<16x128xf32> -> vector<16x128xf32>
    %269 = vector.broadcast %261 : vector<1x128xf32> to vector<16x128xf32>
    %270 = arith.addf %268, %269 : vector<16x128xf32>
    %cst_116 = arith.constant dense<0.000000e+00> : vector<16x128xf32>
    %271 = tpu.matmul %204, %259, %cst_116 {dimension_numbers = #tpu.dot_dimension_numbers<[1], [0], [0], [1], [0, 0, 1, 1], [], []>} : vector<16x32xf32>, vector<32x128xf32>, vector<16x128xf32> -> vector<16x128xf32>
    %272 = vector.broadcast %261 : vector<1x128xf32> to vector<16x128xf32>
    %273 = arith.addf %271, %272 : vector<16x128xf32>
    %cst_117 = arith.constant dense<0.000000e+00> : vector<16x128xf32>
    %274 = tpu.matmul %231, %259, %cst_117 {dimension_numbers = #tpu.dot_dimension_numbers<[1], [0], [0], [1], [0, 0, 1, 1], [], []>} : vector<16x32xf32>, vector<32x128xf32>, vector<16x128xf32> -> vector<16x128xf32>
    %275 = vector.broadcast %261 : vector<1x128xf32> to vector<16x128xf32>
    %276 = arith.addf %274, %275 : vector<16x128xf32>
    %cst_118 = arith.constant dense<0.000000e+00> : vector<16x128xf32>
    %277 = tpu.matmul %258, %259, %cst_118 {dimension_numbers = #tpu.dot_dimension_numbers<[1], [0], [0], [1], [0, 0, 1, 1], [], []>} : vector<16x32xf32>, vector<32x128xf32>, vector<16x128xf32> -> vector<16x128xf32>
    %278 = vector.broadcast %261 : vector<1x128xf32> to vector<16x128xf32>
    %279 = arith.addf %277, %278 : vector<16x128xf32>
    %cst_119 = arith.constant 0.000000e+00 : f32
    %280 = vector.broadcast %cst_119 : f32 to vector<16x32xf32>
    %cst_120 = arith.constant 0.000000e+00 : f32
    %281 = vector.broadcast %cst_120 : f32 to vector<16x32xf32>
    %cst_121 = arith.constant dense<0.000000e+00> : vector<16x128xf32>
    %282 = tpu.matmul %280, %260, %cst_121 {dimension_numbers = #tpu.dot_dimension_numbers<[1], [0], [0], [1], [0, 0, 1, 1], [], []>} : vector<16x32xf32>, vector<32x128xf32>, vector<16x128xf32> -> vector<16x128xf32>
    %283 = arith.addf %264, %282 : vector<16x128xf32>
    %284 = vector.extract_strided_slice %283 {offsets = [0, 0], sizes = [16, 32], strides = [1, 1]} : vector<16x128xf32> to vector<16x32xf32>
    %285 = arith.negf %284 : vector<16x32xf32>
    %286 = math.exp %285 : vector<16x32xf32>
    %cst_122 = arith.constant 1.000000e+00 : f32
    %287 = vector.broadcast %cst_122 : f32 to vector<16x32xf32>
    %288 = arith.addf %287, %286 : vector<16x32xf32>
    %289 = arith.divf %287, %288 : vector<16x32xf32>
    %290 = vector.extract_strided_slice %283 {offsets = [0, 32], sizes = [16, 32], strides = [1, 1]} : vector<16x128xf32> to vector<16x32xf32>
    %291 = arith.negf %290 : vector<16x32xf32>
    %292 = math.exp %291 : vector<16x32xf32>
    %cst_123 = arith.constant 1.000000e+00 : f32
    %293 = vector.broadcast %cst_123 : f32 to vector<16x32xf32>
    %294 = arith.addf %293, %292 : vector<16x32xf32>
    %295 = arith.divf %293, %294 : vector<16x32xf32>
    %296 = vector.extract_strided_slice %283 {offsets = [0, 64], sizes = [16, 32], strides = [1, 1]} : vector<16x128xf32> to vector<16x32xf32>
    %297 = math.tanh %296 : vector<16x32xf32>
    %298 = vector.extract_strided_slice %283 {offsets = [0, 96], sizes = [16, 32], strides = [1, 1]} : vector<16x128xf32> to vector<16x32xf32>
    %299 = arith.negf %298 : vector<16x32xf32>
    %300 = math.exp %299 : vector<16x32xf32>
    %cst_124 = arith.constant 1.000000e+00 : f32
    %301 = vector.broadcast %cst_124 : f32 to vector<16x32xf32>
    %302 = arith.addf %301, %300 : vector<16x32xf32>
    %303 = arith.divf %301, %302 : vector<16x32xf32>
    %304 = arith.mulf %295, %281 : vector<16x32xf32>
    %305 = arith.mulf %289, %297 : vector<16x32xf32>
    %306 = arith.addf %304, %305 : vector<16x32xf32>
    %307 = math.tanh %306 : vector<16x32xf32>
    %308 = arith.mulf %303, %307 : vector<16x32xf32>
    %cst_125 = arith.constant dense<0.000000e+00> : vector<16x128xf32>
    %309 = tpu.matmul %308, %260, %cst_125 {dimension_numbers = #tpu.dot_dimension_numbers<[1], [0], [0], [1], [0, 0, 1, 1], [], []>} : vector<16x32xf32>, vector<32x128xf32>, vector<16x128xf32> -> vector<16x128xf32>
    %310 = arith.addf %267, %309 : vector<16x128xf32>
    %311 = vector.extract_strided_slice %310 {offsets = [0, 0], sizes = [16, 32], strides = [1, 1]} : vector<16x128xf32> to vector<16x32xf32>
    %312 = arith.negf %311 : vector<16x32xf32>
    %313 = math.exp %312 : vector<16x32xf32>
    %cst_126 = arith.constant 1.000000e+00 : f32
    %314 = vector.broadcast %cst_126 : f32 to vector<16x32xf32>
    %315 = arith.addf %314, %313 : vector<16x32xf32>
    %316 = arith.divf %314, %315 : vector<16x32xf32>
    %317 = vector.extract_strided_slice %310 {offsets = [0, 32], sizes = [16, 32], strides = [1, 1]} : vector<16x128xf32> to vector<16x32xf32>
    %318 = arith.negf %317 : vector<16x32xf32>
    %319 = math.exp %318 : vector<16x32xf32>
    %cst_127 = arith.constant 1.000000e+00 : f32
    %320 = vector.broadcast %cst_127 : f32 to vector<16x32xf32>
    %321 = arith.addf %320, %319 : vector<16x32xf32>
    %322 = arith.divf %320, %321 : vector<16x32xf32>
    %323 = vector.extract_strided_slice %310 {offsets = [0, 64], sizes = [16, 32], strides = [1, 1]} : vector<16x128xf32> to vector<16x32xf32>
    %324 = math.tanh %323 : vector<16x32xf32>
    %325 = vector.extract_strided_slice %310 {offsets = [0, 96], sizes = [16, 32], strides = [1, 1]} : vector<16x128xf32> to vector<16x32xf32>
    %326 = arith.negf %325 : vector<16x32xf32>
    %327 = math.exp %326 : vector<16x32xf32>
    %cst_128 = arith.constant 1.000000e+00 : f32
    %328 = vector.broadcast %cst_128 : f32 to vector<16x32xf32>
    %329 = arith.addf %328, %327 : vector<16x32xf32>
    %330 = arith.divf %328, %329 : vector<16x32xf32>
    %331 = arith.mulf %322, %306 : vector<16x32xf32>
    %332 = arith.mulf %316, %324 : vector<16x32xf32>
    %333 = arith.addf %331, %332 : vector<16x32xf32>
    %334 = math.tanh %333 : vector<16x32xf32>
    %335 = arith.mulf %330, %334 : vector<16x32xf32>
    %cst_129 = arith.constant dense<0.000000e+00> : vector<16x128xf32>
    %336 = tpu.matmul %335, %260, %cst_129 {dimension_numbers = #tpu.dot_dimension_numbers<[1], [0], [0], [1], [0, 0, 1, 1], [], []>} : vector<16x32xf32>, vector<32x128xf32>, vector<16x128xf32> -> vector<16x128xf32>
    %337 = arith.addf %270, %336 : vector<16x128xf32>
    %338 = vector.extract_strided_slice %337 {offsets = [0, 0], sizes = [16, 32], strides = [1, 1]} : vector<16x128xf32> to vector<16x32xf32>
    %339 = arith.negf %338 : vector<16x32xf32>
    %340 = math.exp %339 : vector<16x32xf32>
    %cst_130 = arith.constant 1.000000e+00 : f32
    %341 = vector.broadcast %cst_130 : f32 to vector<16x32xf32>
    %342 = arith.addf %341, %340 : vector<16x32xf32>
    %343 = arith.divf %341, %342 : vector<16x32xf32>
    %344 = vector.extract_strided_slice %337 {offsets = [0, 32], sizes = [16, 32], strides = [1, 1]} : vector<16x128xf32> to vector<16x32xf32>
    %345 = arith.negf %344 : vector<16x32xf32>
    %346 = math.exp %345 : vector<16x32xf32>
    %cst_131 = arith.constant 1.000000e+00 : f32
    %347 = vector.broadcast %cst_131 : f32 to vector<16x32xf32>
    %348 = arith.addf %347, %346 : vector<16x32xf32>
    %349 = arith.divf %347, %348 : vector<16x32xf32>
    %350 = vector.extract_strided_slice %337 {offsets = [0, 64], sizes = [16, 32], strides = [1, 1]} : vector<16x128xf32> to vector<16x32xf32>
    %351 = math.tanh %350 : vector<16x32xf32>
    %352 = vector.extract_strided_slice %337 {offsets = [0, 96], sizes = [16, 32], strides = [1, 1]} : vector<16x128xf32> to vector<16x32xf32>
    %353 = arith.negf %352 : vector<16x32xf32>
    %354 = math.exp %353 : vector<16x32xf32>
    %cst_132 = arith.constant 1.000000e+00 : f32
    %355 = vector.broadcast %cst_132 : f32 to vector<16x32xf32>
    %356 = arith.addf %355, %354 : vector<16x32xf32>
    %357 = arith.divf %355, %356 : vector<16x32xf32>
    %358 = arith.mulf %349, %333 : vector<16x32xf32>
    %359 = arith.mulf %343, %351 : vector<16x32xf32>
    %360 = arith.addf %358, %359 : vector<16x32xf32>
    %361 = math.tanh %360 : vector<16x32xf32>
    %362 = arith.mulf %357, %361 : vector<16x32xf32>
    %cst_133 = arith.constant dense<0.000000e+00> : vector<16x128xf32>
    %363 = tpu.matmul %362, %260, %cst_133 {dimension_numbers = #tpu.dot_dimension_numbers<[1], [0], [0], [1], [0, 0, 1, 1], [], []>} : vector<16x32xf32>, vector<32x128xf32>, vector<16x128xf32> -> vector<16x128xf32>
    %364 = arith.addf %273, %363 : vector<16x128xf32>
    %365 = vector.extract_strided_slice %364 {offsets = [0, 0], sizes = [16, 32], strides = [1, 1]} : vector<16x128xf32> to vector<16x32xf32>
    %366 = arith.negf %365 : vector<16x32xf32>
    %367 = math.exp %366 : vector<16x32xf32>
    %cst_134 = arith.constant 1.000000e+00 : f32
    %368 = vector.broadcast %cst_134 : f32 to vector<16x32xf32>
    %369 = arith.addf %368, %367 : vector<16x32xf32>
    %370 = arith.divf %368, %369 : vector<16x32xf32>
    %371 = vector.extract_strided_slice %364 {offsets = [0, 32], sizes = [16, 32], strides = [1, 1]} : vector<16x128xf32> to vector<16x32xf32>
    %372 = arith.negf %371 : vector<16x32xf32>
    %373 = math.exp %372 : vector<16x32xf32>
    %cst_135 = arith.constant 1.000000e+00 : f32
    %374 = vector.broadcast %cst_135 : f32 to vector<16x32xf32>
    %375 = arith.addf %374, %373 : vector<16x32xf32>
    %376 = arith.divf %374, %375 : vector<16x32xf32>
    %377 = vector.extract_strided_slice %364 {offsets = [0, 64], sizes = [16, 32], strides = [1, 1]} : vector<16x128xf32> to vector<16x32xf32>
    %378 = math.tanh %377 : vector<16x32xf32>
    %379 = vector.extract_strided_slice %364 {offsets = [0, 96], sizes = [16, 32], strides = [1, 1]} : vector<16x128xf32> to vector<16x32xf32>
    %380 = arith.negf %379 : vector<16x32xf32>
    %381 = math.exp %380 : vector<16x32xf32>
    %cst_136 = arith.constant 1.000000e+00 : f32
    %382 = vector.broadcast %cst_136 : f32 to vector<16x32xf32>
    %383 = arith.addf %382, %381 : vector<16x32xf32>
    %384 = arith.divf %382, %383 : vector<16x32xf32>
    %385 = arith.mulf %376, %360 : vector<16x32xf32>
    %386 = arith.mulf %370, %378 : vector<16x32xf32>
    %387 = arith.addf %385, %386 : vector<16x32xf32>
    %388 = math.tanh %387 : vector<16x32xf32>
    %389 = arith.mulf %384, %388 : vector<16x32xf32>
    %cst_137 = arith.constant dense<0.000000e+00> : vector<16x128xf32>
    %390 = tpu.matmul %389, %260, %cst_137 {dimension_numbers = #tpu.dot_dimension_numbers<[1], [0], [0], [1], [0, 0, 1, 1], [], []>} : vector<16x32xf32>, vector<32x128xf32>, vector<16x128xf32> -> vector<16x128xf32>
    %391 = arith.addf %276, %390 : vector<16x128xf32>
    %392 = vector.extract_strided_slice %391 {offsets = [0, 0], sizes = [16, 32], strides = [1, 1]} : vector<16x128xf32> to vector<16x32xf32>
    %393 = arith.negf %392 : vector<16x32xf32>
    %394 = math.exp %393 : vector<16x32xf32>
    %cst_138 = arith.constant 1.000000e+00 : f32
    %395 = vector.broadcast %cst_138 : f32 to vector<16x32xf32>
    %396 = arith.addf %395, %394 : vector<16x32xf32>
    %397 = arith.divf %395, %396 : vector<16x32xf32>
    %398 = vector.extract_strided_slice %391 {offsets = [0, 32], sizes = [16, 32], strides = [1, 1]} : vector<16x128xf32> to vector<16x32xf32>
    %399 = arith.negf %398 : vector<16x32xf32>
    %400 = math.exp %399 : vector<16x32xf32>
    %cst_139 = arith.constant 1.000000e+00 : f32
    %401 = vector.broadcast %cst_139 : f32 to vector<16x32xf32>
    %402 = arith.addf %401, %400 : vector<16x32xf32>
    %403 = arith.divf %401, %402 : vector<16x32xf32>
    %404 = vector.extract_strided_slice %391 {offsets = [0, 64], sizes = [16, 32], strides = [1, 1]} : vector<16x128xf32> to vector<16x32xf32>
    %405 = math.tanh %404 : vector<16x32xf32>
    %406 = vector.extract_strided_slice %391 {offsets = [0, 96], sizes = [16, 32], strides = [1, 1]} : vector<16x128xf32> to vector<16x32xf32>
    %407 = arith.negf %406 : vector<16x32xf32>
    %408 = math.exp %407 : vector<16x32xf32>
    %cst_140 = arith.constant 1.000000e+00 : f32
    %409 = vector.broadcast %cst_140 : f32 to vector<16x32xf32>
    %410 = arith.addf %409, %408 : vector<16x32xf32>
    %411 = arith.divf %409, %410 : vector<16x32xf32>
    %412 = arith.mulf %403, %387 : vector<16x32xf32>
    %413 = arith.mulf %397, %405 : vector<16x32xf32>
    %414 = arith.addf %412, %413 : vector<16x32xf32>
    %415 = math.tanh %414 : vector<16x32xf32>
    %416 = arith.mulf %411, %415 : vector<16x32xf32>
    %cst_141 = arith.constant dense<0.000000e+00> : vector<16x128xf32>
    %417 = tpu.matmul %416, %260, %cst_141 {dimension_numbers = #tpu.dot_dimension_numbers<[1], [0], [0], [1], [0, 0, 1, 1], [], []>} : vector<16x32xf32>, vector<32x128xf32>, vector<16x128xf32> -> vector<16x128xf32>
    %418 = arith.addf %279, %417 : vector<16x128xf32>
    %419 = vector.extract_strided_slice %418 {offsets = [0, 0], sizes = [16, 32], strides = [1, 1]} : vector<16x128xf32> to vector<16x32xf32>
    %420 = arith.negf %419 : vector<16x32xf32>
    %421 = math.exp %420 : vector<16x32xf32>
    %cst_142 = arith.constant 1.000000e+00 : f32
    %422 = vector.broadcast %cst_142 : f32 to vector<16x32xf32>
    %423 = arith.addf %422, %421 : vector<16x32xf32>
    %424 = arith.divf %422, %423 : vector<16x32xf32>
    %425 = vector.extract_strided_slice %418 {offsets = [0, 32], sizes = [16, 32], strides = [1, 1]} : vector<16x128xf32> to vector<16x32xf32>
    %426 = arith.negf %425 : vector<16x32xf32>
    %427 = math.exp %426 : vector<16x32xf32>
    %cst_143 = arith.constant 1.000000e+00 : f32
    %428 = vector.broadcast %cst_143 : f32 to vector<16x32xf32>
    %429 = arith.addf %428, %427 : vector<16x32xf32>
    %430 = arith.divf %428, %429 : vector<16x32xf32>
    %431 = vector.extract_strided_slice %418 {offsets = [0, 64], sizes = [16, 32], strides = [1, 1]} : vector<16x128xf32> to vector<16x32xf32>
    %432 = math.tanh %431 : vector<16x32xf32>
    %433 = vector.extract_strided_slice %418 {offsets = [0, 96], sizes = [16, 32], strides = [1, 1]} : vector<16x128xf32> to vector<16x32xf32>
    %434 = arith.negf %433 : vector<16x32xf32>
    %435 = math.exp %434 : vector<16x32xf32>
    %cst_144 = arith.constant 1.000000e+00 : f32
    %436 = vector.broadcast %cst_144 : f32 to vector<16x32xf32>
    %437 = arith.addf %436, %435 : vector<16x32xf32>
    %438 = arith.divf %436, %437 : vector<16x32xf32>
    %439 = arith.mulf %430, %414 : vector<16x32xf32>
    %440 = arith.mulf %424, %432 : vector<16x32xf32>
    %441 = arith.addf %439, %440 : vector<16x32xf32>
    %442 = math.tanh %441 : vector<16x32xf32>
    %443 = arith.mulf %438, %442 : vector<16x32xf32>
    %c0_145 = arith.constant 0 : index
    %c0_146 = arith.constant 0 : index
    %444 = vector.load %arg10[%c0_145, %c0_146] : memref<16x32xf32, #tpu.memory_space<vmem>>, vector<16x32xf32>
    tpu.vector_store %arg10[%c0_145, %c0_146], %443 {strides = array<i32>} : memref<16x32xf32, #tpu.memory_space<vmem>>, vector<16x32xf32>,
    return
  }
}

</mosaic_0001>

<llo_original>
// kernel: tpu_custom_call.1
$region0: #{tpu_custom_call.1}
  #allocation0 [shape = 'u32[]', space=smem, size = 0x4, offset = 0x4, fixed_abs, tag = 'smem constant byte address 0x4 - core index']
  #allocation1 [shape = 'u32[144,128]{1,0:T(1,128)}', space=vmem, size = 0x12000, scoped, tag = 'internal scratch']
  %s0 = inlined_call_operand.vmem [shape: f32[6,16,16], index: 0, kind: input, shape index: {}]
  %s1 = inlined_call_operand.vmem [shape: f32[6,16,8], index: 1, kind: input, shape index: {}]
  %s2 = inlined_call_operand.hbm [shape: f32[8,16], index: 2, kind: input, shape index: {}]
  %s3 = inlined_call_operand.vmem [shape: f32[16,16], index: 3, kind: input, shape index: {}]
  %s4 = inlined_call_operand.hbm [shape: f32[16,128], index: 4, kind: input, shape index: {}]
  %s5 = inlined_call_operand.vmem [shape: f32[32,128], index: 5, kind: input, shape index: {}]
  %s6 = inlined_call_operand.vmem [shape: f32[1,128], index: 6, kind: input, shape index: {}]
  %s7 = inlined_call_operand.hbm [shape: f32[32,128], index: 7, kind: input, shape index: {}]
  %s8 = inlined_call_operand.hbm [shape: f32[32,128], index: 8, kind: input, shape index: {}]
  %s9 = inlined_call_operand.vmem [shape: f32[1,128], index: 9, kind: input, shape index: {}]
  %s10 = inlined_call_operand.hbm [shape: f32[16,32], index: 10, kind: output, shape index: {}]
  %s11 = sld [smem:[#allocation0]]
  $region66: #{tpu_custom_call.1} parent=0
    _
  %s13 = ssub.s32 1, %s11
  %s14 = scalar_select 0, %s13, %s11
  $region1: #{tpu_custom_call.1} parent=0
    #allocation2 [shape = 'u8[4096]{0}', space=vmem, size = 0x1000, scoped, tag = 'input window, operand 2, single buffered']
    #allocation3 [shape = 's32[1]{0}', space=sflag, size = 0x4, scoped, tag = 'scoped memory for tpu_custom_call.1']
    #allocation4 [shape = 's32[1]{0}', space=sflag, size = 0x4, scoped, tag = 'scoped memory for tpu_custom_call.1']
    #allocation5 [shape = 'u8[8192]{0}', space=vmem, size = 0x2000, scoped, tag = 'input window, operand 4, single buffered']
    #allocation6 [shape = 's32[1]{0}', space=sflag, size = 0x4, scoped, tag = 'scoped memory for tpu_custom_call.1']
    #allocation7 [shape = 'u8[16384]{0}', space=vmem, size = 0x4000, scoped, tag = 'input window, operand 7, single buffered']
    #allocation8 [shape = 'u8[16384]{0}', space=vmem, size = 0x4000, scoped, tag = 'input window, operand 8, single buffered']
    #allocation9 [shape = 's32[1]{0}', space=sflag, size = 0x4, scoped, tag = 'scoped memory for tpu_custom_call.1']
    #allocation10 [shape = 'u8[8192]{0}', space=vmem, size = 0x2000, scoped, tag = 'output window, operand 0, single buffered']
    %15 = vsyncpa [#allocation3], 0
    %16 = vsyncpa [#allocation6], 0
    %17 = vsyncpa [#allocation9], 0
    %18 = vsyncpa [#allocation4], 0
    // Predicated region
    $region2: #{tpu_custom_call.1} parent=1 // pred_check
      _
    $region3: #{tpu_custom_call.1} parent=1 // pred_check_branch
      %20 = sbr.rel (0) target = $region5
    $region4: #{tpu_custom_call.1} parent=1 // pred_region
      _
    $region5: #{tpu_custom_call.1} parent=1 // pred_fallthru
      _
    // Predicated region
    $region6: #{tpu_custom_call.1} parent=1 // pred_check
      _
    $region7: #{tpu_custom_call.1} parent=1 // pred_check_branch
      %22 = sbr.rel (0) target = $region9
    $region8: #{tpu_custom_call.1} parent=1 // pred_region
      _
    $region9: #{tpu_custom_call.1} parent=1 // pred_fallthru
      _
    // Predicated region
    $region10: #{tpu_custom_call.1} parent=1 // pred_check
      _
    $region11: #{tpu_custom_call.1} parent=1 // pred_check_branch
      %24 = sbr.rel (0) target = $region13
    $region12: #{tpu_custom_call.1} parent=1 // pred_region
      %s26 = ssub.s32 128, 128
      %27 = vsyncadd [#allocation3], %s26
      %s29 = sshll.u32 [#allocation2], 4
      %s30 = int_to_ptr.vmem [resolvable:$true] %s29
      %32 = dma.hbm_to_vmem [thread:$0]  %s2, 128, %s30, [#allocation3]
    $region13: #{tpu_custom_call.1} parent=1 // pred_fallthru
      _
    // Predicated region
    $region14: #{tpu_custom_call.1} parent=1 // pred_check
      _
    $region15: #{tpu_custom_call.1} parent=1 // pred_check_branch
      %34 = sbr.rel (0) target = $region17
    $region16: #{tpu_custom_call.1} parent=1 // pred_region
      _
    $region17: #{tpu_custom_call.1} parent=1 // pred_fallthru
      _
    // Predicated region
    $region18: #{tpu_custom_call.1} parent=1 // pred_check
      _
    $region19: #{tpu_custom_call.1} parent=1 // pred_check_branch
      %36 = sbr.rel (0) target = $region21
    $region20: #{tpu_custom_call.1} parent=1 // pred_region
      %s38 = ssub.s32 256, 256
      %39 = vsyncadd [#allocation6], %s38
      %s40 = sshll.u32 [#allocation5], 4
      %s41 = int_to_ptr.vmem [resolvable:$true] %s40
      %46 = dma.hbm_to_vmem [thread:$0]  %s4, 256, %s41, [#allocation6], 128, 128, 8
    $region21: #{tpu_custom_call.1} parent=1 // pred_fallthru
      _
    // Predicated region
    $region22: #{tpu_custom_call.1} parent=1 // pred_check
      _
    $region23: #{tpu_custom_call.1} parent=1 // pred_check_branch
      %48 = sbr.rel (0) target = $region25
    $region24: #{tpu_custom_call.1} parent=1 // pred_region
      _
    $region25: #{tpu_custom_call.1} parent=1 // pred_fallthru
      _
    // Predicated region
    $region26: #{tpu_custom_call.1} parent=1 // pred_check
      _
    $region27: #{tpu_custom_call.1} parent=1 // pred_check_branch
      %50 = sbr.rel (0) target = $region29
    $region28: #{tpu_custom_call.1} parent=1 // pred_region
      _
    $region29: #{tpu_custom_call.1} parent=1 // pred_fallthru
      _
    // Predicated region
    $region30: #{tpu_custom_call.1} parent=1 // pred_check
      _
    $region31: #{tpu_custom_call.1} parent=1 // pred_check_branch
      %52 = sbr.rel (0) target = $region33
    $region32: #{tpu_custom_call.1} parent=1 // pred_region
      %s54 = ssub.s32 512, 512
      %55 = vsyncadd [#allocation6], %s54
      %s56 = sshll.u32 [#allocation7], 4
      %s57 = int_to_ptr.vmem [resolvable:$true] %s56
      %62 = dma.hbm_to_vmem [thread:$0]  %s7, 512, %s57, [#allocation6], 128, 128, 8
    $region33: #{tpu_custom_call.1} parent=1 // pred_fallthru
      _
    // Predicated region
    $region34: #{tpu_custom_call.1} parent=1 // pred_check
      _
    $region35: #{tpu_custom_call.1} parent=1 // pred_check_branch
      %64 = sbr.rel (0) target = $region37
    $region36: #{tpu_custom_call.1} parent=1 // pred_region
      %s66 = ssub.s32 512, 512
      %67 = vsyncadd [#allocation9], %s66
      %s68 = sshll.u32 [#allocation8], 4
      %s69 = int_to_ptr.vmem [resolvable:$true] %s68
      %74 = dma.hbm_to_vmem [thread:$0]  %s8, 512, %s69, [#allocation9], 128, 128, 8
    $region37: #{tpu_custom_call.1} parent=1 // pred_fallthru
      _
    // Predicated region
    $region38: #{tpu_custom_call.1} parent=1 // pred_check
      _
    $region39: #{tpu_custom_call.1} parent=1 // pred_check_branch
      %76 = sbr.rel (0) target = $region41
    $region40: #{tpu_custom_call.1} parent=1 // pred_region
      _
    $region41: #{tpu_custom_call.1} parent=1 // pred_fallthru
      _
    // Predicated region
    $region42: #{tpu_custom_call.1} parent=1 // pred_check
      _
    $region43: #{tpu_custom_call.1} parent=1 // pred_check_branch
      %78 = sbr.rel (0) target = $region45
    $region44: #{tpu_custom_call.1} parent=1 // pred_region
      %79 = dma.done [#allocation3], 128
    $region45: #{tpu_custom_call.1} parent=1 // pred_fallthru
      _
    // Predicated region
    $region46: #{tpu_custom_call.1} parent=1 // pred_check
      _
    $region47: #{tpu_custom_call.1} parent=1 // pred_check_branch
      %81 = sbr.rel (0) target = $region49
    $region48: #{tpu_custom_call.1} parent=1 // pred_region
      %82 = dma.done [#allocation6], 256
    $region49: #{tpu_custom_call.1} parent=1 // pred_fallthru
      _
    // Predicated region
    $region50: #{tpu_custom_call.1} parent=1 // pred_check
      _
    $region51: #{tpu_custom_call.1} parent=1 // pred_check_branch
      %84 = sbr.rel (0) target = $region53
    $region52: #{tpu_custom_call.1} parent=1 // pred_region
      %85 = dma.done [#allocation6], 512
    $region53: #{tpu_custom_call.1} parent=1 // pred_fallthru
      _
    // Predicated region
    $region54: #{tpu_custom_call.1} parent=1 // pred_check
      _
    $region55: #{tpu_custom_call.1} parent=1 // pred_check_branch
      %87 = sbr.rel (0) target = $region57
    $region56: #{tpu_custom_call.1} parent=1 // pred_region
      %88 = dma.done [#allocation9], 512
    $region57: #{tpu_custom_call.1} parent=1 // pred_fallthru
      _
    %v89 = vld [vmem:[#allocation2] sm:$0xff]
    %v90 = vld [vmem:[%s3] sm:$0xff]
    %v91 = vld [vmem:[%s3 + $0x8] sm:$0xff]
    %v92 = vld [vmem:[%s0] sm:$0xff]
    %v93 = vld [vmem:[%s0 + $0x8] sm:$0xff]
    %v94 = vld [vmem:[%s1] sm:$0xff]
    %v95 = vld [vmem:[%s1 + $0x8] sm:$0xff]
    %vm96 = vcmask 64512
    %v98 = vsel %vm96, %v94, 0
    %v101 = vsel %vm96, %v95, 0
    %103 = vmatprep.subr.mxu0 0.0
    %104 = vmatpush1.msra.mxu0 0.0
    %105 = vmatprep.subr.mxu0 0.0
    %106 = vmatpush1.msra.mxu0 0.0
    %107 = vmatprep.subr.mxu0 0.0
    %108 = vmatpush1.msra.mxu0 0.0
    %109 = vmatprep.subr.mxu0 0.0
    %110 = vmatpush1.msra.mxu0 0.0
    %111 = vmatprep.subr.mxu0 0.0
    %112 = vmatpush1.msra.mxu0 0.0
    %113 = vmatprep.subr.mxu0 0.0
    %114 = vmatpush1.msra.mxu0 0.0
    %115 = vmatprep.subr.mxu0 0.0
    %116 = vmatpush1.msra.mxu0 0.0
    %117 = vmatprep.subr.mxu0 0.0
    %118 = vmatpush1.msra.mxu0 0.0
    %119 = vmatprep.subr.mxu0 0.0
    %120 = vmatpush1.msra.mxu0 0.0
    %121 = vmatprep.subr.mxu0 0.0
    %122 = vmatpush1.msra.mxu0 0.0
    %123 = vmatprep.subr.mxu0 0.0
    %124 = vmatpush1.msra.mxu0 0.0
    %125 = vmatprep.subr.mxu0 0.0
    %126 = vmatpush1.msra.mxu0 0.0
    %127 = vmatprep.subr.mxu0 0.0
    %128 = vmatpush1.msra.mxu0 0.0
    %129 = vmatprep.subr.mxu0 0.0
    %130 = vmatpush1.msra.mxu0 0.0
    %131 = vmatprep.subr.mxu0 0.0
    %132 = vmatpush1.msra.mxu0 0.0
    %133 = vmatprep.subr.mxu0 0.0
    %134 = vmatpush1.msra.mxu0 %v89
    %135 = vmatprep.subr.mxu0 0.0
    %136 = vmatpush2.msra.mxu0 0.0
    %137 = vmatprep.subr.mxu0 0.0
    %138 = vmatpush2.msra.mxu0 0.0
    %139 = vmatprep.subr.mxu0 0.0
    %140 = vmatpush2.msra.mxu0 0.0
    %141 = vmatprep.subr.mxu0 0.0
    %142 = vmatpush2.msra.mxu0 0.0
    %143 = vmatprep.subr.mxu0 0.0
    %144 = vmatpush2.msra.mxu0 0.0
    %145 = vmatprep.subr.mxu0 0.0
    %146 = vmatpush2.msra.mxu0 0.0
    %147 = vmatprep.subr.mxu0 0.0
    %148 = vmatpush2.msra.mxu0 0.0
    %149 = vmatprep.subr.mxu0 0.0
    %150 = vmatpush2.msra.mxu0 0.0
    %151 = vmatprep.subr.mxu0 0.0
    %152 = vmatpush2.msra.mxu0 0.0
    %153 = vmatprep.subr.mxu0 0.0
    %154 = vmatpush2.msra.mxu0 0.0
    %155 = vmatprep.subr.mxu0 0.0
    %156 = vmatpush2.msra.mxu0 0.0
    %157 = vmatprep.subr.mxu0 0.0
    %158 = vmatpush2.msra.mxu0 0.0
    %159 = vmatprep.subr.mxu0 0.0
    %160 = vmatpush2.msra.mxu0 0.0
    %161 = vmatprep.subr.mxu0 0.0
    %162 = vmatpush2.msra.mxu0 0.0
    %163 = vmatprep.subr.mxu0 0.0
    %164 = vmatpush2.msra.mxu0 0.0
    %165 = vmatprep.subr.mxu0 0.0
    %166 = vmatpush2.msra.mxu0 0.0
    %167 = vmatprep.mubr.f32.mxu0 0.0
    %168 = vmatmul.mubr.f32.gmra.mxu0 %v98
    %v169 = vpop.f32.mrf.mxu0
    %v170 = vadd.f32 0.0, %v169
    %v171 = vpop.f32.mrf.mxu0
    %172 = vmatprep.mubr.f32.mxu0 0.0
    %173 = vmatmul.mubr.f32.gmra.mxu0 %v101
    %v174 = vpop.f32.mrf.mxu0
    %v175 = vadd.f32 0.0, %v174
    %v176 = vpop.f32.mrf.mxu0
    %177 = vdwg.mxu0
    %vm178 = vcmask 130048
    %v180 = vsel %vm178, %v92, 0
    %v183 = vsel %vm178, %v93, 0
    %185 = vmatprep.subr.mxu0 0.0
    %186 = vmatpush1.msra.mxu0 0.0
    %187 = vmatprep.subr.mxu0 0.0
    %188 = vmatpush1.msra.mxu0 0.0
    %189 = vmatprep.subr.mxu0 0.0
    %190 = vmatpush1.msra.mxu0 0.0
    %191 = vmatprep.subr.mxu0 0.0
    %192 = vmatpush1.msra.mxu0 0.0
    %193 = vmatprep.subr.mxu0 0.0
    %194 = vmatpush1.msra.mxu0 0.0
    %195 = vmatprep.subr.mxu0 0.0
    %196 = vmatpush1.msra.mxu0 0.0
    %197 = vmatprep.subr.mxu0 0.0
    %198 = vmatpush1.msra.mxu0 0.0
    %199 = vmatprep.subr.mxu0 0.0
    %200 = vmatpush1.msra.mxu0 0.0
    %201 = vmatprep.subr.mxu0 0.0
    %202 = vmatpush1.msra.mxu0 0.0
    %203 = vmatprep.subr.mxu0 0.0
    %204 = vmatpush1.msra.mxu0 0.0
    %205 = vmatprep.subr.mxu0 0.0
    %206 = vmatpush1.msra.mxu0 0.0
    %207 = vmatprep.subr.mxu0 0.0
    %208 = vmatpush1.msra.mxu0 0.0
    %209 = vmatprep.subr.mxu0 0.0
    %210 = vmatpush1.msra.mxu0 0.0
    %211 = vmatprep.subr.mxu0 0.0
    %212 = vmatpush1.msra.mxu0 0.0
    %213 = vmatprep.subr.mxu0 0.0
    %214 = vmatpush1.msra.mxu0 %v175
    %215 = vmatprep.subr.mxu0 0.0
    %216 = vmatpush1.msra.mxu0 %v170
    %217 = vmatprep.subr.mxu0 0.0
    %218 = vmatpush2.msra.mxu0 0.0
    %219 = vmatprep.subr.mxu0 0.0
    %220 = vmatpush2.msra.mxu0 0.0
    %221 = vmatprep.subr.mxu0 0.0
    %222 = vmatpush2.msra.mxu0 0.0
    %223 = vmatprep.subr.mxu0 0.0
    %224 = vmatpush2.msra.mxu0 0.0
    %225 = vmatprep.subr.mxu0 0.0
    %226 = vmatpush2.msra.mxu0 0.0
    %227 = vmatprep.subr.mxu0 0.0
    %228 = vmatpush2.msra.mxu0 0.0
    %229 = vmatprep.subr.mxu0 0.0
    %230 = vmatpush2.msra.mxu0 0.0
    %231 = vmatprep.subr.mxu0 0.0
    %232 = vmatpush2.msra.mxu0 0.0
    %233 = vmatprep.subr.mxu0 0.0
    %234 = vmatpush2.msra.mxu0 0.0
    %235 = vmatprep.subr.mxu0 0.0
    %236 = vmatpush2.msra.mxu0 0.0
    %237 = vmatprep.subr.mxu0 0.0
    %238 = vmatpush2.msra.mxu0 0.0
    %239 = vmatprep.subr.mxu0 0.0
    %240 = vmatpush2.msra.mxu0 0.0
    %241 = vmatprep.subr.mxu0 0.0
    %242 = vmatpush2.msra.mxu0 0.0
    %243 = vmatprep.subr.mxu0 0.0
    %244 = vmatpush2.msra.mxu0 0.0
    %245 = vmatprep.subr.mxu0 0.0
    %246 = vmatpush2.msra.mxu0 0.0
    %247 = vmatprep.subr.mxu0 0.0
    %248 = vmatpush2.msra.mxu0 0.0
    %249 = vmatprep.mubr.f32.mxu0 0.0
    %250 = vmatmul.mubr.f32.gmra.mxu0 %v180
    %v251 = vpop.f32.mrf.mxu0
    %v252 = vadd.f32 0.0, %v251
    %v253 = vpop.f32.mrf.mxu0
    %254 = vmatprep.mubr.f32.mxu0 0.0
    %255 = vmatmul.mubr.f32.gmra.mxu0 %v183
    %v256 = vpop.f32.mrf.mxu0
    %v257 = vadd.f32 0.0, %v256
    %v258 = vpop.f32.mrf.mxu0
    %259 = vdwg.mxu0
    %v260 = vmax.f32 %v252, 0.0
    %v261 = vmax.f32 %v257, 0.0
    %v263 = vsel %vm178, %v260, 0
    %v266 = vsel %vm178, %v261, 0
    %268 = vmatprep.subr.mxu0 0.0
    %269 = vmatpush1.msra.mxu0 0.0
    %270 = vmatprep.subr.mxu0 0.0
    %271 = vmatpush1.msra.mxu0 0.0
    %272 = vmatprep.subr.mxu0 0.0
    %273 = vmatpush1.msra.mxu0 0.0
    %274 = vmatprep.subr.mxu0 0.0
    %275 = vmatpush1.msra.mxu0 0.0
    %276 = vmatprep.subr.mxu0 0.0
    %277 = vmatpush1.msra.mxu0 0.0
    %278 = vmatprep.subr.mxu0 0.0
    %279 = vmatpush1.msra.mxu0 0.0
    %280 = vmatprep.subr.mxu0 0.0
    %281 = vmatpush1.msra.mxu0 0.0
    %282 = vmatprep.subr.mxu0 0.0
    %283 = vmatpush1.msra.mxu0 0.0
    %284 = vmatprep.subr.mxu0 0.0
    %285 = vmatpush1.msra.mxu0 0.0
    %286 = vmatprep.subr.mxu0 0.0
    %287 = vmatpush1.msra.mxu0 0.0
    %288 = vmatprep.subr.mxu0 0.0
    %289 = vmatpush1.msra.mxu0 0.0
    %290 = vmatprep.subr.mxu0 0.0
    %291 = vmatpush1.msra.mxu0 0.0
    %292 = vmatprep.subr.mxu0 0.0
    %293 = vmatpush1.msra.mxu0 0.0
    %294 = vmatprep.subr.mxu0 0.0
    %295 = vmatpush1.msra.mxu0 0.0
    %296 = vmatprep.subr.mxu0 0.0
    %297 = vmatpush1.msra.mxu0 %v91
    %298 = vmatprep.subr.mxu0 0.0
    %299 = vmatpush1.msra.mxu0 %v90
    %300 = vmatprep.subr.mxu0 0.0
    %301 = vmatpush2.msra.mxu0 0.0
    %302 = vmatprep.subr.mxu0 0.0
    %303 = vmatpush2.msra.mxu0 0.0
    %304 = vmatprep.subr.mxu0 0.0
    %305 = vmatpush2.msra.mxu0 0.0
    %306 = vmatprep.subr.mxu0 0.0
    %307 = vmatpush2.msra.mxu0 0.0
    %308 = vmatprep.subr.mxu0 0.0
    %309 = vmatpush2.msra.mxu0 0.0
    %310 = vmatprep.subr.mxu0 0.0
    %311 = vmatpush2.msra.mxu0 0.0
    %312 = vmatprep.subr.mxu0 0.0
    %313 = vmatpush2.msra.mxu0 0.0
    %314 = vmatprep.subr.mxu0 0.0
    %315 = vmatpush2.msra.mxu0 0.0
    %316 = vmatprep.subr.mxu0 0.0
    %317 = vmatpush2.msra.mxu0 0.0
    %318 = vmatprep.subr.mxu0 0.0
    %319 = vmatpush2.msra.mxu0 0.0
    %320 = vmatprep.subr.mxu0 0.0
    %321 = vmatpush2.msra.mxu0 0.0
    %322 = vmatprep.subr.mxu0 0.0
    %323 = vmatpush2.msra.mxu0 0.0
    %324 = vmatprep.subr.mxu0 0.0
    %325 = vmatpush2.msra.mxu0 0.0
    %326 = vmatprep.subr.mxu0 0.0
    %327 = vmatpush2.msra.mxu0 0.0
    %328 = vmatprep.subr.mxu0 0.0
    %329 = vmatpush2.msra.mxu0 0.0
    %330 = vmatprep.subr.mxu0 0.0
    %331 = vmatpush2.msra.mxu0 0.0
    %332 = vmatprep.mubr.f32.mxu0 0.0
    %333 = vmatmul.mubr.f32.gmra.mxu0 %v263
    %v334 = vpop.f32.mrf.mxu0
    %v335 = vadd.f32 0.0, %v334
    %v336 = vpop.f32.mrf.mxu0
    %337 = vmatprep.mubr.f32.mxu0 0.0
    %338 = vmatmul.mubr.f32.gmra.mxu0 %v266
    %v339 = vpop.f32.mrf.mxu0
    %v340 = vadd.f32 0.0, %v339
    %v341 = vpop.f32.mrf.mxu0
    %342 = vdwg.mxu0
    %343 = vmatprep.subr.mxu0 0.0
    %344 = vmatpush1.msra.mxu0 0.0
    %345 = vmatprep.subr.mxu0 0.0
    %346 = vmatpush1.msra.mxu0 0.0
    %347 = vmatprep.subr.mxu0 0.0
    %348 = vmatpush1.msra.mxu0 0.0
    %349 = vmatprep.subr.mxu0 0.0
    %350 = vmatpush1.msra.mxu0 0.0
    %351 = vmatprep.subr.mxu0 0.0
    %352 = vmatpush1.msra.mxu0 0.0
    %353 = vmatprep.subr.mxu0 0.0
    %354 = vmatpush1.msra.mxu0 0.0
    %355 = vmatprep.subr.mxu0 0.0
    %356 = vmatpush1.msra.mxu0 0.0
    %357 = vmatprep.subr.mxu0 0.0
    %358 = vmatpush1.msra.mxu0 0.0
    %359 = vmatprep.subr.mxu0 0.0
    %360 = vmatpush1.msra.mxu0 0.0
    %361 = vmatprep.subr.mxu0 0.0
    %362 = vmatpush1.msra.mxu0 0.0
    %363 = vmatprep.subr.mxu0 0.0
    %364 = vmatpush1.msra.mxu0 0.0
    %365 = vmatprep.subr.mxu0 0.0
    %366 = vmatpush1.msra.mxu0 0.0
    %367 = vmatprep.subr.mxu0 0.0
    %368 = vmatpush1.msra.mxu0 0.0
    %369 = vmatprep.subr.mxu0 0.0
    %370 = vmatpush1.msra.mxu0 0.0
    %371 = vmatprep.subr.mxu0 0.0
    %372 = vmatpush1.msra.mxu0 %v340
    %373 = vmatprep.subr.mxu0 0.0
    %374 = vmatpush1.msra.mxu0 %v335
    %375 = vmatprep.subr.mxu0 0.0
    %376 = vmatpush2.msra.mxu0 0.0
    %377 = vmatprep.subr.mxu0 0.0
    %378 = vmatpush2.msra.mxu0 0.0
    %379 = vmatprep.subr.mxu0 0.0
    %380 = vmatpush2.msra.mxu0 0.0
    %381 = vmatprep.subr.mxu0 0.0
    %382 = vmatpush2.msra.mxu0 0.0
    %383 = vmatprep.subr.mxu0 0.0
    %384 = vmatpush2.msra.mxu0 0.0
    %385 = vmatprep.subr.mxu0 0.0
    %386 = vmatpush2.msra.mxu0 0.0
    %387 = vmatprep.subr.mxu0 0.0
    %388 = vmatpush2.msra.mxu0 0.0
    %389 = vmatprep.subr.mxu0 0.0
    %390 = vmatpush2.msra.mxu0 0.0
    %391 = vmatprep.subr.mxu0 0.0
    %392 = vmatpush2.msra.mxu0 0.0
    %393 = vmatprep.subr.mxu0 0.0
    %394 = vmatpush2.msra.mxu0 0.0
    %395 = vmatprep.subr.mxu0 0.0
    %396 = vmatpush2.msra.mxu0 0.0
    %397 = vmatprep.subr.mxu0 0.0
    %398 = vmatpush2.msra.mxu0 0.0
    %399 = vmatprep.subr.mxu0 0.0
    %400 = vmatpush2.msra.mxu0 0.0
    %401 = vmatprep.subr.mxu0 0.0
    %402 = vmatpush2.msra.mxu0 0.0
    %403 = vmatprep.subr.mxu0 0.0
    %404 = vmatpush2.msra.mxu0 0.0
    %405 = vmatprep.subr.mxu0 0.0
    %406 = vmatpush2.msra.mxu0 0.0
    %407 = vmatprep.mubr.f32.mxu0 0.0
    %408 = vmatmul.mubr.f32.gmra.mxu0 %v180
    %v409 = vpop.f32.mrf.mxu0
    %v410 = vadd.f32 0.0, %v409
    %v411 = vpop.f32.mrf.mxu0
    %412 = vmatprep.mubr.f32.mxu0 0.0
    %413 = vmatmul.mubr.f32.gmra.mxu0 %v183
    %v414 = vpop.f32.mrf.mxu0
    %v415 = vadd.f32 0.0, %v414
    %v416 = vpop.f32.mrf.mxu0
    %417 = vdwg.mxu0
    %v418 = vmax.f32 %v410, 0.0
    %v419 = vmax.f32 %v415, 0.0
    %s420 = scalar_lea.vmem %s0, 16
    %v421 = vld [vmem:[%s420] sm:$0xff]
    %v422 = vld [vmem:[%s420 + $0x8] sm:$0xff]
    %s423 = scalar_lea.vmem %s1, 16
    %v424 = vld [vmem:[%s423] sm:$0xff]
    %v425 = vld [vmem:[%s423 + $0x8] sm:$0xff]
    %v427 = vsel %vm96, %v424, 0
    %v430 = vsel %vm96, %v425, 0
    %432 = vmatprep.subr.mxu0 0.0
    %433 = vmatpush1.msra.mxu0 0.0
    %434 = vmatprep.subr.mxu0 0.0
    %435 = vmatpush1.msra.mxu0 0.0
    %436 = vmatprep.subr.mxu0 0.0
    %437 = vmatpush1.msra.mxu0 0.0
    %438 = vmatprep.subr.mxu0 0.0
    %439 = vmatpush1.msra.mxu0 0.0
    %440 = vmatprep.subr.mxu0 0.0
    %441 = vmatpush1.msra.mxu0 0.0
    %442 = vmatprep.subr.mxu0 0.0
    %443 = vmatpush1.msra.mxu0 0.0
    %444 = vmatprep.subr.mxu0 0.0
    %445 = vmatpush1.msra.mxu0 0.0
    %446 = vmatprep.subr.mxu0 0.0
    %447 = vmatpush1.msra.mxu0 0.0
    %448 = vmatprep.subr.mxu0 0.0
    %449 = vmatpush1.msra.mxu0 0.0
    %450 = vmatprep.subr.mxu0 0.0
    %451 = vmatpush1.msra.mxu0 0.0
    %452 = vmatprep.subr.mxu0 0.0
    %453 = vmatpush1.msra.mxu0 0.0
    %454 = vmatprep.subr.mxu0 0.0
    %455 = vmatpush1.msra.mxu0 0.0
    %456 = vmatprep.subr.mxu0 0.0
    %457 = vmatpush1.msra.mxu0 0.0
    %458 = vmatprep.subr.mxu0 0.0
    %459 = vmatpush1.msra.mxu0 0.0
    %460 = vmatprep.subr.mxu0 0.0
    %461 = vmatpush1.msra.mxu0 0.0
    %462 = vmatprep.subr.mxu0 0.0
    %463 = vmatpush1.msra.mxu0 %v89
    %464 = vmatprep.subr.mxu0 0.0
    %465 = vmatpush2.msra.mxu0 0.0
    %466 = vmatprep.subr.mxu0 0.0
    %467 = vmatpush2.msra.mxu0 0.0
    %468 = vmatprep.subr.mxu0 0.0
    %469 = vmatpush2.msra.mxu0 0.0
    %470 = vmatprep.subr.mxu0 0.0
    %471 = vmatpush2.msra.mxu0 0.0
    %472 = vmatprep.subr.mxu0 0.0
    %473 = vmatpush2.msra.mxu0 0.0
    %474 = vmatprep.subr.mxu0 0.0
    %475 = vmatpush2.msra.mxu0 0.0
    %476 = vmatprep.subr.mxu0 0.0
    %477 = vmatpush2.msra.mxu0 0.0
    %478 = vmatprep.subr.mxu0 0.0
    %479 = vmatpush2.msra.mxu0 0.0
    %480 = vmatprep.subr.mxu0 0.0
    %481 = vmatpush2.msra.mxu0 0.0
    %482 = vmatprep.subr.mxu0 0.0
    %483 = vmatpush2.msra.mxu0 0.0
    %484 = vmatprep.subr.mxu0 0.0
    %485 = vmatpush2.msra.mxu0 0.0
    %486 = vmatprep.subr.mxu0 0.0
    %487 = vmatpush2.msra.mxu0 0.0
    %488 = vmatprep.subr.mxu0 0.0
    %489 = vmatpush2.msra.mxu0 0.0
    %490 = vmatprep.subr.mxu0 0.0
    %491 = vmatpush2.msra.mxu0 0.0
    %492 = vmatprep.subr.mxu0 0.0
    %493 = vmatpush2.msra.mxu0 0.0
    %494 = vmatprep.subr.mxu0 0.0
    %495 = vmatpush2.msra.mxu0 0.0
    %496 = vmatprep.mubr.f32.mxu0 0.0
    %497 = vmatmul.mubr.f32.gmra.mxu0 %v427
    %v498 = vpop.f32.mrf.mxu0
    %v499 = vadd.f32 0.0, %v498
    %v500 = vpop.f32.mrf.mxu0
    %501 = vmatprep.mubr.f32.mxu0 0.0
    %502 = vmatmul.mubr.f32.gmra.mxu0 %v430
    %v503 = vpop.f32.mrf.mxu0
    %v504 = vadd.f32 0.0, %v503
    %v505 = vpop.f32.mrf.mxu0
    %506 = vdwg.mxu0
    %v508 = vsel %vm178, %v421, 0
    %v511 = vsel %vm178, %v422, 0
    %513 = vmatprep.subr.mxu0 0.0
    %514 = vmatpush1.msra.mxu0 0.0
    %515 = vmatprep.subr.mxu0 0.0
    %516 = vmatpush1.msra.mxu0 0.0
    %517 = vmatprep.subr.mxu0 0.0
    %518 = vmatpush1.msra.mxu0 0.0
    %519 = vmatprep.subr.mxu0 0.0
    %520 = vmatpush1.msra.mxu0 0.0
    %521 = vmatprep.subr.mxu0 0.0
    %522 = vmatpush1.msra.mxu0 0.0
    %523 = vmatprep.subr.mxu0 0.0
    %524 = vmatpush1.msra.mxu0 0.0
    %525 = vmatprep.subr.mxu0 0.0
    %526 = vmatpush1.msra.mxu0 0.0
    %527 = vmatprep.subr.mxu0 0.0
    %528 = vmatpush1.msra.mxu0 0.0
    %529 = vmatprep.subr.mxu0 0.0
    %530 = vmatpush1.msra.mxu0 0.0
    %531 = vmatprep.subr.mxu0 0.0
    %532 = vmatpush1.msra.mxu0 0.0
    %533 = vmatprep.subr.mxu0 0.0
    %534 = vmatpush1.msra.mxu0 0.0
    %535 = vmatprep.subr.mxu0 0.0
    %536 = vmatpush1.msra.mxu0 0.0
    %537 = vmatprep.subr.mxu0 0.0
    %538 = vmatpush1.msra.mxu0 0.0
    %539 = vmatprep.subr.mxu0 0.0
    %540 = vmatpush1.msra.mxu0 0.0
    %541 = vmatprep.subr.mxu0 0.0
    %542 = vmatpush1.msra.mxu0 %v504
    %543 = vmatprep.subr.mxu0 0.0
    %544 = vmatpush1.msra.mxu0 %v499
    %545 = vmatprep.subr.mxu0 0.0
    %546 = vmatpush2.msra.mxu0 0.0
    %547 = vmatprep.subr.mxu0 0.0
    %548 = vmatpush2.msra.mxu0 0.0
    %549 = vmatprep.subr.mxu0 0.0
    %550 = vmatpush2.msra.mxu0 0.0
    %551 = vmatprep.subr.mxu0 0.0
    %552 = vmatpush2.msra.mxu0 0.0
    %553 = vmatprep.subr.mxu0 0.0
    %554 = vmatpush2.msra.mxu0 0.0
    %555 = vmatprep.subr.mxu0 0.0
    %556 = vmatpush2.msra.mxu0 0.0
    %557 = vmatprep.subr.mxu0 0.0
    %558 = vmatpush2.msra.mxu0 0.0
    %559 = vmatprep.subr.mxu0 0.0
    %560 = vmatpush2.msra.mxu0 0.0
    %561 = vmatprep.subr.mxu0 0.0
    %562 = vmatpush2.msra.mxu0 0.0
    %563 = vmatprep.subr.mxu0 0.0
    %564 = vmatpush2.msra.mxu0 0.0
    %565 = vmatprep.subr.mxu0 0.0
    %566 = vmatpush2.msra.mxu0 0.0
    %567 = vmatprep.subr.mxu0 0.0
    %568 = vmatpush2.msra.mxu0 0.0
    %569 = vmatprep.subr.mxu0 0.0
    %570 = vmatpush2.msra.mxu0 0.0
    %571 = vmatprep.subr.mxu0 0.0
    %572 = vmatpush2.msra.mxu0 0.0
    %573 = vmatprep.subr.mxu0 0.0
    %574 = vmatpush2.msra.mxu0 0.0
    %575 = vmatprep.subr.mxu0 0.0
    %576 = vmatpush2.msra.mxu0 0.0
    %577 = vmatprep.mubr.f32.mxu0 0.0
    %578 = vmatmul.mubr.f32.gmra.mxu0 %v508
    %v579 = vpop.f32.mrf.mxu0
    %v580 = vadd.f32 0.0, %v579
    %v581 = vpop.f32.mrf.mxu0
    %582 = vmatprep.mubr.f32.mxu0 0.0
    %583 = vmatmul.mubr.f32.gmra.mxu0 %v511
    %v584 = vpop.f32.mrf.mxu0
    %v585 = vadd.f32 0.0, %v584
    %v586 = vpop.f32.mrf.mxu0
    %587 = vdwg.mxu0
    %v588 = vmax.f32 %v580, 0.0
    %v589 = vmax.f32 %v585, 0.0
    %v591 = vsel %vm178, %v588, 0
    %v594 = vsel %vm178, %v589, 0
    %596 = vmatprep.subr.mxu0 0.0
    %597 = vmatpush1.msra.mxu0 0.0
    %598 = vmatprep.subr.mxu0 0.0
    %599 = vmatpush1.msra.mxu0 0.0
    %600 = vmatprep.subr.mxu0 0.0
    %601 = vmatpush1.msra.mxu0 0.0
    %602 = vmatprep.subr.mxu0 0.0
    %603 = vmatpush1.msra.mxu0 0.0
    %604 = vmatprep.subr.mxu0 0.0
    %605 = vmatpush1.msra.mxu0 0.0
    %606 = vmatprep.subr.mxu0 0.0
    %607 = vmatpush1.msra.mxu0 0.0
    %608 = vmatprep.subr.mxu0 0.0
    %609 = vmatpush1.msra.mxu0 0.0
    %610 = vmatprep.subr.mxu0 0.0
    %611 = vmatpush1.msra.mxu0 0.0
    %612 = vmatprep.subr.mxu0 0.0
    %613 = vmatpush1.msra.mxu0 0.0
    %614 = vmatprep.subr.mxu0 0.0
    %615 = vmatpush1.msra.mxu0 0.0
    %616 = vmatprep.subr.mxu0 0.0
    %617 = vmatpush1.msra.mxu0 0.0
    %618 = vmatprep.subr.mxu0 0.0
    %619 = vmatpush1.msra.mxu0 0.0
    %620 = vmatprep.subr.mxu0 0.0
    %621 = vmatpush1.msra.mxu0 0.0
    %622 = vmatprep.subr.mxu0 0.0
    %623 = vmatpush1.msra.mxu0 0.0
    %624 = vmatprep.subr.mxu0 0.0
    %625 = vmatpush1.msra.mxu0 %v91
    %626 = vmatprep.subr.mxu0 0.0
    %627 = vmatpush1.msra.mxu0 %v90
    %628 = vmatprep.subr.mxu0 0.0
    %629 = vmatpush2.msra.mxu0 0.0
    %630 = vmatprep.subr.mxu0 0.0
    %631 = vmatpush2.msra.mxu0 0.0
    %632 = vmatprep.subr.mxu0 0.0
    %633 = vmatpush2.msra.mxu0 0.0
    %634 = vmatprep.subr.mxu0 0.0
    %635 = vmatpush2.msra.mxu0 0.0
    %636 = vmatprep.subr.mxu0 0.0
    %637 = vmatpush2.msra.mxu0 0.0
    %638 = vmatprep.subr.mxu0 0.0
    %639 = vmatpush2.msra.mxu0 0.0
    %640 = vmatprep.subr.mxu0 0.0
    %641 = vmatpush2.msra.mxu0 0.0
    %642 = vmatprep.subr.mxu0 0.0
    %643 = vmatpush2.msra.mxu0 0.0
    %644 = vmatprep.subr.mxu0 0.0
    %645 = vmatpush2.msra.mxu0 0.0
    %646 = vmatprep.subr.mxu0 0.0
    %647 = vmatpush2.msra.mxu0 0.0
    %648 = vmatprep.subr.mxu0 0.0
    %649 = vmatpush2.msra.mxu0 0.0
    %650 = vmatprep.subr.mxu0 0.0
    %651 = vmatpush2.msra.mxu0 0.0
    %652 = vmatprep.subr.mxu0 0.0
    %653 = vmatpush2.msra.mxu0 0.0
    %654 = vmatprep.subr.mxu0 0.0
    %655 = vmatpush2.msra.mxu0 0.0
    %656 = vmatprep.subr.mxu0 0.0
    %657 = vmatpush2.msra.mxu0 0.0
    %658 = vmatprep.subr.mxu0 0.0
    %659 = vmatpush2.msra.mxu0 0.0
    %660 = vmatprep.mubr.f32.mxu0 0.0
    %661 = vmatmul.mubr.f32.gmra.mxu0 %v591
    %v662 = vpop.f32.mrf.mxu0
    %v663 = vadd.f32 0.0, %v662
    %v664 = vpop.f32.mrf.mxu0
    %665 = vmatprep.mubr.f32.mxu0 0.0
    %666 = vmatmul.mubr.f32.gmra.mxu0 %v594
    %v667 = vpop.f32.mrf.mxu0
    %v668 = vadd.f32 0.0, %v667
    %v669 = vpop.f32.mrf.mxu0
    %670 = vdwg.mxu0
    %671 = vmatprep.subr.mxu0 0.0
    %672 = vmatpush1.msra.mxu0 0.0
    %673 = vmatprep.subr.mxu0 0.0
    %674 = vmatpush1.msra.mxu0 0.0
    %675 = vmatprep.subr.mxu0 0.0
    %676 = vmatpush1.msra.mxu0 0.0
    %677 = vmatprep.subr.mxu0 0.0
    %678 = vmatpush1.msra.mxu0 0.0
    %679 = vmatprep.subr.mxu0 0.0
    %680 = vmatpush1.msra.mxu0 0.0
    %681 = vmatprep.subr.mxu0 0.0
    %682 = vmatpush1.msra.mxu0 0.0
    %683 = vmatprep.subr.mxu0 0.0
    %684 = vmatpush1.msra.mxu0 0.0
    %685 = vmatprep.subr.mxu0 0.0
    %686 = vmatpush1.msra.mxu0 0.0
    %687 = vmatprep.subr.mxu0 0.0
    %688 = vmatpush1.msra.mxu0 0.0
    %689 = vmatprep.subr.mxu0 0.0
    %690 = vmatpush1.msra.mxu0 0.0
    %691 = vmatprep.subr.mxu0 0.0
    %692 = vmatpush1.msra.mxu0 0.0
    %693 = vmatprep.subr.mxu0 0.0
    %694 = vmatpush1.msra.mxu0 0.0
    %695 = vmatprep.subr.mxu0 0.0
    %696 = vmatpush1.msra.mxu0 0.0
    %697 = vmatprep.subr.mxu0 0.0
    %698 = vmatpush1.msra.mxu0 0.0
    %699 = vmatprep.subr.mxu0 0.0
    %700 = vmatpush1.msra.mxu0 %v668
    %701 = vmatprep.subr.mxu0 0.0
    %702 = vmatpush1.msra.mxu0 %v663
    %703 = vmatprep.subr.mxu0 0.0
    %704 = vmatpush2.msra.mxu0 0.0
    %705 = vmatprep.subr.mxu0 0.0
    %706 = vmatpush2.msra.mxu0 0.0
    %707 = vmatprep.subr.mxu0 0.0
    %708 = vmatpush2.msra.mxu0 0.0
    %709 = vmatprep.subr.mxu0 0.0
    %710 = vmatpush2.msra.mxu0 0.0
    %711 = vmatprep.subr.mxu0 0.0
    %712 = vmatpush2.msra.mxu0 0.0
    %713 = vmatprep.subr.mxu0 0.0
    %714 = vmatpush2.msra.mxu0 0.0
    %715 = vmatprep.subr.mxu0 0.0
    %716 = vmatpush2.msra.mxu0 0.0
    %717 = vmatprep.subr.mxu0 0.0
    %718 = vmatpush2.msra.mxu0 0.0
    %719 = vmatprep.subr.mxu0 0.0
    %720 = vmatpush2.msra.mxu0 0.0
    %721 = vmatprep.subr.mxu0 0.0
    %722 = vmatpush2.msra.mxu0 0.0
    %723 = vmatprep.subr.mxu0 0.0
    %724 = vmatpush2.msra.mxu0 0.0
    %725 = vmatprep.subr.mxu0 0.0
    %726 = vmatpush2.msra.mxu0 0.0
    %727 = vmatprep.subr.mxu0 0.0
    %728 = vmatpush2.msra.mxu0 0.0
    %729 = vmatprep.subr.mxu0 0.0
    %730 = vmatpush2.msra.mxu0 0.0
    %731 = vmatprep.subr.mxu0 0.0
    %732 = vmatpush2.msra.mxu0 0.0
    %733 = vmatprep.subr.mxu0 0.0
    %734 = vmatpush2.msra.mxu0 0.0
    %735 = vmatprep.mubr.f32.mxu0 0.0
    %736 = vmatmul.mubr.f32.gmra.mxu0 %v508
    %v737 = vpop.f32.mrf.mxu0
    %v738 = vadd.f32 0.0, %v737
    %v739 = vpop.f32.mrf.mxu0
    %740 = vmatprep.mubr.f32.mxu0 0.0
    %741 = vmatmul.mubr.f32.gmra.mxu0 %v511
    %v742 = vpop.f32.mrf.mxu0
    %v743 = vadd.f32 0.0, %v742
    %v744 = vpop.f32.mrf.mxu0
    %745 = vdwg.mxu0
    %v746 = vmax.f32 %v738, 0.0
    %v747 = vmax.f32 %v743, 0.0
    %s748 = scalar_lea.vmem %s0, 32
    %v749 = vld [vmem:[%s748] sm:$0xff]
    %v750 = vld [vmem:[%s748 + $0x8] sm:$0xff]
    %s751 = scalar_lea.vmem %s1, 32
    %v752 = vld [vmem:[%s751] sm:$0xff]
    %v753 = vld [vmem:[%s751 + $0x8] sm:$0xff]
    %v755 = vsel %vm96, %v752, 0
    %v758 = vsel %vm96, %v753, 0
    %760 = vmatprep.subr.mxu0 0.0
    %761 = vmatpush1.msra.mxu0 0.0
    %762 = vmatprep.subr.mxu0 0.0
    %763 = vmatpush1.msra.mxu0 0.0
    %764 = vmatprep.subr.mxu0 0.0
    %765 = vmatpush1.msra.mxu0 0.0
    %766 = vmatprep.subr.mxu0 0.0
    %767 = vmatpush1.msra.mxu0 0.0
    %768 = vmatprep.subr.mxu0 0.0
    %769 = vmatpush1.msra.mxu0 0.0
    %770 = vmatprep.subr.mxu0 0.0
    %771 = vmatpush1.msra.mxu0 0.0
    %772 = vmatprep.subr.mxu0 0.0
    %773 = vmatpush1.msra.mxu0 0.0
    %774 = vmatprep.subr.mxu0 0.0
    %775 = vmatpush1.msra.mxu0 0.0
    %776 = vmatprep.subr.mxu0 0.0
    %777 = vmatpush1.msra.mxu0 0.0
    %778 = vmatprep.subr.mxu0 0.0
    %779 = vmatpush1.msra.mxu0 0.0
    %780 = vmatprep.subr.mxu0 0.0
    %781 = vmatpush1.msra.mxu0 0.0
    %782 = vmatprep.subr.mxu0 0.0
    %783 = vmatpush1.msra.mxu0 0.0
    %784 = vmatprep.subr.mxu0 0.0
    %785 = vmatpush1.msra.mxu0 0.0
    %786 = vmatprep.subr.mxu0 0.0
    %787 = vmatpush1.msra.mxu0 0.0
    %788 = vmatprep.subr.mxu0 0.0
    %789 = vmatpush1.msra.mxu0 0.0
    %790 = vmatprep.subr.mxu0 0.0
    %791 = vmatpush1.msra.mxu0 %v89
    %792 = vmatprep.subr.mxu0 0.0
    %793 = vmatpush2.msra.mxu0 0.0
    %794 = vmatprep.subr.mxu0 0.0
    %795 = vmatpush2.msra.mxu0 0.0
    %796 = vmatprep.subr.mxu0 0.0
    %797 = vmatpush2.msra.mxu0 0.0
    %798 = vmatprep.subr.mxu0 0.0
    %799 = vmatpush2.msra.mxu0 0.0
    %800 = vmatprep.subr.mxu0 0.0
    %801 = vmatpush2.msra.mxu0 0.0
    %802 = vmatprep.subr.mxu0 0.0
    %803 = vmatpush2.msra.mxu0 0.0
    %804 = vmatprep.subr.mxu0 0.0
    %805 = vmatpush2.msra.mxu0 0.0
    %806 = vmatprep.subr.mxu0 0.0
    %807 = vmatpush2.msra.mxu0 0.0
    %808 = vmatprep.subr.mxu0 0.0
    %809 = vmatpush2.msra.mxu0 0.0
    %810 = vmatprep.subr.mxu0 0.0
    %811 = vmatpush2.msra.mxu0 0.0
    %812 = vmatprep.subr.mxu0 0.0
    %813 = vmatpush2.msra.mxu0 0.0
    %814 = vmatprep.subr.mxu0 0.0
    %815 = vmatpush2.msra.mxu0 0.0
    %816 = vmatprep.subr.mxu0 0.0
    %817 = vmatpush2.msra.mxu0 0.0
    %818 = vmatprep.subr.mxu0 0.0
    %819 = vmatpush2.msra.mxu0 0.0
    %820 = vmatprep.subr.mxu0 0.0
    %821 = vmatpush2.msra.mxu0 0.0
    %822 = vmatprep.subr.mxu0 0.0
    %823 = vmatpush2.msra.mxu0 0.0
    %824 = vmatprep.mubr.f32.mxu0 0.0
    %825 = vmatmul.mubr.f32.gmra.mxu0 %v755
    %v826 = vpop.f32.mrf.mxu0
    %v827 = vadd.f32 0.0, %v826
    %v828 = vpop.f32.mrf.mxu0
    %829 = vmatprep.mubr.f32.mxu0 0.0
    %830 = vmatmul.mubr.f32.gmra.mxu0 %v758
    %v831 = vpop.f32.mrf.mxu0
    %v832 = vadd.f32 0.0, %v831
    %v833 = vpop.f32.mrf.mxu0
    %834 = vdwg.mxu0
    %v836 = vsel %vm178, %v749, 0
    %v839 = vsel %vm178, %v750, 0
    %841 = vmatprep.subr.mxu0 0.0
    %842 = vmatpush1.msra.mxu0 0.0
    %843 = vmatprep.subr.mxu0 0.0
    %844 = vmatpush1.msra.mxu0 0.0
    %845 = vmatprep.subr.mxu0 0.0
    %846 = vmatpush1.msra.mxu0 0.0
    %847 = vmatprep.subr.mxu0 0.0
    %848 = vmatpush1.msra.mxu0 0.0
    %849 = vmatprep.subr.mxu0 0.0
    %850 = vmatpush1.msra.mxu0 0.0
    %851 = vmatprep.subr.mxu0 0.0
    %852 = vmatpush1.msra.mxu0 0.0
    %853 = vmatprep.subr.mxu0 0.0
    %854 = vmatpush1.msra.mxu0 0.0
    %855 = vmatprep.subr.mxu0 0.0
    %856 = vmatpush1.msra.mxu0 0.0
    %857 = vmatprep.subr.mxu0 0.0
    %858 = vmatpush1.msra.mxu0 0.0
    %859 = vmatprep.subr.mxu0 0.0
    %860 = vmatpush1.msra.mxu0 0.0
    %861 = vmatprep.subr.mxu0 0.0
    %862 = vmatpush1.msra.mxu0 0.0
    %863 = vmatprep.subr.mxu0 0.0
    %864 = vmatpush1.msra.mxu0 0.0
    %865 = vmatprep.subr.mxu0 0.0
    %866 = vmatpush1.msra.mxu0 0.0
    %867 = vmatprep.subr.mxu0 0.0
    %868 = vmatpush1.msra.mxu0 0.0
    %869 = vmatprep.subr.mxu0 0.0
    %870 = vmatpush1.msra.mxu0 %v832
    %871 = vmatprep.subr.mxu0 0.0
    %872 = vmatpush1.msra.mxu0 %v827
    %873 = vmatprep.subr.mxu0 0.0
    %874 = vmatpush2.msra.mxu0 0.0
    %875 = vmatprep.subr.mxu0 0.0
    %876 = vmatpush2.msra.mxu0 0.0
    %877 = vmatprep.subr.mxu0 0.0
    %878 = vmatpush2.msra.mxu0 0.0
    %879 = vmatprep.subr.mxu0 0.0
    %880 = vmatpush2.msra.mxu0 0.0
    %881 = vmatprep.subr.mxu0 0.0
    %882 = vmatpush2.msra.mxu0 0.0
    %883 = vmatprep.subr.mxu0 0.0
    %884 = vmatpush2.msra.mxu0 0.0
    %885 = vmatprep.subr.mxu0 0.0
    %886 = vmatpush2.msra.mxu0 0.0
    %887 = vmatprep.subr.mxu0 0.0
    %888 = vmatpush2.msra.mxu0 0.0
    %889 = vmatprep.subr.mxu0 0.0
    %890 = vmatpush2.msra.mxu0 0.0
    %891 = vmatprep.subr.mxu0 0.0
    %892 = vmatpush2.msra.mxu0 0.0
    %893 = vmatprep.subr.mxu0 0.0
    %894 = vmatpush2.msra.mxu0 0.0
    %895 = vmatprep.subr.mxu0 0.0
    %896 = vmatpush2.msra.mxu0 0.0
    %897 = vmatprep.subr.mxu0 0.0
    %898 = vmatpush2.msra.mxu0 0.0
    %899 = vmatprep.subr.mxu0 0.0
    %900 = vmatpush2.msra.mxu0 0.0
    %901 = vmatprep.subr.mxu0 0.0
    %902 = vmatpush2.msra.mxu0 0.0
    %903 = vmatprep.subr.mxu0 0.0
    %904 = vmatpush2.msra.mxu0 0.0
    %905 = vmatprep.mubr.f32.mxu0 0.0
    %906 = vmatmul.mubr.f32.gmra.mxu0 %v836
    %v907 = vpop.f32.mrf.mxu0
    %v908 = vadd.f32 0.0, %v907
    %v909 = vpop.f32.mrf.mxu0
    %910 = vmatprep.mubr.f32.mxu0 0.0
    %911 = vmatmul.mubr.f32.gmra.mxu0 %v839
    %v912 = vpop.f32.mrf.mxu0
    %v913 = vadd.f32 0.0, %v912
    %v914 = vpop.f32.mrf.mxu0
    %915 = vdwg.mxu0
    %v916 = vmax.f32 %v908, 0.0
    %v917 = vmax.f32 %v913, 0.0
    %v919 = vsel %vm178, %v916, 0
    %v922 = vsel %vm178, %v917, 0
    %924 = vmatprep.subr.mxu0 0.0
    %925 = vmatpush1.msra.mxu0 0.0
    %926 = vmatprep.subr.mxu0 0.0
    %927 = vmatpush1.msra.mxu0 0.0
    %928 = vmatprep.subr.mxu0 0.0
    %929 = vmatpush1.msra.mxu0 0.0
    %930 = vmatprep.subr.mxu0 0.0
    %931 = vmatpush1.msra.mxu0 0.0
    %932 = vmatprep.subr.mxu0 0.0
    %933 = vmatpush1.msra.mxu0 0.0
    %934 = vmatprep.subr.mxu0 0.0
    %935 = vmatpush1.msra.mxu0 0.0
    %936 = vmatprep.subr.mxu0 0.0
    %937 = vmatpush1.msra.mxu0 0.0
    %938 = vmatprep.subr.mxu0 0.0
    %939 = vmatpush1.msra.mxu0 0.0
    %940 = vmatprep.subr.mxu0 0.0
    %941 = vmatpush1.msra.mxu0 0.0
    %942 = vmatprep.subr.mxu0 0.0
    %943 = vmatpush1.msra.mxu0 0.0
    %944 = vmatprep.subr.mxu0 0.0
    %945 = vmatpush1.msra.mxu0 0.0
    %946 = vmatprep.subr.mxu0 0.0
    %947 = vmatpush1.msra.mxu0 0.0
    %948 = vmatprep.subr.mxu0 0.0
    %949 = vmatpush1.msra.mxu0 0.0
    %950 = vmatprep.subr.mxu0 0.0
    %951 = vmatpush1.msra.mxu0 0.0
    %952 = vmatprep.subr.mxu0 0.0
    %953 = vmatpush1.msra.mxu0 %v91
    %954 = vmatprep.subr.mxu0 0.0
    %955 = vmatpush1.msra.mxu0 %v90
    %956 = vmatprep.subr.mxu0 0.0
    %957 = vmatpush2.msra.mxu0 0.0
    %958 = vmatprep.subr.mxu0 0.0
    %959 = vmatpush2.msra.mxu0 0.0
    %960 = vmatprep.subr.mxu0 0.0
    %961 = vmatpush2.msra.mxu0 0.0
    %962 = vmatprep.subr.mxu0 0.0
    %963 = vmatpush2.msra.mxu0 0.0
    %964 = vmatprep.subr.mxu0 0.0
    %965 = vmatpush2.msra.mxu0 0.0
    %966 = vmatprep.subr.mxu0 0.0
    %967 = vmatpush2.msra.mxu0 0.0
    %968 = vmatprep.subr.mxu0 0.0
    %969 = vmatpush2.msra.mxu0 0.0
    %970 = vmatprep.subr.mxu0 0.0
    %971 = vmatpush2.msra.mxu0 0.0
    %972 = vmatprep.subr.mxu0 0.0
    %973 = vmatpush2.msra.mxu0 0.0
    %974 = vmatprep.subr.mxu0 0.0
    %975 = vmatpush2.msra.mxu0 0.0
    %976 = vmatprep.subr.mxu0 0.0
    %977 = vmatpush2.msra.mxu0 0.0
    %978 = vmatprep.subr.mxu0 0.0
    %979 = vmatpush2.msra.mxu0 0.0
    %980 = vmatprep.subr.mxu0 0.0
    %981 = vmatpush2.msra.mxu0 0.0
    %982 = vmatprep.subr.mxu0 0.0
    %983 = vmatpush2.msra.mxu0 0.0
    %984 = vmatprep.subr.mxu0 0.0
    %985 = vmatpush2.msra.mxu0 0.0
    %986 = vmatprep.subr.mxu0 0.0
    %987 = vmatpush2.msra.mxu0 0.0
    %988 = vmatprep.mubr.f32.mxu0 0.0
    %989 = vmatmul.mubr.f32.gmra.mxu0 %v919
    %v990 = vpop.f32.mrf.mxu0
    %v991 = vadd.f32 0.0, %v990
    %v992 = vpop.f32.mrf.mxu0
    %993 = vmatprep.mubr.f32.mxu0 0.0
    %994 = vmatmul.mubr.f32.gmra.mxu0 %v922
    %v995 = vpop.f32.mrf.mxu0
    %v996 = vadd.f32 0.0, %v995
    %v997 = vpop.f32.mrf.mxu0
    %998 = vdwg.mxu0
    %999 = vmatprep.subr.mxu0 0.0
    %1000 = vmatpush1.msra.mxu0 0.0
    %1001 = vmatprep.subr.mxu0 0.0
    %1002 = vmatpush1.msra.mxu0 0.0
    %1003 = vmatprep.subr.mxu0 0.0
    %1004 = vmatpush1.msra.mxu0 0.0
    %1005 = vmatprep.subr.mxu0 0.0
    %1006 = vmatpush1.msra.mxu0 0.0
    %1007 = vmatprep.subr.mxu0 0.0
    %1008 = vmatpush1.msra.mxu0 0.0
    %1009 = vmatprep.subr.mxu0 0.0
    %1010 = vmatpush1.msra.mxu0 0.0
    %1011 = vmatprep.subr.mxu0 0.0
    %1012 = vmatpush1.msra.mxu0 0.0
    %1013 = vmatprep.subr.mxu0 0.0
    %1014 = vmatpush1.msra.mxu0 0.0
    %1015 = vmatprep.subr.mxu0 0.0
    %1016 = vmatpush1.msra.mxu0 0.0
    %1017 = vmatprep.subr.mxu0 0.0
    %1018 = vmatpush1.msra.mxu0 0.0
    %1019 = vmatprep.subr.mxu0 0.0
    %1020 = vmatpush1.msra.mxu0 0.0
    %1021 = vmatprep.subr.mxu0 0.0
    %1022 = vmatpush1.msra.mxu0 0.0
    %1023 = vmatprep.subr.mxu0 0.0
    %1024 = vmatpush1.msra.mxu0 0.0
    %1025 = vmatprep.subr.mxu0 0.0
    %1026 = vmatpush1.msra.mxu0 0.0
    %1027 = vmatprep.subr.mxu0 0.0
    %1028 = vmatpush1.msra.mxu0 %v996
    %1029 = vmatprep.subr.mxu0 0.0
    %1030 = vmatpush1.msra.mxu0 %v991
    %1031 = vmatprep.subr.mxu0 0.0
    %1032 = vmatpush2.msra.mxu0 0.0
    %1033 = vmatprep.subr.mxu0 0.0
    %1034 = vmatpush2.msra.mxu0 0.0
    %1035 = vmatprep.subr.mxu0 0.0
    %1036 = vmatpush2.msra.mxu0 0.0
    %1037 = vmatprep.subr.mxu0 0.0
    %1038 = vmatpush2.msra.mxu0 0.0
    %1039 = vmatprep.subr.mxu0 0.0
    %1040 = vmatpush2.msra.mxu0 0.0
    %1041 = vmatprep.subr.mxu0 0.0
    %1042 = vmatpush2.msra.mxu0 0.0
    %1043 = vmatprep.subr.mxu0 0.0
    %1044 = vmatpush2.msra.mxu0 0.0
    %1045 = vmatprep.subr.mxu0 0.0
    %1046 = vmatpush2.msra.mxu0 0.0
    %1047 = vmatprep.subr.mxu0 0.0
    %1048 = vmatpush2.msra.mxu0 0.0
    %1049 = vmatprep.subr.mxu0 0.0
    %1050 = vmatpush2.msra.mxu0 0.0
    %1051 = vmatprep.subr.mxu0 0.0
    %1052 = vmatpush2.msra.mxu0 0.0
    %1053 = vmatprep.subr.mxu0 0.0
    %1054 = vmatpush2.msra.mxu0 0.0
    %1055 = vmatprep.subr.mxu0 0.0
    %1056 = vmatpush2.msra.mxu0 0.0
    %1057 = vmatprep.subr.mxu0 0.0
    %1058 = vmatpush2.msra.mxu0 0.0
    %1059 = vmatprep.subr.mxu0 0.0
    %1060 = vmatpush2.msra.mxu0 0.0
    %1061 = vmatprep.subr.mxu0 0.0
    %1062 = vmatpush2.msra.mxu0 0.0
    %1063 = vmatprep.mubr.f32.mxu0 0.0
    %1064 = vmatmul.mubr.f32.gmra.mxu0 %v836
    %v1065 = vpop.f32.mrf.mxu0
    %v1066 = vadd.f32 0.0, %v1065
    %v1067 = vpop.f32.mrf.mxu0
    %1068 = vmatprep.mubr.f32.mxu0 0.0
    %1069 = vmatmul.mubr.f32.gmra.mxu0 %v839
    %v1070 = vpop.f32.mrf.mxu0
    %v1071 = vadd.f32 0.0, %v1070
    %v1072 = vpop.f32.mrf.mxu0
    %1073 = vdwg.mxu0
    %v1074 = vmax.f32 %v1066, 0.0
    %v1075 = vmax.f32 %v1071, 0.0
    %s1076 = scalar_lea.vmem %s0, 48
    %v1077 = vld [vmem:[%s1076] sm:$0xff]
    %v1078 = vld [vmem:[%s1076 + $0x8] sm:$0xff]
    %s1079 = scalar_lea.vmem %s1, 48
    %v1080 = vld [vmem:[%s1079] sm:$0xff]
    %v1081 = vld [vmem:[%s1079 + $0x8] sm:$0xff]
    %v1083 = vsel %vm96, %v1080, 0
    %v1086 = vsel %vm96, %v1081, 0
    %1088 = vmatprep.subr.mxu0 0.0
    %1089 = vmatpush1.msra.mxu0 0.0
    %1090 = vmatprep.subr.mxu0 0.0
    %1091 = vmatpush1.msra.mxu0 0.0
    %1092 = vmatprep.subr.mxu0 0.0
    %1093 = vmatpush1.msra.mxu0 0.0
    %1094 = vmatprep.subr.mxu0 0.0
    %1095 = vmatpush1.msra.mxu0 0.0
    %1096 = vmatprep.subr.mxu0 0.0
    %1097 = vmatpush1.msra.mxu0 0.0
    %1098 = vmatprep.subr.mxu0 0.0
    %1099 = vmatpush1.msra.mxu0 0.0
    %1100 = vmatprep.subr.mxu0 0.0
    %1101 = vmatpush1.msra.mxu0 0.0
    %1102 = vmatprep.subr.mxu0 0.0
    %1103 = vmatpush1.msra.mxu0 0.0
    %1104 = vmatprep.subr.mxu0 0.0
    %1105 = vmatpush1.msra.mxu0 0.0
    %1106 = vmatprep.subr.mxu0 0.0
    %1107 = vmatpush1.msra.mxu0 0.0
    %1108 = vmatprep.subr.mxu0 0.0
    %1109 = vmatpush1.msra.mxu0 0.0
    %1110 = vmatprep.subr.mxu0 0.0
    %1111 = vmatpush1.msra.mxu0 0.0
    %1112 = vmatprep.subr.mxu0 0.0
    %1113 = vmatpush1.msra.mxu0 0.0
    %1114 = vmatprep.subr.mxu0 0.0
    %1115 = vmatpush1.msra.mxu0 0.0
    %1116 = vmatprep.subr.mxu0 0.0
    %1117 = vmatpush1.msra.mxu0 0.0
    %1118 = vmatprep.subr.mxu0 0.0
    %1119 = vmatpush1.msra.mxu0 %v89
    %1120 = vmatprep.subr.mxu0 0.0
    %1121 = vmatpush2.msra.mxu0 0.0
    %1122 = vmatprep.subr.mxu0 0.0
    %1123 = vmatpush2.msra.mxu0 0.0
    %1124 = vmatprep.subr.mxu0 0.0
    %1125 = vmatpush2.msra.mxu0 0.0
    %1126 = vmatprep.subr.mxu0 0.0
    %1127 = vmatpush2.msra.mxu0 0.0
    %1128 = vmatprep.subr.mxu0 0.0
    %1129 = vmatpush2.msra.mxu0 0.0
    %1130 = vmatprep.subr.mxu0 0.0
    %1131 = vmatpush2.msra.mxu0 0.0
    %1132 = vmatprep.subr.mxu0 0.0
    %1133 = vmatpush2.msra.mxu0 0.0
    %1134 = vmatprep.subr.mxu0 0.0
    %1135 = vmatpush2.msra.mxu0 0.0
    %1136 = vmatprep.subr.mxu0 0.0
    %1137 = vmatpush2.msra.mxu0 0.0
    %1138 = vmatprep.subr.mxu0 0.0
    %1139 = vmatpush2.msra.mxu0 0.0
    %1140 = vmatprep.subr.mxu0 0.0
    %1141 = vmatpush2.msra.mxu0 0.0
    %1142 = vmatprep.subr.mxu0 0.0
    %1143 = vmatpush2.msra.mxu0 0.0
    %1144 = vmatprep.subr.mxu0 0.0
    %1145 = vmatpush2.msra.mxu0 0.0
    %1146 = vmatprep.subr.mxu0 0.0
    %1147 = vmatpush2.msra.mxu0 0.0
    %1148 = vmatprep.subr.mxu0 0.0
    %1149 = vmatpush2.msra.mxu0 0.0
    %1150 = vmatprep.subr.mxu0 0.0
    %1151 = vmatpush2.msra.mxu0 0.0
    %1152 = vmatprep.mubr.f32.mxu0 0.0
    %1153 = vmatmul.mubr.f32.gmra.mxu0 %v1083
    %v1154 = vpop.f32.mrf.mxu0
    %v1155 = vadd.f32 0.0, %v1154
    %v1156 = vpop.f32.mrf.mxu0
    %1157 = vmatprep.mubr.f32.mxu0 0.0
    %1158 = vmatmul.mubr.f32.gmra.mxu0 %v1086
    %v1159 = vpop.f32.mrf.mxu0
    %v1160 = vadd.f32 0.0, %v1159
    %v1161 = vpop.f32.mrf.mxu0
    %1162 = vdwg.mxu0
    %v1164 = vsel %vm178, %v1077, 0
    %v1167 = vsel %vm178, %v1078, 0
    %1169 = vmatprep.subr.mxu0 0.0
    %1170 = vmatpush1.msra.mxu0 0.0
    %1171 = vmatprep.subr.mxu0 0.0
    %1172 = vmatpush1.msra.mxu0 0.0
    %1173 = vmatprep.subr.mxu0 0.0
    %1174 = vmatpush1.msra.mxu0 0.0
    %1175 = vmatprep.subr.mxu0 0.0
    %1176 = vmatpush1.msra.mxu0 0.0
    %1177 = vmatprep.subr.mxu0 0.0
    %1178 = vmatpush1.msra.mxu0 0.0
    %1179 = vmatprep.subr.mxu0 0.0
    %1180 = vmatpush1.msra.mxu0 0.0
    %1181 = vmatprep.subr.mxu0 0.0
    %1182 = vmatpush1.msra.mxu0 0.0
    %1183 = vmatprep.subr.mxu0 0.0
    %1184 = vmatpush1.msra.mxu0 0.0
    %1185 = vmatprep.subr.mxu0 0.0
    %1186 = vmatpush1.msra.mxu0 0.0
    %1187 = vmatprep.subr.mxu0 0.0
    %1188 = vmatpush1.msra.mxu0 0.0
    %1189 = vmatprep.subr.mxu0 0.0
    %1190 = vmatpush1.msra.mxu0 0.0
    %1191 = vmatprep.subr.mxu0 0.0
    %1192 = vmatpush1.msra.mxu0 0.0
    %1193 = vmatprep.subr.mxu0 0.0
    %1194 = vmatpush1.msra.mxu0 0.0
    %1195 = vmatprep.subr.mxu0 0.0
    %1196 = vmatpush1.msra.mxu0 0.0
    %1197 = vmatprep.subr.mxu0 0.0
    %1198 = vmatpush1.msra.mxu0 %v1160
    %1199 = vmatprep.subr.mxu0 0.0
    %1200 = vmatpush1.msra.mxu0 %v1155
    %1201 = vmatprep.subr.mxu0 0.0
    %1202 = vmatpush2.msra.mxu0 0.0
    %1203 = vmatprep.subr.mxu0 0.0
    %1204 = vmatpush2.msra.mxu0 0.0
    %1205 = vmatprep.subr.mxu0 0.0
    %1206 = vmatpush2.msra.mxu0 0.0
    %1207 = vmatprep.subr.mxu0 0.0
    %1208 = vmatpush2.msra.mxu0 0.0
    %1209 = vmatprep.subr.mxu0 0.0
    %1210 = vmatpush2.msra.mxu0 0.0
    %1211 = vmatprep.subr.mxu0 0.0
    %1212 = vmatpush2.msra.mxu0 0.0
    %1213 = vmatprep.subr.mxu0 0.0
    %1214 = vmatpush2.msra.mxu0 0.0
    %1215 = vmatprep.subr.mxu0 0.0
    %1216 = vmatpush2.msra.mxu0 0.0
    %1217 = vmatprep.subr.mxu0 0.0
    %1218 = vmatpush2.msra.mxu0 0.0
    %1219 = vmatprep.subr.mxu0 0.0
    %1220 = vmatpush2.msra.mxu0 0.0
    %1221 = vmatprep.subr.mxu0 0.0
    %1222 = vmatpush2.msra.mxu0 0.0
    %1223 = vmatprep.subr.mxu0 0.0
    %1224 = vmatpush2.msra.mxu0 0.0
    %1225 = vmatprep.subr.mxu0 0.0
    %1226 = vmatpush2.msra.mxu0 0.0
    %1227 = vmatprep.subr.mxu0 0.0
    %1228 = vmatpush2.msra.mxu0 0.0
    %1229 = vmatprep.subr.mxu0 0.0
    %1230 = vmatpush2.msra.mxu0 0.0
    %1231 = vmatprep.subr.mxu0 0.0
    %1232 = vmatpush2.msra.mxu0 0.0
    %1233 = vmatprep.mubr.f32.mxu0 0.0
    %1234 = vmatmul.mubr.f32.gmra.mxu0 %v1164
    %v1235 = vpop.f32.mrf.mxu0
    %v1236 = vadd.f32 0.0, %v1235
    %v1237 = vpop.f32.mrf.mxu0
    %1238 = vmatprep.mubr.f32.mxu0 0.0
    %1239 = vmatmul.mubr.f32.gmra.mxu0 %v1167
    %v1240 = vpop.f32.mrf.mxu0
    %v1241 = vadd.f32 0.0, %v1240
    %v1242 = vpop.f32.mrf.mxu0
    %1243 = vdwg.mxu0
    %v1244 = vmax.f32 %v1236, 0.0
    %v1245 = vmax.f32 %v1241, 0.0
    %v1247 = vsel %vm178, %v1244, 0
    %v1250 = vsel %vm178, %v1245, 0
    %1252 = vmatprep.subr.mxu0 0.0
    %1253 = vmatpush1.msra.mxu0 0.0
    %1254 = vmatprep.subr.mxu0 0.0
    %1255 = vmatpush1.msra.mxu0 0.0
    %1256 = vmatprep.subr.mxu0 0.0
    %1257 = vmatpush1.msra.mxu0 0.0
    %1258 = vmatprep.subr.mxu0 0.0
    %1259 = vmatpush1.msra.mxu0 0.0
    %1260 = vmatprep.subr.mxu0 0.0
    %1261 = vmatpush1.msra.mxu0 0.0
    %1262 = vmatprep.subr.mxu0 0.0
    %1263 = vmatpush1.msra.mxu0 0.0
    %1264 = vmatprep.subr.mxu0 0.0
    %1265 = vmatpush1.msra.mxu0 0.0
    %1266 = vmatprep.subr.mxu0 0.0
    %1267 = vmatpush1.msra.mxu0 0.0
    %1268 = vmatprep.subr.mxu0 0.0
    %1269 = vmatpush1.msra.mxu0 0.0
    %1270 = vmatprep.subr.mxu0 0.0
    %1271 = vmatpush1.msra.mxu0 0.0
    %1272 = vmatprep.subr.mxu0 0.0
    %1273 = vmatpush1.msra.mxu0 0.0
    %1274 = vmatprep.subr.mxu0 0.0
    %1275 = vmatpush1.msra.mxu0 0.0
    %1276 = vmatprep.subr.mxu0 0.0
    %1277 = vmatpush1.msra.mxu0 0.0
    %1278 = vmatprep.subr.mxu0 0.0
    %1279 = vmatpush1.msra.mxu0 0.0
    %1280 = vmatprep.subr.mxu0 0.0
    %1281 = vmatpush1.msra.mxu0 %v91
    %1282 = vmatprep.subr.mxu0 0.0
    %1283 = vmatpush1.msra.mxu0 %v90
    %1284 = vmatprep.subr.mxu0 0.0
    %1285 = vmatpush2.msra.mxu0 0.0
    %1286 = vmatprep.subr.mxu0 0.0
    %1287 = vmatpush2.msra.mxu0 0.0
    %1288 = vmatprep.subr.mxu0 0.0
    %1289 = vmatpush2.msra.mxu0 0.0
    %1290 = vmatprep.subr.mxu0 0.0
    %1291 = vmatpush2.msra.mxu0 0.0
    %1292 = vmatprep.subr.mxu0 0.0
    %1293 = vmatpush2.msra.mxu0 0.0
    %1294 = vmatprep.subr.mxu0 0.0
    %1295 = vmatpush2.msra.mxu0 0.0
    %1296 = vmatprep.subr.mxu0 0.0
    %1297 = vmatpush2.msra.mxu0 0.0
    %1298 = vmatprep.subr.mxu0 0.0
    %1299 = vmatpush2.msra.mxu0 0.0
    %1300 = vmatprep.subr.mxu0 0.0
    %1301 = vmatpush2.msra.mxu0 0.0
    %1302 = vmatprep.subr.mxu0 0.0
    %1303 = vmatpush2.msra.mxu0 0.0
    %1304 = vmatprep.subr.mxu0 0.0
    %1305 = vmatpush2.msra.mxu0 0.0
    %1306 = vmatprep.subr.mxu0 0.0
    %1307 = vmatpush2.msra.mxu0 0.0
    %1308 = vmatprep.subr.mxu0 0.0
    %1309 = vmatpush2.msra.mxu0 0.0
    %1310 = vmatprep.subr.mxu0 0.0
    %1311 = vmatpush2.msra.mxu0 0.0
    %1312 = vmatprep.subr.mxu0 0.0
    %1313 = vmatpush2.msra.mxu0 0.0
    %1314 = vmatprep.subr.mxu0 0.0
    %1315 = vmatpush2.msra.mxu0 0.0
    %1316 = vmatprep.mubr.f32.mxu0 0.0
    %1317 = vmatmul.mubr.f32.gmra.mxu0 %v1247
    %v1318 = vpop.f32.mrf.mxu0
    %v1319 = vadd.f32 0.0, %v1318
    %v1320 = vpop.f32.mrf.mxu0
    %1321 = vmatprep.mubr.f32.mxu0 0.0
    %1322 = vmatmul.mubr.f32.gmra.mxu0 %v1250
    %v1323 = vpop.f32.mrf.mxu0
    %v1324 = vadd.f32 0.0, %v1323
    %v1325 = vpop.f32.mrf.mxu0
    %1326 = vdwg.mxu0
    %1327 = vmatprep.subr.mxu0 0.0
    %1328 = vmatpush1.msra.mxu0 0.0
    %1329 = vmatprep.subr.mxu0 0.0
    %1330 = vmatpush1.msra.mxu0 0.0
    %1331 = vmatprep.subr.mxu0 0.0
    %1332 = vmatpush1.msra.mxu0 0.0
    %1333 = vmatprep.subr.mxu0 0.0
    %1334 = vmatpush1.msra.mxu0 0.0
    %1335 = vmatprep.subr.mxu0 0.0
    %1336 = vmatpush1.msra.mxu0 0.0
    %1337 = vmatprep.subr.mxu0 0.0
    %1338 = vmatpush1.msra.mxu0 0.0
    %1339 = vmatprep.subr.mxu0 0.0
    %1340 = vmatpush1.msra.mxu0 0.0
    %1341 = vmatprep.subr.mxu0 0.0
    %1342 = vmatpush1.msra.mxu0 0.0
    %1343 = vmatprep.subr.mxu0 0.0
    %1344 = vmatpush1.msra.mxu0 0.0
    %1345 = vmatprep.subr.mxu0 0.0
    %1346 = vmatpush1.msra.mxu0 0.0
    %1347 = vmatprep.subr.mxu0 0.0
    %1348 = vmatpush1.msra.mxu0 0.0
    %1349 = vmatprep.subr.mxu0 0.0
    %1350 = vmatpush1.msra.mxu0 0.0
    %1351 = vmatprep.subr.mxu0 0.0
    %1352 = vmatpush1.msra.mxu0 0.0
    %1353 = vmatprep.subr.mxu0 0.0
    %1354 = vmatpush1.msra.mxu0 0.0
    %1355 = vmatprep.subr.mxu0 0.0
    %1356 = vmatpush1.msra.mxu0 %v1324
    %1357 = vmatprep.subr.mxu0 0.0
    %1358 = vmatpush1.msra.mxu0 %v1319
    %1359 = vmatprep.subr.mxu0 0.0
    %1360 = vmatpush2.msra.mxu0 0.0
    %1361 = vmatprep.subr.mxu0 0.0
    %1362 = vmatpush2.msra.mxu0 0.0
    %1363 = vmatprep.subr.mxu0 0.0
    %1364 = vmatpush2.msra.mxu0 0.0
    %1365 = vmatprep.subr.mxu0 0.0
    %1366 = vmatpush2.msra.mxu0 0.0
    %1367 = vmatprep.subr.mxu0 0.0
    %1368 = vmatpush2.msra.mxu0 0.0
    %1369 = vmatprep.subr.mxu0 0.0
    %1370 = vmatpush2.msra.mxu0 0.0
    %1371 = vmatprep.subr.mxu0 0.0
    %1372 = vmatpush2.msra.mxu0 0.0
    %1373 = vmatprep.subr.mxu0 0.0
    %1374 = vmatpush2.msra.mxu0 0.0
    %1375 = vmatprep.subr.mxu0 0.0
    %1376 = vmatpush2.msra.mxu0 0.0
    %1377 = vmatprep.subr.mxu0 0.0
    %1378 = vmatpush2.msra.mxu0 0.0
    %1379 = vmatprep.subr.mxu0 0.0
    %1380 = vmatpush2.msra.mxu0 0.0
    %1381 = vmatprep.subr.mxu0 0.0
    %1382 = vmatpush2.msra.mxu0 0.0
    %1383 = vmatprep.subr.mxu0 0.0
    %1384 = vmatpush2.msra.mxu0 0.0
    %1385 = vmatprep.subr.mxu0 0.0
    %1386 = vmatpush2.msra.mxu0 0.0
    %1387 = vmatprep.subr.mxu0 0.0
    %1388 = vmatpush2.msra.mxu0 0.0
    %1389 = vmatprep.subr.mxu0 0.0
    %1390 = vmatpush2.msra.mxu0 0.0
    %1391 = vmatprep.mubr.f32.mxu0 0.0
    %1392 = vmatmul.mubr.f32.gmra.mxu0 %v1164
    %v1393 = vpop.f32.mrf.mxu0
    %v1394 = vadd.f32 0.0, %v1393
    %v1395 = vpop.f32.mrf.mxu0
    %1396 = vmatprep.mubr.f32.mxu0 0.0
    %1397 = vmatmul.mubr.f32.gmra.mxu0 %v1167
    %v1398 = vpop.f32.mrf.mxu0
    %v1399 = vadd.f32 0.0, %v1398
    %v1400 = vpop.f32.mrf.mxu0
    %1401 = vdwg.mxu0
    %v1402 = vmax.f32 %v1394, 0.0
    %v1403 = vmax.f32 %v1399, 0.0
    %s1404 = scalar_lea.vmem %s0, 64
    %v1405 = vld [vmem:[%s1404] sm:$0xff]
    %v1406 = vld [vmem:[%s1404 + $0x8] sm:$0xff]
    %s1407 = scalar_lea.vmem %s1, 64
    %v1408 = vld [vmem:[%s1407] sm:$0xff]
    %v1409 = vld [vmem:[%s1407 + $0x8] sm:$0xff]
    %v1411 = vsel %vm96, %v1408, 0
    %v1414 = vsel %vm96, %v1409, 0
    %1416 = vmatprep.subr.mxu0 0.0
    %1417 = vmatpush1.msra.mxu0 0.0
    %1418 = vmatprep.subr.mxu0 0.0
    %1419 = vmatpush1.msra.mxu0 0.0
    %1420 = vmatprep.subr.mxu0 0.0
    %1421 = vmatpush1.msra.mxu0 0.0
    %1422 = vmatprep.subr.mxu0 0.0
    %1423 = vmatpush1.msra.mxu0 0.0
    %1424 = vmatprep.subr.mxu0 0.0
    %1425 = vmatpush1.msra.mxu0 0.0
    %1426 = vmatprep.subr.mxu0 0.0
    %1427 = vmatpush1.msra.mxu0 0.0
    %1428 = vmatprep.subr.mxu0 0.0
    %1429 = vmatpush1.msra.mxu0 0.0
    %1430 = vmatprep.subr.mxu0 0.0
    %1431 = vmatpush1.msra.mxu0 0.0
    %1432 = vmatprep.subr.mxu0 0.0
    %1433 = vmatpush1.msra.mxu0 0.0
    %1434 = vmatprep.subr.mxu0 0.0
    %1435 = vmatpush1.msra.mxu0 0.0
    %1436 = vmatprep.subr.mxu0 0.0
    %1437 = vmatpush1.msra.mxu0 0.0
    %1438 = vmatprep.subr.mxu0 0.0
    %1439 = vmatpush1.msra.mxu0 0.0
    %1440 = vmatprep.subr.mxu0 0.0
    %1441 = vmatpush1.msra.mxu0 0.0
    %1442 = vmatprep.subr.mxu0 0.0
    %1443 = vmatpush1.msra.mxu0 0.0
    %1444 = vmatprep.subr.mxu0 0.0
    %1445 = vmatpush1.msra.mxu0 0.0
    %1446 = vmatprep.subr.mxu0 0.0
    %1447 = vmatpush1.msra.mxu0 %v89
    %1448 = vmatprep.subr.mxu0 0.0
    %1449 = vmatpush2.msra.mxu0 0.0
    %1450 = vmatprep.subr.mxu0 0.0
    %1451 = vmatpush2.msra.mxu0 0.0
    %1452 = vmatprep.subr.mxu0 0.0
    %1453 = vmatpush2.msra.mxu0 0.0
    %1454 = vmatprep.subr.mxu0 0.0
    %1455 = vmatpush2.msra.mxu0 0.0
    %1456 = vmatprep.subr.mxu0 0.0
    %1457 = vmatpush2.msra.mxu0 0.0
    %1458 = vmatprep.subr.mxu0 0.0
    %1459 = vmatpush2.msra.mxu0 0.0
    %1460 = vmatprep.subr.mxu0 0.0
    %1461 = vmatpush2.msra.mxu0 0.0
    %1462 = vmatprep.subr.mxu0 0.0
    %1463 = vmatpush2.msra.mxu0 0.0
    %1464 = vmatprep.subr.mxu0 0.0
    %1465 = vmatpush2.msra.mxu0 0.0
    %1466 = vmatprep.subr.mxu0 0.0
    %1467 = vmatpush2.msra.mxu0 0.0
    %1468 = vmatprep.subr.mxu0 0.0
    %1469 = vmatpush2.msra.mxu0 0.0
    %1470 = vmatprep.subr.mxu0 0.0
    %1471 = vmatpush2.msra.mxu0 0.0
    %1472 = vmatprep.subr.mxu0 0.0
    %1473 = vmatpush2.msra.mxu0 0.0
    %1474 = vmatprep.subr.mxu0 0.0
    %1475 = vmatpush2.msra.mxu0 0.0
    %1476 = vmatprep.subr.mxu0 0.0
    %1477 = vmatpush2.msra.mxu0 0.0
    %1478 = vmatprep.subr.mxu0 0.0
    %1479 = vmatpush2.msra.mxu0 0.0
    %1480 = vmatprep.mubr.f32.mxu0 0.0
    %1481 = vmatmul.mubr.f32.gmra.mxu0 %v1411
    %v1482 = vpop.f32.mrf.mxu0
    %v1483 = vadd.f32 0.0, %v1482
    %v1484 = vpop.f32.mrf.mxu0
    %1485 = vmatprep.mubr.f32.mxu0 0.0
    %1486 = vmatmul.mubr.f32.gmra.mxu0 %v1414
    %v1487 = vpop.f32.mrf.mxu0
    %v1488 = vadd.f32 0.0, %v1487
    %v1489 = vpop.f32.mrf.mxu0
    %1490 = vdwg.mxu0
    %v1492 = vsel %vm178, %v1405, 0
    %v1495 = vsel %vm178, %v1406, 0
    %1497 = vmatprep.subr.mxu0 0.0
    %1498 = vmatpush1.msra.mxu0 0.0
    %1499 = vmatprep.subr.mxu0 0.0
    %1500 = vmatpush1.msra.mxu0 0.0
    %1501 = vmatprep.subr.mxu0 0.0
    %1502 = vmatpush1.msra.mxu0 0.0
    %1503 = vmatprep.subr.mxu0 0.0
    %1504 = vmatpush1.msra.mxu0 0.0
    %1505 = vmatprep.subr.mxu0 0.0
    %1506 = vmatpush1.msra.mxu0 0.0
    %1507 = vmatprep.subr.mxu0 0.0
    %1508 = vmatpush1.msra.mxu0 0.0
    %1509 = vmatprep.subr.mxu0 0.0
    %1510 = vmatpush1.msra.mxu0 0.0
    %1511 = vmatprep.subr.mxu0 0.0
    %1512 = vmatpush1.msra.mxu0 0.0
    %1513 = vmatprep.subr.mxu0 0.0
    %1514 = vmatpush1.msra.mxu0 0.0
    %1515 = vmatprep.subr.mxu0 0.0
    %1516 = vmatpush1.msra.mxu0 0.0
    %1517 = vmatprep.subr.mxu0 0.0
    %1518 = vmatpush1.msra.mxu0 0.0
    %1519 = vmatprep.subr.mxu0 0.0
    %1520 = vmatpush1.msra.mxu0 0.0
    %1521 = vmatprep.subr.mxu0 0.0
    %1522 = vmatpush1.msra.mxu0 0.0
    %1523 = vmatprep.subr.mxu0 0.0
    %1524 = vmatpush1.msra.mxu0 0.0
    %1525 = vmatprep.subr.mxu0 0.0
    %1526 = vmatpush1.msra.mxu0 %v1488
    %1527 = vmatprep.subr.mxu0 0.0
    %1528 = vmatpush1.msra.mxu0 %v1483
    %1529 = vmatprep.subr.mxu0 0.0
    %1530 = vmatpush2.msra.mxu0 0.0
    %1531 = vmatprep.subr.mxu0 0.0
    %1532 = vmatpush2.msra.mxu0 0.0
    %1533 = vmatprep.subr.mxu0 0.0
    %1534 = vmatpush2.msra.mxu0 0.0
    %1535 = vmatprep.subr.mxu0 0.0
    %1536 = vmatpush2.msra.mxu0 0.0
    %1537 = vmatprep.subr.mxu0 0.0
    %1538 = vmatpush2.msra.mxu0 0.0
    %1539 = vmatprep.subr.mxu0 0.0
    %1540 = vmatpush2.msra.mxu0 0.0
    %1541 = vmatprep.subr.mxu0 0.0
    %1542 = vmatpush2.msra.mxu0 0.0
    %1543 = vmatprep.subr.mxu0 0.0
    %1544 = vmatpush2.msra.mxu0 0.0
    %1545 = vmatprep.subr.mxu0 0.0
    %1546 = vmatpush2.msra.mxu0 0.0
    %1547 = vmatprep.subr.mxu0 0.0
    %1548 = vmatpush2.msra.mxu0 0.0
    %1549 = vmatprep.subr.mxu0 0.0
    %1550 = vmatpush2.msra.mxu0 0.0
    %1551 = vmatprep.subr.mxu0 0.0
    %1552 = vmatpush2.msra.mxu0 0.0
    %1553 = vmatprep.subr.mxu0 0.0
    %1554 = vmatpush2.msra.mxu0 0.0
    %1555 = vmatprep.subr.mxu0 0.0
    %1556 = vmatpush2.msra.mxu0 0.0
    %1557 = vmatprep.subr.mxu0 0.0
    %1558 = vmatpush2.msra.mxu0 0.0
    %1559 = vmatprep.subr.mxu0 0.0
    %1560 = vmatpush2.msra.mxu0 0.0
    %1561 = vmatprep.mubr.f32.mxu0 0.0
    %1562 = vmatmul.mubr.f32.gmra.mxu0 %v1492
    %v1563 = vpop.f32.mrf.mxu0
    %v1564 = vadd.f32 0.0, %v1563
    %v1565 = vpop.f32.mrf.mxu0
    %1566 = vmatprep.mubr.f32.mxu0 0.0
    %1567 = vmatmul.mubr.f32.gmra.mxu0 %v1495
    %v1568 = vpop.f32.mrf.mxu0
    %v1569 = vadd.f32 0.0, %v1568
    %v1570 = vpop.f32.mrf.mxu0
    %1571 = vdwg.mxu0
    %v1572 = vmax.f32 %v1564, 0.0
    %v1573 = vmax.f32 %v1569, 0.0
    %v1575 = vsel %vm178, %v1572, 0
    %v1578 = vsel %vm178, %v1573, 0
    %1580 = vmatprep.subr.mxu0 0.0
    %1581 = vmatpush1.msra.mxu0 0.0
    %1582 = vmatprep.subr.mxu0 0.0
    %1583 = vmatpush1.msra.mxu0 0.0
    %1584 = vmatprep.subr.mxu0 0.0
    %1585 = vmatpush1.msra.mxu0 0.0
    %1586 = vmatprep.subr.mxu0 0.0
    %1587 = vmatpush1.msra.mxu0 0.0
    %1588 = vmatprep.subr.mxu0 0.0
    %1589 = vmatpush1.msra.mxu0 0.0
    %1590 = vmatprep.subr.mxu0 0.0
    %1591 = vmatpush1.msra.mxu0 0.0
    %1592 = vmatprep.subr.mxu0 0.0
    %1593 = vmatpush1.msra.mxu0 0.0
    %1594 = vmatprep.subr.mxu0 0.0
    %1595 = vmatpush1.msra.mxu0 0.0
    %1596 = vmatprep.subr.mxu0 0.0
    %1597 = vmatpush1.msra.mxu0 0.0
    %1598 = vmatprep.subr.mxu0 0.0
    %1599 = vmatpush1.msra.mxu0 0.0
    %1600 = vmatprep.subr.mxu0 0.0
    %1601 = vmatpush1.msra.mxu0 0.0
    %1602 = vmatprep.subr.mxu0 0.0
    %1603 = vmatpush1.msra.mxu0 0.0
    %1604 = vmatprep.subr.mxu0 0.0
    %1605 = vmatpush1.msra.mxu0 0.0
    %1606 = vmatprep.subr.mxu0 0.0
    %1607 = vmatpush1.msra.mxu0 0.0
    %1608 = vmatprep.subr.mxu0 0.0
    %1609 = vmatpush1.msra.mxu0 %v91
    %1610 = vmatprep.subr.mxu0 0.0
    %1611 = vmatpush1.msra.mxu0 %v90
    %1612 = vmatprep.subr.mxu0 0.0
    %1613 = vmatpush2.msra.mxu0 0.0
    %1614 = vmatprep.subr.mxu0 0.0
    %1615 = vmatpush2.msra.mxu0 0.0
    %1616 = vmatprep.subr.mxu0 0.0
    %1617 = vmatpush2.msra.mxu0 0.0
    %1618 = vmatprep.subr.mxu0 0.0
    %1619 = vmatpush2.msra.mxu0 0.0
    %1620 = vmatprep.subr.mxu0 0.0
    %1621 = vmatpush2.msra.mxu0 0.0
    %1622 = vmatprep.subr.mxu0 0.0
    %1623 = vmatpush2.msra.mxu0 0.0
    %1624 = vmatprep.subr.mxu0 0.0
    %1625 = vmatpush2.msra.mxu0 0.0
    %1626 = vmatprep.subr.mxu0 0.0
    %1627 = vmatpush2.msra.mxu0 0.0
    %1628 = vmatprep.subr.mxu0 0.0
    %1629 = vmatpush2.msra.mxu0 0.0
    %1630 = vmatprep.subr.mxu0 0.0
    %1631 = vmatpush2.msra.mxu0 0.0
    %1632 = vmatprep.subr.mxu0 0.0
    %1633 = vmatpush2.msra.mxu0 0.0
    %1634 = vmatprep.subr.mxu0 0.0
    %1635 = vmatpush2.msra.mxu0 0.0
    %1636 = vmatprep.subr.mxu0 0.0
    %1637 = vmatpush2.msra.mxu0 0.0
    %1638 = vmatprep.subr.mxu0 0.0
    %1639 = vmatpush2.msra.mxu0 0.0
    %1640 = vmatprep.subr.mxu0 0.0
    %1641 = vmatpush2.msra.mxu0 0.0
    %1642 = vmatprep.subr.mxu0 0.0
    %1643 = vmatpush2.msra.mxu0 0.0
    %1644 = vmatprep.mubr.f32.mxu0 0.0
    %1645 = vmatmul.mubr.f32.gmra.mxu0 %v1575
    %v1646 = vpop.f32.mrf.mxu0
    %v1647 = vadd.f32 0.0, %v1646
    %v1648 = vpop.f32.mrf.mxu0
    %1649 = vmatprep.mubr.f32.mxu0 0.0
    %1650 = vmatmul.mubr.f32.gmra.mxu0 %v1578
    %v1651 = vpop.f32.mrf.mxu0
    %v1652 = vadd.f32 0.0, %v1651
    %v1653 = vpop.f32.mrf.mxu0
    %1654 = vdwg.mxu0
    %1655 = vmatprep.subr.mxu0 0.0
    %1656 = vmatpush1.msra.mxu0 0.0
    %1657 = vmatprep.subr.mxu0 0.0
    %1658 = vmatpush1.msra.mxu0 0.0
    %1659 = vmatprep.subr.mxu0 0.0
    %1660 = vmatpush1.msra.mxu0 0.0
    %1661 = vmatprep.subr.mxu0 0.0
    %1662 = vmatpush1.msra.mxu0 0.0
    %1663 = vmatprep.subr.mxu0 0.0
    %1664 = vmatpush1.msra.mxu0 0.0
    %1665 = vmatprep.subr.mxu0 0.0
    %1666 = vmatpush1.msra.mxu0 0.0
    %1667 = vmatprep.subr.mxu0 0.0
    %1668 = vmatpush1.msra.mxu0 0.0
    %1669 = vmatprep.subr.mxu0 0.0
    %1670 = vmatpush1.msra.mxu0 0.0
    %1671 = vmatprep.subr.mxu0 0.0
    %1672 = vmatpush1.msra.mxu0 0.0
    %1673 = vmatprep.subr.mxu0 0.0
    %1674 = vmatpush1.msra.mxu0 0.0
    %1675 = vmatprep.subr.mxu0 0.0
    %1676 = vmatpush1.msra.mxu0 0.0
    %1677 = vmatprep.subr.mxu0 0.0
    %1678 = vmatpush1.msra.mxu0 0.0
    %1679 = vmatprep.subr.mxu0 0.0
    %1680 = vmatpush1.msra.mxu0 0.0
    %1681 = vmatprep.subr.mxu0 0.0
    %1682 = vmatpush1.msra.mxu0 0.0
    %1683 = vmatprep.subr.mxu0 0.0
    %1684 = vmatpush1.msra.mxu0 %v1652
    %1685 = vmatprep.subr.mxu0 0.0
    %1686 = vmatpush1.msra.mxu0 %v1647
    %1687 = vmatprep.subr.mxu0 0.0
    %1688 = vmatpush2.msra.mxu0 0.0
    %1689 = vmatprep.subr.mxu0 0.0
    %1690 = vmatpush2.msra.mxu0 0.0
    %1691 = vmatprep.subr.mxu0 0.0
    %1692 = vmatpush2.msra.mxu0 0.0
    %1693 = vmatprep.subr.mxu0 0.0
    %1694 = vmatpush2.msra.mxu0 0.0
    %1695 = vmatprep.subr.mxu0 0.0
    %1696 = vmatpush2.msra.mxu0 0.0
    %1697 = vmatprep.subr.mxu0 0.0
    %1698 = vmatpush2.msra.mxu0 0.0
    %1699 = vmatprep.subr.mxu0 0.0
    %1700 = vmatpush2.msra.mxu0 0.0
    %1701 = vmatprep.subr.mxu0 0.0
    %1702 = vmatpush2.msra.mxu0 0.0
    %1703 = vmatprep.subr.mxu0 0.0
    %1704 = vmatpush2.msra.mxu0 0.0
    %1705 = vmatprep.subr.mxu0 0.0
    %1706 = vmatpush2.msra.mxu0 0.0
    %1707 = vmatprep.subr.mxu0 0.0
    %1708 = vmatpush2.msra.mxu0 0.0
    %1709 = vmatprep.subr.mxu0 0.0
    %1710 = vmatpush2.msra.mxu0 0.0
    %1711 = vmatprep.subr.mxu0 0.0
    %1712 = vmatpush2.msra.mxu0 0.0
    %1713 = vmatprep.subr.mxu0 0.0
    %1714 = vmatpush2.msra.mxu0 0.0
    %1715 = vmatprep.subr.mxu0 0.0
    %1716 = vmatpush2.msra.mxu0 0.0
    %1717 = vmatprep.subr.mxu0 0.0
    %1718 = vmatpush2.msra.mxu0 0.0
    %1719 = vmatprep.mubr.f32.mxu0 0.0
    %1720 = vmatmul.mubr.f32.gmra.mxu0 %v1492
    %v1721 = vpop.f32.mrf.mxu0
    %v1722 = vadd.f32 0.0, %v1721
    %v1723 = vpop.f32.mrf.mxu0
    %1724 = vmatprep.mubr.f32.mxu0 0.0
    %1725 = vmatmul.mubr.f32.gmra.mxu0 %v1495
    %v1726 = vpop.f32.mrf.mxu0
    %v1727 = vadd.f32 0.0, %v1726
    %v1728 = vpop.f32.mrf.mxu0
    %1729 = vdwg.mxu0
    %v1730 = vmax.f32 %v1722, 0.0
    %v1731 = vmax.f32 %v1727, 0.0
    %s1732 = scalar_lea.vmem %s0, 80
    %v1733 = vld [vmem:[%s1732] sm:$0xff]
    %v1734 = vld [vmem:[%s1732 + $0x8] sm:$0xff]
    %s1735 = scalar_lea.vmem %s1, 80
    %v1736 = vld [vmem:[%s1735] sm:$0xff]
    %v1737 = vld [vmem:[%s1735 + $0x8] sm:$0xff]
    %v1739 = vsel %vm96, %v1736, 0
    %v1742 = vsel %vm96, %v1737, 0
    %1744 = vmatprep.subr.mxu0 0.0
    %1745 = vmatpush1.msra.mxu0 0.0
    %1746 = vmatprep.subr.mxu0 0.0
    %1747 = vmatpush1.msra.mxu0 0.0
    %1748 = vmatprep.subr.mxu0 0.0
    %1749 = vmatpush1.msra.mxu0 0.0
    %1750 = vmatprep.subr.mxu0 0.0
    %1751 = vmatpush1.msra.mxu0 0.0
    %1752 = vmatprep.subr.mxu0 0.0
    %1753 = vmatpush1.msra.mxu0 0.0
    %1754 = vmatprep.subr.mxu0 0.0
    %1755 = vmatpush1.msra.mxu0 0.0
    %1756 = vmatprep.subr.mxu0 0.0
    %1757 = vmatpush1.msra.mxu0 0.0
    %1758 = vmatprep.subr.mxu0 0.0
    %1759 = vmatpush1.msra.mxu0 0.0
    %1760 = vmatprep.subr.mxu0 0.0
    %1761 = vmatpush1.msra.mxu0 0.0
    %1762 = vmatprep.subr.mxu0 0.0
    %1763 = vmatpush1.msra.mxu0 0.0
    %1764 = vmatprep.subr.mxu0 0.0
    %1765 = vmatpush1.msra.mxu0 0.0
    %1766 = vmatprep.subr.mxu0 0.0
    %1767 = vmatpush1.msra.mxu0 0.0
    %1768 = vmatprep.subr.mxu0 0.0
    %1769 = vmatpush1.msra.mxu0 0.0
    %1770 = vmatprep.subr.mxu0 0.0
    %1771 = vmatpush1.msra.mxu0 0.0
    %1772 = vmatprep.subr.mxu0 0.0
    %1773 = vmatpush1.msra.mxu0 0.0
    %1774 = vmatprep.subr.mxu0 0.0
    %1775 = vmatpush1.msra.mxu0 %v89
    %1776 = vmatprep.subr.mxu0 0.0
    %1777 = vmatpush2.msra.mxu0 0.0
    %1778 = vmatprep.subr.mxu0 0.0
    %1779 = vmatpush2.msra.mxu0 0.0
    %1780 = vmatprep.subr.mxu0 0.0
    %1781 = vmatpush2.msra.mxu0 0.0
    %1782 = vmatprep.subr.mxu0 0.0
    %1783 = vmatpush2.msra.mxu0 0.0
    %1784 = vmatprep.subr.mxu0 0.0
    %1785 = vmatpush2.msra.mxu0 0.0
    %1786 = vmatprep.subr.mxu0 0.0
    %1787 = vmatpush2.msra.mxu0 0.0
    %1788 = vmatprep.subr.mxu0 0.0
    %1789 = vmatpush2.msra.mxu0 0.0
    %1790 = vmatprep.subr.mxu0 0.0
    %1791 = vmatpush2.msra.mxu0 0.0
    %1792 = vmatprep.subr.mxu0 0.0
    %1793 = vmatpush2.msra.mxu0 0.0
    %1794 = vmatprep.subr.mxu0 0.0
    %1795 = vmatpush2.msra.mxu0 0.0
    %1796 = vmatprep.subr.mxu0 0.0
    %1797 = vmatpush2.msra.mxu0 0.0
    %1798 = vmatprep.subr.mxu0 0.0
    %1799 = vmatpush2.msra.mxu0 0.0
    %1800 = vmatprep.subr.mxu0 0.0
    %1801 = vmatpush2.msra.mxu0 0.0
    %1802 = vmatprep.subr.mxu0 0.0
    %1803 = vmatpush2.msra.mxu0 0.0
    %1804 = vmatprep.subr.mxu0 0.0
    %1805 = vmatpush2.msra.mxu0 0.0
    %1806 = vmatprep.subr.mxu0 0.0
    %1807 = vmatpush2.msra.mxu0 0.0
    %1808 = vmatprep.mubr.f32.mxu0 0.0
    %1809 = vmatmul.mubr.f32.gmra.mxu0 %v1739
    %v1810 = vpop.f32.mrf.mxu0
    %v1811 = vadd.f32 0.0, %v1810
    %v1812 = vpop.f32.mrf.mxu0
    %1813 = vmatprep.mubr.f32.mxu0 0.0
    %1814 = vmatmul.mubr.f32.gmra.mxu0 %v1742
    %v1815 = vpop.f32.mrf.mxu0
    %v1816 = vadd.f32 0.0, %v1815
    %v1817 = vpop.f32.mrf.mxu0
    %1818 = vdwg.mxu0
    %v1820 = vsel %vm178, %v1733, 0
    %v1823 = vsel %vm178, %v1734, 0
    %1825 = vmatprep.subr.mxu0 0.0
    %1826 = vmatpush1.msra.mxu0 0.0
    %1827 = vmatprep.subr.mxu0 0.0
    %1828 = vmatpush1.msra.mxu0 0.0
    %1829 = vmatprep.subr.mxu0 0.0
    %1830 = vmatpush1.msra.mxu0 0.0
    %1831 = vmatprep.subr.mxu0 0.0
    %1832 = vmatpush1.msra.mxu0 0.0
    %1833 = vmatprep.subr.mxu0 0.0
    %1834 = vmatpush1.msra.mxu0 0.0
    %1835 = vmatprep.subr.mxu0 0.0
    %1836 = vmatpush1.msra.mxu0 0.0
    %1837 = vmatprep.subr.mxu0 0.0
    %1838 = vmatpush1.msra.mxu0 0.0
    %1839 = vmatprep.subr.mxu0 0.0
    %1840 = vmatpush1.msra.mxu0 0.0
    %1841 = vmatprep.subr.mxu0 0.0
    %1842 = vmatpush1.msra.mxu0 0.0
    %1843 = vmatprep.subr.mxu0 0.0
    %1844 = vmatpush1.msra.mxu0 0.0
    %1845 = vmatprep.subr.mxu0 0.0
    %1846 = vmatpush1.msra.mxu0 0.0
    %1847 = vmatprep.subr.mxu0 0.0
    %1848 = vmatpush1.msra.mxu0 0.0
    %1849 = vmatprep.subr.mxu0 0.0
    %1850 = vmatpush1.msra.mxu0 0.0
    %1851 = vmatprep.subr.mxu0 0.0
    %1852 = vmatpush1.msra.mxu0 0.0
    %1853 = vmatprep.subr.mxu0 0.0
    %1854 = vmatpush1.msra.mxu0 %v1816
    %1855 = vmatprep.subr.mxu0 0.0
    %1856 = vmatpush1.msra.mxu0 %v1811
    %1857 = vmatprep.subr.mxu0 0.0
    %1858 = vmatpush2.msra.mxu0 0.0
    %1859 = vmatprep.subr.mxu0 0.0
    %1860 = vmatpush2.msra.mxu0 0.0
    %1861 = vmatprep.subr.mxu0 0.0
    %1862 = vmatpush2.msra.mxu0 0.0
    %1863 = vmatprep.subr.mxu0 0.0
    %1864 = vmatpush2.msra.mxu0 0.0
    %1865 = vmatprep.subr.mxu0 0.0
    %1866 = vmatpush2.msra.mxu0 0.0
    %1867 = vmatprep.subr.mxu0 0.0
    %1868 = vmatpush2.msra.mxu0 0.0
    %1869 = vmatprep.subr.mxu0 0.0
    %1870 = vmatpush2.msra.mxu0 0.0
    %1871 = vmatprep.subr.mxu0 0.0
    %1872 = vmatpush2.msra.mxu0 0.0
    %1873 = vmatprep.subr.mxu0 0.0
    %1874 = vmatpush2.msra.mxu0 0.0
    %1875 = vmatprep.subr.mxu0 0.0
    %1876 = vmatpush2.msra.mxu0 0.0
    %1877 = vmatprep.subr.mxu0 0.0
    %1878 = vmatpush2.msra.mxu0 0.0
    %1879 = vmatprep.subr.mxu0 0.0
    %1880 = vmatpush2.msra.mxu0 0.0
    %1881 = vmatprep.subr.mxu0 0.0
    %1882 = vmatpush2.msra.mxu0 0.0
    %1883 = vmatprep.subr.mxu0 0.0
    %1884 = vmatpush2.msra.mxu0 0.0
    %1885 = vmatprep.subr.mxu0 0.0
    %1886 = vmatpush2.msra.mxu0 0.0
    %1887 = vmatprep.subr.mxu0 0.0
    %1888 = vmatpush2.msra.mxu0 0.0
    %1889 = vmatprep.mubr.f32.mxu0 0.0
    %1890 = vmatmul.mubr.f32.gmra.mxu0 %v1820
    %v1891 = vpop.f32.mrf.mxu0
    %v1892 = vadd.f32 0.0, %v1891
    %v1893 = vpop.f32.mrf.mxu0
    %1894 = vmatprep.mubr.f32.mxu0 0.0
    %1895 = vmatmul.mubr.f32.gmra.mxu0 %v1823
    %v1896 = vpop.f32.mrf.mxu0
    %v1897 = vadd.f32 0.0, %v1896
    %v1898 = vpop.f32.mrf.mxu0
    %1899 = vdwg.mxu0
    %v1900 = vmax.f32 %v1892, 0.0
    %v1901 = vmax.f32 %v1897, 0.0
    %v1903 = vsel %vm178, %v1900, 0
    %v1906 = vsel %vm178, %v1901, 0
    %1908 = vmatprep.subr.mxu0 0.0
    %1909 = vmatpush1.msra.mxu0 0.0
    %1910 = vmatprep.subr.mxu0 0.0
    %1911 = vmatpush1.msra.mxu0 0.0
    %1912 = vmatprep.subr.mxu0 0.0
    %1913 = vmatpush1.msra.mxu0 0.0
    %1914 = vmatprep.subr.mxu0 0.0
    %1915 = vmatpush1.msra.mxu0 0.0
    %1916 = vmatprep.subr.mxu0 0.0
    %1917 = vmatpush1.msra.mxu0 0.0
    %1918 = vmatprep.subr.mxu0 0.0
    %1919 = vmatpush1.msra.mxu0 0.0
    %1920 = vmatprep.subr.mxu0 0.0
    %1921 = vmatpush1.msra.mxu0 0.0
    %1922 = vmatprep.subr.mxu0 0.0
    %1923 = vmatpush1.msra.mxu0 0.0
    %1924 = vmatprep.subr.mxu0 0.0
    %1925 = vmatpush1.msra.mxu0 0.0
    %1926 = vmatprep.subr.mxu0 0.0
    %1927 = vmatpush1.msra.mxu0 0.0
    %1928 = vmatprep.subr.mxu0 0.0
    %1929 = vmatpush1.msra.mxu0 0.0
    %1930 = vmatprep.subr.mxu0 0.0
    %1931 = vmatpush1.msra.mxu0 0.0
    %1932 = vmatprep.subr.mxu0 0.0
    %1933 = vmatpush1.msra.mxu0 0.0
    %1934 = vmatprep.subr.mxu0 0.0
    %1935 = vmatpush1.msra.mxu0 0.0
    %1936 = vmatprep.subr.mxu0 0.0
    %1937 = vmatpush1.msra.mxu0 %v91
    %1938 = vmatprep.subr.mxu0 0.0
    %1939 = vmatpush1.msra.mxu0 %v90
    %1940 = vmatprep.subr.mxu0 0.0
    %1941 = vmatpush2.msra.mxu0 0.0
    %1942 = vmatprep.subr.mxu0 0.0
    %1943 = vmatpush2.msra.mxu0 0.0
    %1944 = vmatprep.subr.mxu0 0.0
    %1945 = vmatpush2.msra.mxu0 0.0
    %1946 = vmatprep.subr.mxu0 0.0
    %1947 = vmatpush2.msra.mxu0 0.0
    %1948 = vmatprep.subr.mxu0 0.0
    %1949 = vmatpush2.msra.mxu0 0.0
    %1950 = vmatprep.subr.mxu0 0.0
    %1951 = vmatpush2.msra.mxu0 0.0
    %1952 = vmatprep.subr.mxu0 0.0
    %1953 = vmatpush2.msra.mxu0 0.0
    %1954 = vmatprep.subr.mxu0 0.0
    %1955 = vmatpush2.msra.mxu0 0.0
    %1956 = vmatprep.subr.mxu0 0.0
    %1957 = vmatpush2.msra.mxu0 0.0
    %1958 = vmatprep.subr.mxu0 0.0
    %1959 = vmatpush2.msra.mxu0 0.0
    %1960 = vmatprep.subr.mxu0 0.0
    %1961 = vmatpush2.msra.mxu0 0.0
    %1962 = vmatprep.subr.mxu0 0.0
    %1963 = vmatpush2.msra.mxu0 0.0
    %1964 = vmatprep.subr.mxu0 0.0
    %1965 = vmatpush2.msra.mxu0 0.0
    %1966 = vmatprep.subr.mxu0 0.0
    %1967 = vmatpush2.msra.mxu0 0.0
    %1968 = vmatprep.subr.mxu0 0.0
    %1969 = vmatpush2.msra.mxu0 0.0
    %1970 = vmatprep.subr.mxu0 0.0
    %1971 = vmatpush2.msra.mxu0 0.0
    %1972 = vmatprep.mubr.f32.mxu0 0.0
    %1973 = vmatmul.mubr.f32.gmra.mxu0 %v1903
    %v1974 = vpop.f32.mrf.mxu0
    %v1975 = vadd.f32 0.0, %v1974
    %v1976 = vpop.f32.mrf.mxu0
    %1977 = vmatprep.mubr.f32.mxu0 0.0
    %1978 = vmatmul.mubr.f32.gmra.mxu0 %v1906
    %v1979 = vpop.f32.mrf.mxu0
    %v1980 = vadd.f32 0.0, %v1979
    %v1981 = vpop.f32.mrf.mxu0
    %1982 = vdwg.mxu0
    %1983 = vmatprep.subr.mxu0 0.0
    %1984 = vmatpush1.msra.mxu0 0.0
    %1985 = vmatprep.subr.mxu0 0.0
    %1986 = vmatpush1.msra.mxu0 0.0
    %1987 = vmatprep.subr.mxu0 0.0
    %1988 = vmatpush1.msra.mxu0 0.0
    %1989 = vmatprep.subr.mxu0 0.0
    %1990 = vmatpush1.msra.mxu0 0.0
    %1991 = vmatprep.subr.mxu0 0.0
    %1992 = vmatpush1.msra.mxu0 0.0
    %1993 = vmatprep.subr.mxu0 0.0
    %1994 = vmatpush1.msra.mxu0 0.0
    %1995 = vmatprep.subr.mxu0 0.0
    %1996 = vmatpush1.msra.mxu0 0.0
    %1997 = vmatprep.subr.mxu0 0.0
    %1998 = vmatpush1.msra.mxu0 0.0
    %1999 = vmatprep.subr.mxu0 0.0
    %2000 = vmatpush1.msra.mxu0 0.0
    %2001 = vmatprep.subr.mxu0 0.0
    %2002 = vmatpush1.msra.mxu0 0.0
    %2003 = vmatprep.subr.mxu0 0.0
    %2004 = vmatpush1.msra.mxu0 0.0
    %2005 = vmatprep.subr.mxu0 0.0
    %2006 = vmatpush1.msra.mxu0 0.0
    %2007 = vmatprep.subr.mxu0 0.0
    %2008 = vmatpush1.msra.mxu0 0.0
    %2009 = vmatprep.subr.mxu0 0.0
    %2010 = vmatpush1.msra.mxu0 0.0
    %2011 = vmatprep.subr.mxu0 0.0
    %2012 = vmatpush1.msra.mxu0 %v1980
    %2013 = vmatprep.subr.mxu0 0.0
    %2014 = vmatpush1.msra.mxu0 %v1975
    %2015 = vmatprep.subr.mxu0 0.0
    %2016 = vmatpush2.msra.mxu0 0.0
    %2017 = vmatprep.subr.mxu0 0.0
    %2018 = vmatpush2.msra.mxu0 0.0
    %2019 = vmatprep.subr.mxu0 0.0
    %2020 = vmatpush2.msra.mxu0 0.0
    %2021 = vmatprep.subr.mxu0 0.0
    %2022 = vmatpush2.msra.mxu0 0.0
    %2023 = vmatprep.subr.mxu0 0.0
    %2024 = vmatpush2.msra.mxu0 0.0
    %2025 = vmatprep.subr.mxu0 0.0
    %2026 = vmatpush2.msra.mxu0 0.0
    %2027 = vmatprep.subr.mxu0 0.0
    %2028 = vmatpush2.msra.mxu0 0.0
    %2029 = vmatprep.subr.mxu0 0.0
    %2030 = vmatpush2.msra.mxu0 0.0
    %2031 = vmatprep.subr.mxu0 0.0
    %2032 = vmatpush2.msra.mxu0 0.0
    %2033 = vmatprep.subr.mxu0 0.0
    %2034 = vmatpush2.msra.mxu0 0.0
    %2035 = vmatprep.subr.mxu0 0.0
    %2036 = vmatpush2.msra.mxu0 0.0
    %2037 = vmatprep.subr.mxu0 0.0
    %2038 = vmatpush2.msra.mxu0 0.0
    %2039 = vmatprep.subr.mxu0 0.0
    %2040 = vmatpush2.msra.mxu0 0.0
    %2041 = vmatprep.subr.mxu0 0.0
    %2042 = vmatpush2.msra.mxu0 0.0
    %2043 = vmatprep.subr.mxu0 0.0
    %2044 = vmatpush2.msra.mxu0 0.0
    %2045 = vmatprep.subr.mxu0 0.0
    %2046 = vmatpush2.msra.mxu0 0.0
    %2047 = vmatprep.mubr.f32.mxu0 0.0
    %2048 = vmatmul.mubr.f32.gmra.mxu0 %v1820
    %v2049 = vpop.f32.mrf.mxu0
    %v2050 = vadd.f32 0.0, %v2049
    %v2051 = vpop.f32.mrf.mxu0
    %2052 = vmatprep.mubr.f32.mxu0 0.0
    %2053 = vmatmul.mubr.f32.gmra.mxu0 %v1823
    %v2054 = vpop.f32.mrf.mxu0
    %v2055 = vadd.f32 0.0, %v2054
    %v2056 = vpop.f32.mrf.mxu0
    %2057 = vdwg.mxu0
    %v2058 = vmax.f32 %v2050, 0.0
    %v2059 = vmax.f32 %v2055, 0.0
    %v2060 = vld [vmem:[#allocation5] sm:$0xff]
    %v2061 = vld [vmem:[#allocation5 + $0x8] sm:$0xff]
    %v2062 = vld [vmem:[%s5] sm:$0xff]
    %v2063 = vld [vmem:[%s5 + $0x8] sm:$0xff]
    %v2064 = vld [vmem:[%s5 + $0x10] sm:$0xff]
    %v2065 = vld [vmem:[%s5 + $0x18] sm:$0xff]
    %v2066 = vld [vmem:[%s6] sm:$0x1]
    %v2068 = vlaneseq
    %v2069 = vshrl.u32 %v2068, 7
    %v2070 = vsub.s32 0, %v2069
    %v2071 = vrot.slane %v2066, %v2070
    %v2074 = vsel %vm178, %v418, 0
    %v2077 = vsel %vm178, %v419, 0
    %2079 = vmatprep.subr.mxu0 0.0
    %2080 = vmatpush1.msra.mxu0 0.0
    %2081 = vmatprep.subr.mxu0 0.0
    %2082 = vmatpush1.msra.mxu0 0.0
    %2083 = vmatprep.subr.mxu0 0.0
    %2084 = vmatpush1.msra.mxu0 0.0
    %2085 = vmatprep.subr.mxu0 0.0
    %2086 = vmatpush1.msra.mxu0 0.0
    %2087 = vmatprep.subr.mxu0 0.0
    %2088 = vmatpush1.msra.mxu0 0.0
    %2089 = vmatprep.subr.mxu0 0.0
    %2090 = vmatpush1.msra.mxu0 0.0
    %2091 = vmatprep.subr.mxu0 0.0
    %2092 = vmatpush1.msra.mxu0 0.0
    %2093 = vmatprep.subr.mxu0 0.0
    %2094 = vmatpush1.msra.mxu0 0.0
    %2095 = vmatprep.subr.mxu0 0.0
    %2096 = vmatpush1.msra.mxu0 0.0
    %2097 = vmatprep.subr.mxu0 0.0
    %2098 = vmatpush1.msra.mxu0 0.0
    %2099 = vmatprep.subr.mxu0 0.0
    %2100 = vmatpush1.msra.mxu0 0.0
    %2101 = vmatprep.subr.mxu0 0.0
    %2102 = vmatpush1.msra.mxu0 0.0
    %2103 = vmatprep.subr.mxu0 0.0
    %2104 = vmatpush1.msra.mxu0 0.0
    %2105 = vmatprep.subr.mxu0 0.0
    %2106 = vmatpush1.msra.mxu0 0.0
    %2107 = vmatprep.subr.mxu0 0.0
    %2108 = vmatpush1.msra.mxu0 %v2061
    %2109 = vmatprep.subr.mxu0 0.0
    %2110 = vmatpush1.msra.mxu0 %v2060
    %2111 = vmatprep.subr.mxu0 0.0
    %2112 = vmatpush2.msra.mxu0 0.0
    %2113 = vmatprep.subr.mxu0 0.0
    %2114 = vmatpush2.msra.mxu0 0.0
    %2115 = vmatprep.subr.mxu0 0.0
    %2116 = vmatpush2.msra.mxu0 0.0
    %2117 = vmatprep.subr.mxu0 0.0
    %2118 = vmatpush2.msra.mxu0 0.0
    %2119 = vmatprep.subr.mxu0 0.0
    %2120 = vmatpush2.msra.mxu0 0.0
    %2121 = vmatprep.subr.mxu0 0.0
    %2122 = vmatpush2.msra.mxu0 0.0
    %2123 = vmatprep.subr.mxu0 0.0
    %2124 = vmatpush2.msra.mxu0 0.0
    %2125 = vmatprep.subr.mxu0 0.0
    %2126 = vmatpush2.msra.mxu0 0.0
    %2127 = vmatprep.subr.mxu0 0.0
    %2128 = vmatpush2.msra.mxu0 0.0
    %2129 = vmatprep.subr.mxu0 0.0
    %2130 = vmatpush2.msra.mxu0 0.0
    %2131 = vmatprep.subr.mxu0 0.0
    %2132 = vmatpush2.msra.mxu0 0.0
    %2133 = vmatprep.subr.mxu0 0.0
    %2134 = vmatpush2.msra.mxu0 0.0
    %2135 = vmatprep.subr.mxu0 0.0
    %2136 = vmatpush2.msra.mxu0 0.0
    %2137 = vmatprep.subr.mxu0 0.0
    %2138 = vmatpush2.msra.mxu0 0.0
    %2139 = vmatprep.subr.mxu0 0.0
    %2140 = vmatpush2.msra.mxu0 0.0
    %2141 = vmatprep.subr.mxu0 0.0
    %2142 = vmatpush2.msra.mxu0 0.0
    %2143 = vmatprep.mubr.f32.mxu0 0.0
    %2144 = vmatmul.mubr.f32.gmra.mxu0 %v2074
    %v2145 = vpop.f32.mrf.mxu0
    %v2146 = vadd.f32 %v2071, %v2145
    %v2147 = vpop.f32.mrf.mxu0
    %2148 = vmatprep.mubr.f32.mxu0 0.0
    %2149 = vmatmul.mubr.f32.gmra.mxu0 %v2077
    %v2150 = vpop.f32.mrf.mxu0
    %v2151 = vadd.f32 %v2071, %v2150
    %v2152 = vpop.f32.mrf.mxu0
    %2153 = vdwg.mxu0
    %v2155 = vsel %vm178, %v746, 0
    %v2158 = vsel %vm178, %v747, 0
    %2160 = vmatprep.subr.mxu0 0.0
    %2161 = vmatpush1.msra.mxu0 0.0
    %2162 = vmatprep.subr.mxu0 0.0
    %2163 = vmatpush1.msra.mxu0 0.0
    %2164 = vmatprep.subr.mxu0 0.0
    %2165 = vmatpush1.msra.mxu0 0.0
    %2166 = vmatprep.subr.mxu0 0.0
    %2167 = vmatpush1.msra.mxu0 0.0
    %2168 = vmatprep.subr.mxu0 0.0
    %2169 = vmatpush1.msra.mxu0 0.0
    %2170 = vmatprep.subr.mxu0 0.0
    %2171 = vmatpush1.msra.mxu0 0.0
    %2172 = vmatprep.subr.mxu0 0.0
    %2173 = vmatpush1.msra.mxu0 0.0
    %2174 = vmatprep.subr.mxu0 0.0
    %2175 = vmatpush1.msra.mxu0 0.0
    %2176 = vmatprep.subr.mxu0 0.0
    %2177 = vmatpush1.msra.mxu0 0.0
    %2178 = vmatprep.subr.mxu0 0.0
    %2179 = vmatpush1.msra.mxu0 0.0
    %2180 = vmatprep.subr.mxu0 0.0
    %2181 = vmatpush1.msra.mxu0 0.0
    %2182 = vmatprep.subr.mxu0 0.0
    %2183 = vmatpush1.msra.mxu0 0.0
    %2184 = vmatprep.subr.mxu0 0.0
    %2185 = vmatpush1.msra.mxu0 0.0
    %2186 = vmatprep.subr.mxu0 0.0
    %2187 = vmatpush1.msra.mxu0 0.0
    %2188 = vmatprep.subr.mxu0 0.0
    %2189 = vmatpush1.msra.mxu0 %v2061
    %2190 = vmatprep.subr.mxu0 0.0
    %2191 = vmatpush1.msra.mxu0 %v2060
    %2192 = vmatprep.subr.mxu0 0.0
    %2193 = vmatpush2.msra.mxu0 0.0
    %2194 = vmatprep.subr.mxu0 0.0
    %2195 = vmatpush2.msra.mxu0 0.0
    %2196 = vmatprep.subr.mxu0 0.0
    %2197 = vmatpush2.msra.mxu0 0.0
    %2198 = vmatprep.subr.mxu0 0.0
    %2199 = vmatpush2.msra.mxu0 0.0
    %2200 = vmatprep.subr.mxu0 0.0
    %2201 = vmatpush2.msra.mxu0 0.0
    %2202 = vmatprep.subr.mxu0 0.0
    %2203 = vmatpush2.msra.mxu0 0.0
    %2204 = vmatprep.subr.mxu0 0.0
    %2205 = vmatpush2.msra.mxu0 0.0
    %2206 = vmatprep.subr.mxu0 0.0
    %2207 = vmatpush2.msra.mxu0 0.0
    %2208 = vmatprep.subr.mxu0 0.0
    %2209 = vmatpush2.msra.mxu0 0.0
    %2210 = vmatprep.subr.mxu0 0.0
    %2211 = vmatpush2.msra.mxu0 0.0
    %2212 = vmatprep.subr.mxu0 0.0
    %2213 = vmatpush2.msra.mxu0 0.0
    %2214 = vmatprep.subr.mxu0 0.0
    %2215 = vmatpush2.msra.mxu0 0.0
    %2216 = vmatprep.subr.mxu0 0.0
    %2217 = vmatpush2.msra.mxu0 0.0
    %2218 = vmatprep.subr.mxu0 0.0
    %2219 = vmatpush2.msra.mxu0 0.0
    %2220 = vmatprep.subr.mxu0 0.0
    %2221 = vmatpush2.msra.mxu0 0.0
    %2222 = vmatprep.subr.mxu0 0.0
    %2223 = vmatpush2.msra.mxu0 0.0
    %2224 = vmatprep.mubr.f32.mxu0 0.0
    %2225 = vmatmul.mubr.f32.gmra.mxu0 %v2155
    %v2226 = vpop.f32.mrf.mxu0
    %v2227 = vadd.f32 %v2071, %v2226
    %v2228 = vpop.f32.mrf.mxu0
    %2229 = vmatprep.mubr.f32.mxu0 0.0
    %2230 = vmatmul.mubr.f32.gmra.mxu0 %v2158
    %v2231 = vpop.f32.mrf.mxu0
    %v2232 = vadd.f32 %v2071, %v2231
    %v2233 = vpop.f32.mrf.mxu0
    %2234 = vdwg.mxu0
    %v2236 = vsel %vm178, %v1074, 0
    %v2239 = vsel %vm178, %v1075, 0
    %2241 = vmatprep.subr.mxu0 0.0
    %2242 = vmatpush1.msra.mxu0 0.0
    %2243 = vmatprep.subr.mxu0 0.0
    %2244 = vmatpush1.msra.mxu0 0.0
    %2245 = vmatprep.subr.mxu0 0.0
    %2246 = vmatpush1.msra.mxu0 0.0
    %2247 = vmatprep.subr.mxu0 0.0
    %2248 = vmatpush1.msra.mxu0 0.0
    %2249 = vmatprep.subr.mxu0 0.0
    %2250 = vmatpush1.msra.mxu0 0.0
    %2251 = vmatprep.subr.mxu0 0.0
    %2252 = vmatpush1.msra.mxu0 0.0
    %2253 = vmatprep.subr.mxu0 0.0
    %2254 = vmatpush1.msra.mxu0 0.0
    %2255 = vmatprep.subr.mxu0 0.0
    %2256 = vmatpush1.msra.mxu0 0.0
    %2257 = vmatprep.subr.mxu0 0.0
    %2258 = vmatpush1.msra.mxu0 0.0
    %2259 = vmatprep.subr.mxu0 0.0
    %2260 = vmatpush1.msra.mxu0 0.0
    %2261 = vmatprep.subr.mxu0 0.0
    %2262 = vmatpush1.msra.mxu0 0.0
    %2263 = vmatprep.subr.mxu0 0.0
    %2264 = vmatpush1.msra.mxu0 0.0
    %2265 = vmatprep.subr.mxu0 0.0
    %2266 = vmatpush1.msra.mxu0 0.0
    %2267 = vmatprep.subr.mxu0 0.0
    %2268 = vmatpush1.msra.mxu0 0.0
    %2269 = vmatprep.subr.mxu0 0.0
    %2270 = vmatpush1.msra.mxu0 %v2061
    %2271 = vmatprep.subr.mxu0 0.0
    %2272 = vmatpush1.msra.mxu0 %v2060
    %2273 = vmatprep.subr.mxu0 0.0
    %2274 = vmatpush2.msra.mxu0 0.0
    %2275 = vmatprep.subr.mxu0 0.0
    %2276 = vmatpush2.msra.mxu0 0.0
    %2277 = vmatprep.subr.mxu0 0.0
    %2278 = vmatpush2.msra.mxu0 0.0
    %2279 = vmatprep.subr.mxu0 0.0
    %2280 = vmatpush2.msra.mxu0 0.0
    %2281 = vmatprep.subr.mxu0 0.0
    %2282 = vmatpush2.msra.mxu0 0.0
    %2283 = vmatprep.subr.mxu0 0.0
    %2284 = vmatpush2.msra.mxu0 0.0
    %2285 = vmatprep.subr.mxu0 0.0
    %2286 = vmatpush2.msra.mxu0 0.0
    %2287 = vmatprep.subr.mxu0 0.0
    %2288 = vmatpush2.msra.mxu0 0.0
    %2289 = vmatprep.subr.mxu0 0.0
    %2290 = vmatpush2.msra.mxu0 0.0
    %2291 = vmatprep.subr.mxu0 0.0
    %2292 = vmatpush2.msra.mxu0 0.0
    %2293 = vmatprep.subr.mxu0 0.0
    %2294 = vmatpush2.msra.mxu0 0.0
    %2295 = vmatprep.subr.mxu0 0.0
    %2296 = vmatpush2.msra.mxu0 0.0
    %2297 = vmatprep.subr.mxu0 0.0
    %2298 = vmatpush2.msra.mxu0 0.0
    %2299 = vmatprep.subr.mxu0 0.0
    %2300 = vmatpush2.msra.mxu0 0.0
    %2301 = vmatprep.subr.mxu0 0.0
    %2302 = vmatpush2.msra.mxu0 0.0
    %2303 = vmatprep.subr.mxu0 0.0
    %2304 = vmatpush2.msra.mxu0 0.0
    %2305 = vmatprep.mubr.f32.mxu0 0.0
    %2306 = vmatmul.mubr.f32.gmra.mxu0 %v2236
    %v2307 = vpop.f32.mrf.mxu0
    %v2308 = vadd.f32 %v2071, %v2307
    %v2309 = vpop.f32.mrf.mxu0
    %2310 = vmatprep.mubr.f32.mxu0 0.0
    %2311 = vmatmul.mubr.f32.gmra.mxu0 %v2239
    %v2312 = vpop.f32.mrf.mxu0
    %v2313 = vadd.f32 %v2071, %v2312
    %v2314 = vpop.f32.mrf.mxu0
    %2315 = vdwg.mxu0
    %v2317 = vsel %vm178, %v1402, 0
    %v2320 = vsel %vm178, %v1403, 0
    %2322 = vmatprep.subr.mxu0 0.0
    %2323 = vmatpush1.msra.mxu0 0.0
    %2324 = vmatprep.subr.mxu0 0.0
    %2325 = vmatpush1.msra.mxu0 0.0
    %2326 = vmatprep.subr.mxu0 0.0
    %2327 = vmatpush1.msra.mxu0 0.0
    %2328 = vmatprep.subr.mxu0 0.0
    %2329 = vmatpush1.msra.mxu0 0.0
    %2330 = vmatprep.subr.mxu0 0.0
    %2331 = vmatpush1.msra.mxu0 0.0
    %2332 = vmatprep.subr.mxu0 0.0
    %2333 = vmatpush1.msra.mxu0 0.0
    %2334 = vmatprep.subr.mxu0 0.0
    %2335 = vmatpush1.msra.mxu0 0.0
    %2336 = vmatprep.subr.mxu0 0.0
    %2337 = vmatpush1.msra.mxu0 0.0
    %2338 = vmatprep.subr.mxu0 0.0
    %2339 = vmatpush1.msra.mxu0 0.0
    %2340 = vmatprep.subr.mxu0 0.0
    %2341 = vmatpush1.msra.mxu0 0.0
    %2342 = vmatprep.subr.mxu0 0.0
    %2343 = vmatpush1.msra.mxu0 0.0
    %2344 = vmatprep.subr.mxu0 0.0
    %2345 = vmatpush1.msra.mxu0 0.0
    %2346 = vmatprep.subr.mxu0 0.0
    %2347 = vmatpush1.msra.mxu0 0.0
    %2348 = vmatprep.subr.mxu0 0.0
    %2349 = vmatpush1.msra.mxu0 0.0
    %2350 = vmatprep.subr.mxu0 0.0
    %2351 = vmatpush1.msra.mxu0 %v2061
    %2352 = vmatprep.subr.mxu0 0.0
    %2353 = vmatpush1.msra.mxu0 %v2060
    %2354 = vmatprep.subr.mxu0 0.0
    %2355 = vmatpush2.msra.mxu0 0.0
    %2356 = vmatprep.subr.mxu0 0.0
    %2357 = vmatpush2.msra.mxu0 0.0
    %2358 = vmatprep.subr.mxu0 0.0
    %2359 = vmatpush2.msra.mxu0 0.0
    %2360 = vmatprep.subr.mxu0 0.0
    %2361 = vmatpush2.msra.mxu0 0.0
    %2362 = vmatprep.subr.mxu0 0.0
    %2363 = vmatpush2.msra.mxu0 0.0
    %2364 = vmatprep.subr.mxu0 0.0
    %2365 = vmatpush2.msra.mxu0 0.0
    %2366 = vmatprep.subr.mxu0 0.0
    %2367 = vmatpush2.msra.mxu0 0.0
    %2368 = vmatprep.subr.mxu0 0.0
    %2369 = vmatpush2.msra.mxu0 0.0
    %2370 = vmatprep.subr.mxu0 0.0
    %2371 = vmatpush2.msra.mxu0 0.0
    %2372 = vmatprep.subr.mxu0 0.0
    %2373 = vmatpush2.msra.mxu0 0.0
    %2374 = vmatprep.subr.mxu0 0.0
    %2375 = vmatpush2.msra.mxu0 0.0
    %2376 = vmatprep.subr.mxu0 0.0
    %2377 = vmatpush2.msra.mxu0 0.0
    %2378 = vmatprep.subr.mxu0 0.0
    %2379 = vmatpush2.msra.mxu0 0.0
    %2380 = vmatprep.subr.mxu0 0.0
    %2381 = vmatpush2.msra.mxu0 0.0
    %2382 = vmatprep.subr.mxu0 0.0
    %2383 = vmatpush2.msra.mxu0 0.0
    %2384 = vmatprep.subr.mxu0 0.0
    %2385 = vmatpush2.msra.mxu0 0.0
    %2386 = vmatprep.mubr.f32.mxu0 0.0
    %2387 = vmatmul.mubr.f32.gmra.mxu0 %v2317
    %v2388 = vpop.f32.mrf.mxu0
    %v2389 = vadd.f32 %v2071, %v2388
    %v2390 = vpop.f32.mrf.mxu0
    %2391 = vmatprep.mubr.f32.mxu0 0.0
    %2392 = vmatmul.mubr.f32.gmra.mxu0 %v2320
    %v2393 = vpop.f32.mrf.mxu0
    %v2394 = vadd.f32 %v2071, %v2393
    %v2395 = vpop.f32.mrf.mxu0
    %2396 = vdwg.mxu0
    %v2398 = vsel %vm178, %v1730, 0
    %v2401 = vsel %vm178, %v1731, 0
    %2403 = vmatprep.subr.mxu0 0.0
    %2404 = vmatpush1.msra.mxu0 0.0
    %2405 = vmatprep.subr.mxu0 0.0
    %2406 = vmatpush1.msra.mxu0 0.0
    %2407 = vmatprep.subr.mxu0 0.0
    %2408 = vmatpush1.msra.mxu0 0.0
    %2409 = vmatprep.subr.mxu0 0.0
    %2410 = vmatpush1.msra.mxu0 0.0
    %2411 = vmatprep.subr.mxu0 0.0
    %2412 = vmatpush1.msra.mxu0 0.0
    %2413 = vmatprep.subr.mxu0 0.0
    %2414 = vmatpush1.msra.mxu0 0.0
    %2415 = vmatprep.subr.mxu0 0.0
    %2416 = vmatpush1.msra.mxu0 0.0
    %2417 = vmatprep.subr.mxu0 0.0
    %2418 = vmatpush1.msra.mxu0 0.0
    %2419 = vmatprep.subr.mxu0 0.0
    %2420 = vmatpush1.msra.mxu0 0.0
    %2421 = vmatprep.subr.mxu0 0.0
    %2422 = vmatpush1.msra.mxu0 0.0
    %2423 = vmatprep.subr.mxu0 0.0
    %2424 = vmatpush1.msra.mxu0 0.0
    %2425 = vmatprep.subr.mxu0 0.0
    %2426 = vmatpush1.msra.mxu0 0.0
    %2427 = vmatprep.subr.mxu0 0.0
    %2428 = vmatpush1.msra.mxu0 0.0
    %2429 = vmatprep.subr.mxu0 0.0
    %2430 = vmatpush1.msra.mxu0 0.0
    %2431 = vmatprep.subr.mxu0 0.0
    %2432 = vmatpush1.msra.mxu0 %v2061
    %2433 = vmatprep.subr.mxu0 0.0
    %2434 = vmatpush1.msra.mxu0 %v2060
    %2435 = vmatprep.subr.mxu0 0.0
    %2436 = vmatpush2.msra.mxu0 0.0
    %2437 = vmatprep.subr.mxu0 0.0
    %2438 = vmatpush2.msra.mxu0 0.0
    %2439 = vmatprep.subr.mxu0 0.0
    %2440 = vmatpush2.msra.mxu0 0.0
    %2441 = vmatprep.subr.mxu0 0.0
    %2442 = vmatpush2.msra.mxu0 0.0
    %2443 = vmatprep.subr.mxu0 0.0
    %2444 = vmatpush2.msra.mxu0 0.0
    %2445 = vmatprep.subr.mxu0 0.0
    %2446 = vmatpush2.msra.mxu0 0.0
    %2447 = vmatprep.subr.mxu0 0.0
    %2448 = vmatpush2.msra.mxu0 0.0
    %2449 = vmatprep.subr.mxu0 0.0
    %2450 = vmatpush2.msra.mxu0 0.0
    %2451 = vmatprep.subr.mxu0 0.0
    %2452 = vmatpush2.msra.mxu0 0.0
    %2453 = vmatprep.subr.mxu0 0.0
    %2454 = vmatpush2.msra.mxu0 0.0
    %2455 = vmatprep.subr.mxu0 0.0
    %2456 = vmatpush2.msra.mxu0 0.0
    %2457 = vmatprep.subr.mxu0 0.0
    %2458 = vmatpush2.msra.mxu0 0.0
    %2459 = vmatprep.subr.mxu0 0.0
    %2460 = vmatpush2.msra.mxu0 0.0
    %2461 = vmatprep.subr.mxu0 0.0
    %2462 = vmatpush2.msra.mxu0 0.0
    %2463 = vmatprep.subr.mxu0 0.0
    %2464 = vmatpush2.msra.mxu0 0.0
    %2465 = vmatprep.subr.mxu0 0.0
    %2466 = vmatpush2.msra.mxu0 0.0
    %2467 = vmatprep.mubr.f32.mxu0 0.0
    %2468 = vmatmul.mubr.f32.gmra.mxu0 %v2398
    %v2469 = vpop.f32.mrf.mxu0
    %v2470 = vadd.f32 %v2071, %v2469
    %v2471 = vpop.f32.mrf.mxu0
    %2472 = vmatprep.mubr.f32.mxu0 0.0
    %2473 = vmatmul.mubr.f32.gmra.mxu0 %v2401
    %v2474 = vpop.f32.mrf.mxu0
    %v2475 = vadd.f32 %v2071, %v2474
    %v2476 = vpop.f32.mrf.mxu0
    %2477 = vdwg.mxu0
    %v2479 = vsel %vm178, %v2058, 0
    %v2482 = vsel %vm178, %v2059, 0
    %2484 = vmatprep.subr.mxu0 0.0
    %2485 = vmatpush1.msra.mxu0 0.0
    %2486 = vmatprep.subr.mxu0 0.0
    %2487 = vmatpush1.msra.mxu0 0.0
    %2488 = vmatprep.subr.mxu0 0.0
    %2489 = vmatpush1.msra.mxu0 0.0
    %2490 = vmatprep.subr.mxu0 0.0
    %2491 = vmatpush1.msra.mxu0 0.0
    %2492 = vmatprep.subr.mxu0 0.0
    %2493 = vmatpush1.msra.mxu0 0.0
    %2494 = vmatprep.subr.mxu0 0.0
    %2495 = vmatpush1.msra.mxu0 0.0
    %2496 = vmatprep.subr.mxu0 0.0
    %2497 = vmatpush1.msra.mxu0 0.0
    %2498 = vmatprep.subr.mxu0 0.0
    %2499 = vmatpush1.msra.mxu0 0.0
    %2500 = vmatprep.subr.mxu0 0.0
    %2501 = vmatpush1.msra.mxu0 0.0
    %2502 = vmatprep.subr.mxu0 0.0
    %2503 = vmatpush1.msra.mxu0 0.0
    %2504 = vmatprep.subr.mxu0 0.0
    %2505 = vmatpush1.msra.mxu0 0.0
    %2506 = vmatprep.subr.mxu0 0.0
    %2507 = vmatpush1.msra.mxu0 0.0
    %2508 = vmatprep.subr.mxu0 0.0
    %2509 = vmatpush1.msra.mxu0 0.0
    %2510 = vmatprep.subr.mxu0 0.0
    %2511 = vmatpush1.msra.mxu0 0.0
    %2512 = vmatprep.subr.mxu0 0.0
    %2513 = vmatpush1.msra.mxu0 %v2061
    %2514 = vmatprep.subr.mxu0 0.0
    %2515 = vmatpush1.msra.mxu0 %v2060
    %2516 = vmatprep.subr.mxu0 0.0
    %2517 = vmatpush2.msra.mxu0 0.0
    %2518 = vmatprep.subr.mxu0 0.0
    %2519 = vmatpush2.msra.mxu0 0.0
    %2520 = vmatprep.subr.mxu0 0.0
    %2521 = vmatpush2.msra.mxu0 0.0
    %2522 = vmatprep.subr.mxu0 0.0
    %2523 = vmatpush2.msra.mxu0 0.0
    %2524 = vmatprep.subr.mxu0 0.0
    %2525 = vmatpush2.msra.mxu0 0.0
    %2526 = vmatprep.subr.mxu0 0.0
    %2527 = vmatpush2.msra.mxu0 0.0
    %2528 = vmatprep.subr.mxu0 0.0
    %2529 = vmatpush2.msra.mxu0 0.0
    %2530 = vmatprep.subr.mxu0 0.0
    %2531 = vmatpush2.msra.mxu0 0.0
    %2532 = vmatprep.subr.mxu0 0.0
    %2533 = vmatpush2.msra.mxu0 0.0
    %2534 = vmatprep.subr.mxu0 0.0
    %2535 = vmatpush2.msra.mxu0 0.0
    %2536 = vmatprep.subr.mxu0 0.0
    %2537 = vmatpush2.msra.mxu0 0.0
    %2538 = vmatprep.subr.mxu0 0.0
    %2539 = vmatpush2.msra.mxu0 0.0
    %2540 = vmatprep.subr.mxu0 0.0
    %2541 = vmatpush2.msra.mxu0 0.0
    %2542 = vmatprep.subr.mxu0 0.0
    %2543 = vmatpush2.msra.mxu0 0.0
    %2544 = vmatprep.subr.mxu0 0.0
    %2545 = vmatpush2.msra.mxu0 0.0
    %2546 = vmatprep.subr.mxu0 0.0
    %2547 = vmatpush2.msra.mxu0 0.0
    %2548 = vmatprep.mubr.f32.mxu0 0.0
    %2549 = vmatmul.mubr.f32.gmra.mxu0 %v2479
    %v2550 = vpop.f32.mrf.mxu0
    %v2551 = vadd.f32 %v2071, %v2550
    %v2552 = vpop.f32.mrf.mxu0
    %2553 = vmatprep.mubr.f32.mxu0 0.0
    %2554 = vmatmul.mubr.f32.gmra.mxu0 %v2482
    %v2555 = vpop.f32.mrf.mxu0
    %v2556 = vadd.f32 %v2071, %v2555
    %v2557 = vpop.f32.mrf.mxu0
    %2558 = vdwg.mxu0
    %vm2559 = vcmask 261120
    %v2561 = vsel %vm2559, 0.0, 0
    %2563 = vmatprep.subr.mxu0 0.0
    %2564 = vmatpush1.msra.mxu0 0.0
    %2565 = vmatprep.subr.mxu0 0.0
    %2566 = vmatpush1.msra.mxu0 0.0
    %2567 = vmatprep.subr.mxu0 0.0
    %2568 = vmatpush1.msra.mxu0 0.0
    %2569 = vmatprep.subr.mxu0 0.0
    %2570 = vmatpush1.msra.mxu0 0.0
    %2571 = vmatprep.subr.mxu0 0.0
    %2572 = vmatpush1.msra.mxu0 0.0
    %2573 = vmatprep.subr.mxu0 0.0
    %2574 = vmatpush1.msra.mxu0 0.0
    %2575 = vmatprep.subr.mxu0 0.0
    %2576 = vmatpush1.msra.mxu0 0.0
    %2577 = vmatprep.subr.mxu0 0.0
    %2578 = vmatpush1.msra.mxu0 0.0
    %2579 = vmatprep.subr.mxu0 0.0
    %2580 = vmatpush1.msra.mxu0 0.0
    %2581 = vmatprep.subr.mxu0 0.0
    %2582 = vmatpush1.msra.mxu0 0.0
    %2583 = vmatprep.subr.mxu0 0.0
    %2584 = vmatpush1.msra.mxu0 0.0
    %2585 = vmatprep.subr.mxu0 0.0
    %2586 = vmatpush1.msra.mxu0 0.0
    %2587 = vmatprep.subr.mxu0 0.0
    %2588 = vmatpush1.msra.mxu0 %v2065
    %2589 = vmatprep.subr.mxu0 0.0
    %2590 = vmatpush1.msra.mxu0 %v2064
    %2591 = vmatprep.subr.mxu0 0.0
    %2592 = vmatpush1.msra.mxu0 %v2063
    %2593 = vmatprep.subr.mxu0 0.0
    %2594 = vmatpush1.msra.mxu0 %v2062
    %2595 = vmatprep.subr.mxu0 0.0
    %2596 = vmatpush2.msra.mxu0 0.0
    %2597 = vmatprep.subr.mxu0 0.0
    %2598 = vmatpush2.msra.mxu0 0.0
    %2599 = vmatprep.subr.mxu0 0.0
    %2600 = vmatpush2.msra.mxu0 0.0
    %2601 = vmatprep.subr.mxu0 0.0
    %2602 = vmatpush2.msra.mxu0 0.0
    %2603 = vmatprep.subr.mxu0 0.0
    %2604 = vmatpush2.msra.mxu0 0.0
    %2605 = vmatprep.subr.mxu0 0.0
    %2606 = vmatpush2.msra.mxu0 0.0
    %2607 = vmatprep.subr.mxu0 0.0
    %2608 = vmatpush2.msra.mxu0 0.0
    %2609 = vmatprep.subr.mxu0 0.0
    %2610 = vmatpush2.msra.mxu0 0.0
    %2611 = vmatprep.subr.mxu0 0.0
    %2612 = vmatpush2.msra.mxu0 0.0
    %2613 = vmatprep.subr.mxu0 0.0
    %2614 = vmatpush2.msra.mxu0 0.0
    %2615 = vmatprep.subr.mxu0 0.0
    %2616 = vmatpush2.msra.mxu0 0.0
    %2617 = vmatprep.subr.mxu0 0.0
    %2618 = vmatpush2.msra.mxu0 0.0
    %2619 = vmatprep.subr.mxu0 0.0
    %2620 = vmatpush2.msra.mxu0 0.0
    %2621 = vmatprep.subr.mxu0 0.0
    %2622 = vmatpush2.msra.mxu0 0.0
    %2623 = vmatprep.subr.mxu0 0.0
    %2624 = vmatpush2.msra.mxu0 0.0
    %2625 = vmatprep.subr.mxu0 0.0
    %2626 = vmatpush2.msra.mxu0 0.0
    %2627 = vmatprep.mubr.f32.mxu0 0.0
    %2628 = vmatmul.mubr.f32.gmra.mxu0 %v2561
    %v2629 = vpop.f32.mrf.mxu0
    %v2630 = vadd.f32 0.0, %v2629
    %v2631 = vpop.f32.mrf.mxu0
    %2632 = vmatprep.mubr.f32.mxu0 0.0
    %2633 = vmatmul.mubr.f32.gmra.mxu0 %v2561
    %v2634 = vpop.f32.mrf.mxu0
    %v2635 = vadd.f32 0.0, %v2634
    %v2636 = vpop.f32.mrf.mxu0
    %2637 = vdwg.mxu0
    %v2638 = vadd.f32 %v2146, %v2630
    %v2639 = vadd.f32 %v2151, %v2635
    %v2640 = vxor.u32 %v2638, 2147483648
    %v2641 = vxor.u32 %v2639, 2147483648
    %v2642 = vmul.f32 %v2640, 1.442695
    %v2643 = vpow.pop %v2642
    %v2644 = vmul.f32 %v2641, 1.442695
    %v2645 = vpow.pop %v2644
    %v2646 = vadd.f32 %v2643, 1.0
    %v2647 = vadd.f32 %v2645, 1.0
    %v2648 = vrcp.pop %v2646
    %v2649 = vmul.f32 1.0, %v2648
    %v2650 = vrcp.pop %v2647
    %v2651 = vmul.f32 1.0, %v2650
    %v2652 = vtanh.pop %v2638
    %v2653 = vtanh.pop %v2639
    %v2654 = vmul.f32 %v2649, 0.0
    %v2655 = vmul.f32 %v2651, 0.0
    %2658 = vrot.lane.b32.xlu0 %v2652, 64
    %v2659 = vpop.permute.xlu0 %2658
    %2660 = vrot.lane.b32.xlu0 %v2653, 64
    %v2661 = vpop.permute.xlu0 %2660
    %v2664 = vmul.f32 %v2649, %v2659
    %v2665 = vmul.f32 %v2651, %v2661
    %2668 = vrot.lane.b32.xlu0 %v2664, 32
    %v2669 = vpop.permute.xlu0 %2668
    %2670 = vrot.lane.b32.xlu0 %v2665, 32
    %v2671 = vpop.permute.xlu0 %2670
    %v2674 = vadd.f32 %v2654, %v2669
    %v2675 = vadd.f32 %v2655, %v2671
    %v2676 = vtanh.pop %v2674
    %v2677 = vtanh.pop %v2675
    %2680 = vrot.lane.b32.xlu0 %v2676, 64
    %v2681 = vpop.permute.xlu0 %2680
    %2682 = vrot.lane.b32.xlu0 %v2677, 64
    %v2683 = vpop.permute.xlu0 %2682
    %v2686 = vmul.f32 %v2649, %v2681
    %v2687 = vmul.f32 %v2651, %v2683
    %2690 = vrot.lane.b32.xlu0 %v2686, 32
    %v2691 = vpop.permute.xlu0 %2690
    %2692 = vrot.lane.b32.xlu0 %v2687, 32
    %v2693 = vpop.permute.xlu0 %2692
    %v2694 = vsel %vm2559, %v2691, 0
    %v2696 = vsel %vm2559, %v2693, 0
    %2698 = vmatprep.subr.mxu0 0.0
    %2699 = vmatpush1.msra.mxu0 0.0
    %2700 = vmatprep.subr.mxu0 0.0
    %2701 = vmatpush1.msra.mxu0 0.0
    %2702 = vmatprep.subr.mxu0 0.0
    %2703 = vmatpush1.msra.mxu0 0.0
    %2704 = vmatprep.subr.mxu0 0.0
    %2705 = vmatpush1.msra.mxu0 0.0
    %2706 = vmatprep.subr.mxu0 0.0
    %2707 = vmatpush1.msra.mxu0 0.0
    %2708 = vmatprep.subr.mxu0 0.0
    %2709 = vmatpush1.msra.mxu0 0.0
    %2710 = vmatprep.subr.mxu0 0.0
    %2711 = vmatpush1.msra.mxu0 0.0
    %2712 = vmatprep.subr.mxu0 0.0
    %2713 = vmatpush1.msra.mxu0 0.0
    %2714 = vmatprep.subr.mxu0 0.0
    %2715 = vmatpush1.msra.mxu0 0.0
    %2716 = vmatprep.subr.mxu0 0.0
    %2717 = vmatpush1.msra.mxu0 0.0
    %2718 = vmatprep.subr.mxu0 0.0
    %2719 = vmatpush1.msra.mxu0 0.0
    %2720 = vmatprep.subr.mxu0 0.0
    %2721 = vmatpush1.msra.mxu0 0.0
    %2722 = vmatprep.subr.mxu0 0.0
    %2723 = vmatpush1.msra.mxu0 %v2065
    %2724 = vmatprep.subr.mxu0 0.0
    %2725 = vmatpush1.msra.mxu0 %v2064
    %2726 = vmatprep.subr.mxu0 0.0
    %2727 = vmatpush1.msra.mxu0 %v2063
    %2728 = vmatprep.subr.mxu0 0.0
    %2729 = vmatpush1.msra.mxu0 %v2062
    %2730 = vmatprep.subr.mxu0 0.0
    %2731 = vmatpush2.msra.mxu0 0.0
    %2732 = vmatprep.subr.mxu0 0.0
    %2733 = vmatpush2.msra.mxu0 0.0
    %2734 = vmatprep.subr.mxu0 0.0
    %2735 = vmatpush2.msra.mxu0 0.0
    %2736 = vmatprep.subr.mxu0 0.0
    %2737 = vmatpush2.msra.mxu0 0.0
    %2738 = vmatprep.subr.mxu0 0.0
    %2739 = vmatpush2.msra.mxu0 0.0
    %2740 = vmatprep.subr.mxu0 0.0
    %2741 = vmatpush2.msra.mxu0 0.0
    %2742 = vmatprep.subr.mxu0 0.0
    %2743 = vmatpush2.msra.mxu0 0.0
    %2744 = vmatprep.subr.mxu0 0.0
    %2745 = vmatpush2.msra.mxu0 0.0
    %2746 = vmatprep.subr.mxu0 0.0
    %2747 = vmatpush2.msra.mxu0 0.0
    %2748 = vmatprep.subr.mxu0 0.0
    %2749 = vmatpush2.msra.mxu0 0.0
    %2750 = vmatprep.subr.mxu0 0.0
    %2751 = vmatpush2.msra.mxu0 0.0
    %2752 = vmatprep.subr.mxu0 0.0
    %2753 = vmatpush2.msra.mxu0 0.0
    %2754 = vmatprep.subr.mxu0 0.0
    %2755 = vmatpush2.msra.mxu0 0.0
    %2756 = vmatprep.subr.mxu0 0.0
    %2757 = vmatpush2.msra.mxu0 0.0
    %2758 = vmatprep.subr.mxu0 0.0
    %2759 = vmatpush2.msra.mxu0 0.0
    %2760 = vmatprep.subr.mxu0 0.0
    %2761 = vmatpush2.msra.mxu0 0.0
    %2762 = vmatprep.mubr.f32.mxu0 0.0
    %2763 = vmatmul.mubr.f32.gmra.mxu0 %v2694
    %v2764 = vpop.f32.mrf.mxu0
    %v2765 = vadd.f32 0.0, %v2764
    %v2766 = vpop.f32.mrf.mxu0
    %2767 = vmatprep.mubr.f32.mxu0 0.0
    %2768 = vmatmul.mubr.f32.gmra.mxu0 %v2696
    %v2769 = vpop.f32.mrf.mxu0
    %v2770 = vadd.f32 0.0, %v2769
    %v2771 = vpop.f32.mrf.mxu0
    %2772 = vdwg.mxu0
    %v2773 = vadd.f32 %v2227, %v2765
    %v2774 = vadd.f32 %v2232, %v2770
    %v2775 = vxor.u32 %v2773, 2147483648
    %v2776 = vxor.u32 %v2774, 2147483648
    %v2777 = vmul.f32 %v2775, 1.442695
    %v2778 = vpow.pop %v2777
    %v2779 = vmul.f32 %v2776, 1.442695
    %v2780 = vpow.pop %v2779
    %v2781 = vadd.f32 %v2778, 1.0
    %v2782 = vadd.f32 %v2780, 1.0
    %v2783 = vrcp.pop %v2781
    %v2784 = vmul.f32 1.0, %v2783
    %v2785 = vrcp.pop %v2782
    %v2786 = vmul.f32 1.0, %v2785
    %v2787 = vtanh.pop %v2773
    %v2788 = vtanh.pop %v2774
    %v2789 = vmul.f32 %v2784, %v2674
    %v2790 = vmul.f32 %v2786, %v2675
    %2793 = vrot.lane.b32.xlu0 %v2787, 64
    %v2794 = vpop.permute.xlu0 %2793
    %2795 = vrot.lane.b32.xlu0 %v2788, 64
    %v2796 = vpop.permute.xlu0 %2795
    %v2799 = vmul.f32 %v2784, %v2794
    %v2800 = vmul.f32 %v2786, %v2796
    %2803 = vrot.lane.b32.xlu0 %v2799, 32
    %v2804 = vpop.permute.xlu0 %2803
    %2805 = vrot.lane.b32.xlu0 %v2800, 32
    %v2806 = vpop.permute.xlu0 %2805
    %v2809 = vadd.f32 %v2789, %v2804
    %v2810 = vadd.f32 %v2790, %v2806
    %v2811 = vtanh.pop %v2809
    %v2812 = vtanh.pop %v2810
    %2815 = vrot.lane.b32.xlu0 %v2811, 64
    %v2816 = vpop.permute.xlu0 %2815
    %2817 = vrot.lane.b32.xlu0 %v2812, 64
    %v2818 = vpop.permute.xlu0 %2817
    %v2821 = vmul.f32 %v2784, %v2816
    %v2822 = vmul.f32 %v2786, %v2818
    %2825 = vrot.lane.b32.xlu0 %v2821, 32
    %v2826 = vpop.permute.xlu0 %2825
    %2827 = vrot.lane.b32.xlu0 %v2822, 32
    %v2828 = vpop.permute.xlu0 %2827
    %v2829 = vsel %vm2559, %v2826, 0
    %v2831 = vsel %vm2559, %v2828, 0
    %2833 = vmatprep.subr.mxu0 0.0
    %2834 = vmatpush1.msra.mxu0 0.0
    %2835 = vmatprep.subr.mxu0 0.0
    %2836 = vmatpush1.msra.mxu0 0.0
    %2837 = vmatprep.subr.mxu0 0.0
    %2838 = vmatpush1.msra.mxu0 0.0
    %2839 = vmatprep.subr.mxu0 0.0
    %2840 = vmatpush1.msra.mxu0 0.0
    %2841 = vmatprep.subr.mxu0 0.0
    %2842 = vmatpush1.msra.mxu0 0.0
    %2843 = vmatprep.subr.mxu0 0.0
    %2844 = vmatpush1.msra.mxu0 0.0
    %2845 = vmatprep.subr.mxu0 0.0
    %2846 = vmatpush1.msra.mxu0 0.0
    %2847 = vmatprep.subr.mxu0 0.0
    %2848 = vmatpush1.msra.mxu0 0.0
    %2849 = vmatprep.subr.mxu0 0.0
    %2850 = vmatpush1.msra.mxu0 0.0
    %2851 = vmatprep.subr.mxu0 0.0
    %2852 = vmatpush1.msra.mxu0 0.0
    %2853 = vmatprep.subr.mxu0 0.0
    %2854 = vmatpush1.msra.mxu0 0.0
    %2855 = vmatprep.subr.mxu0 0.0
    %2856 = vmatpush1.msra.mxu0 0.0
    %2857 = vmatprep.subr.mxu0 0.0
    %2858 = vmatpush1.msra.mxu0 %v2065
    %2859 = vmatprep.subr.mxu0 0.0
    %2860 = vmatpush1.msra.mxu0 %v2064
    %2861 = vmatprep.subr.mxu0 0.0
    %2862 = vmatpush1.msra.mxu0 %v2063
    %2863 = vmatprep.subr.mxu0 0.0
    %2864 = vmatpush1.msra.mxu0 %v2062
    %2865 = vmatprep.subr.mxu0 0.0
    %2866 = vmatpush2.msra.mxu0 0.0
    %2867 = vmatprep.subr.mxu0 0.0
    %2868 = vmatpush2.msra.mxu0 0.0
    %2869 = vmatprep.subr.mxu0 0.0
    %2870 = vmatpush2.msra.mxu0 0.0
    %2871 = vmatprep.subr.mxu0 0.0
    %2872 = vmatpush2.msra.mxu0 0.0
    %2873 = vmatprep.subr.mxu0 0.0
    %2874 = vmatpush2.msra.mxu0 0.0
    %2875 = vmatprep.subr.mxu0 0.0
    %2876 = vmatpush2.msra.mxu0 0.0
    %2877 = vmatprep.subr.mxu0 0.0
    %2878 = vmatpush2.msra.mxu0 0.0
    %2879 = vmatprep.subr.mxu0 0.0
    %2880 = vmatpush2.msra.mxu0 0.0
    %2881 = vmatprep.subr.mxu0 0.0
    %2882 = vmatpush2.msra.mxu0 0.0
    %2883 = vmatprep.subr.mxu0 0.0
    %2884 = vmatpush2.msra.mxu0 0.0
    %2885 = vmatprep.subr.mxu0 0.0
    %2886 = vmatpush2.msra.mxu0 0.0
    %2887 = vmatprep.subr.mxu0 0.0
    %2888 = vmatpush2.msra.mxu0 0.0
    %2889 = vmatprep.subr.mxu0 0.0
    %2890 = vmatpush2.msra.mxu0 0.0
    %2891 = vmatprep.subr.mxu0 0.0
    %2892 = vmatpush2.msra.mxu0 0.0
    %2893 = vmatprep.subr.mxu0 0.0
    %2894 = vmatpush2.msra.mxu0 0.0
    %2895 = vmatprep.subr.mxu0 0.0
    %2896 = vmatpush2.msra.mxu0 0.0
    %2897 = vmatprep.mubr.f32.mxu0 0.0
    %2898 = vmatmul.mubr.f32.gmra.mxu0 %v2829
    %v2899 = vpop.f32.mrf.mxu0
    %v2900 = vadd.f32 0.0, %v2899
    %v2901 = vpop.f32.mrf.mxu0
    %2902 = vmatprep.mubr.f32.mxu0 0.0
    %2903 = vmatmul.mubr.f32.gmra.mxu0 %v2831
    %v2904 = vpop.f32.mrf.mxu0
    %v2905 = vadd.f32 0.0, %v2904
    %v2906 = vpop.f32.mrf.mxu0
    %2907 = vdwg.mxu0
    %v2908 = vadd.f32 %v2308, %v2900
    %v2909 = vadd.f32 %v2313, %v2905
    %v2910 = vxor.u32 %v2908, 2147483648
    %v2911 = vxor.u32 %v2909, 2147483648
    %v2912 = vmul.f32 %v2910, 1.442695
    %v2913 = vpow.pop %v2912
    %v2914 = vmul.f32 %v2911, 1.442695
    %v2915 = vpow.pop %v2914
    %v2916 = vadd.f32 %v2913, 1.0
    %v2917 = vadd.f32 %v2915, 1.0
    %v2918 = vrcp.pop %v2916
    %v2919 = vmul.f32 1.0, %v2918
    %v2920 = vrcp.pop %v2917
    %v2921 = vmul.f32 1.0, %v2920
    %v2922 = vtanh.pop %v2908
    %v2923 = vtanh.pop %v2909
    %v2924 = vmul.f32 %v2919, %v2809
    %v2925 = vmul.f32 %v2921, %v2810
    %2928 = vrot.lane.b32.xlu0 %v2922, 64
    %v2929 = vpop.permute.xlu0 %2928
    %2930 = vrot.lane.b32.xlu0 %v2923, 64
    %v2931 = vpop.permute.xlu0 %2930
    %v2934 = vmul.f32 %v2919, %v2929
    %v2935 = vmul.f32 %v2921, %v2931
    %2938 = vrot.lane.b32.xlu0 %v2934, 32
    %v2939 = vpop.permute.xlu0 %2938
    %2940 = vrot.lane.b32.xlu0 %v2935, 32
    %v2941 = vpop.permute.xlu0 %2940
    %v2944 = vadd.f32 %v2924, %v2939
    %v2945 = vadd.f32 %v2925, %v2941
    %v2946 = vtanh.pop %v2944
    %v2947 = vtanh.pop %v2945
    %2950 = vrot.lane.b32.xlu0 %v2946, 64
    %v2951 = vpop.permute.xlu0 %2950
    %2952 = vrot.lane.b32.xlu0 %v2947, 64
    %v2953 = vpop.permute.xlu0 %2952
    %v2956 = vmul.f32 %v2919, %v2951
    %v2957 = vmul.f32 %v2921, %v2953
    %2960 = vrot.lane.b32.xlu0 %v2956, 32
    %v2961 = vpop.permute.xlu0 %2960
    %2962 = vrot.lane.b32.xlu0 %v2957, 32
    %v2963 = vpop.permute.xlu0 %2962
    %v2964 = vsel %vm2559, %v2961, 0
    %v2966 = vsel %vm2559, %v2963, 0
    %2968 = vmatprep.subr.mxu0 0.0
    %2969 = vmatpush1.msra.mxu0 0.0
    %2970 = vmatprep.subr.mxu0 0.0
    %2971 = vmatpush1.msra.mxu0 0.0
    %2972 = vmatprep.subr.mxu0 0.0
    %2973 = vmatpush1.msra.mxu0 0.0
    %2974 = vmatprep.subr.mxu0 0.0
    %2975 = vmatpush1.msra.mxu0 0.0
    %2976 = vmatprep.subr.mxu0 0.0
    %2977 = vmatpush1.msra.mxu0 0.0
    %2978 = vmatprep.subr.mxu0 0.0
    %2979 = vmatpush1.msra.mxu0 0.0
    %2980 = vmatprep.subr.mxu0 0.0
    %2981 = vmatpush1.msra.mxu0 0.0
    %2982 = vmatprep.subr.mxu0 0.0
    %2983 = vmatpush1.msra.mxu0 0.0
    %2984 = vmatprep.subr.mxu0 0.0
    %2985 = vmatpush1.msra.mxu0 0.0
    %2986 = vmatprep.subr.mxu0 0.0
    %2987 = vmatpush1.msra.mxu0 0.0
    %2988 = vmatprep.subr.mxu0 0.0
    %2989 = vmatpush1.msra.mxu0 0.0
    %2990 = vmatprep.subr.mxu0 0.0
    %2991 = vmatpush1.msra.mxu0 0.0
    %2992 = vmatprep.subr.mxu0 0.0
    %2993 = vmatpush1.msra.mxu0 %v2065
    %2994 = vmatprep.subr.mxu0 0.0
    %2995 = vmatpush1.msra.mxu0 %v2064
    %2996 = vmatprep.subr.mxu0 0.0
    %2997 = vmatpush1.msra.mxu0 %v2063
    %2998 = vmatprep.subr.mxu0 0.0
    %2999 = vmatpush1.msra.mxu0 %v2062
    %3000 = vmatprep.subr.mxu0 0.0
    %3001 = vmatpush2.msra.mxu0 0.0
    %3002 = vmatprep.subr.mxu0 0.0
    %3003 = vmatpush2.msra.mxu0 0.0
    %3004 = vmatprep.subr.mxu0 0.0
    %3005 = vmatpush2.msra.mxu0 0.0
    %3006 = vmatprep.subr.mxu0 0.0
    %3007 = vmatpush2.msra.mxu0 0.0
    %3008 = vmatprep.subr.mxu0 0.0
    %3009 = vmatpush2.msra.mxu0 0.0
    %3010 = vmatprep.subr.mxu0 0.0
    %3011 = vmatpush2.msra.mxu0 0.0
    %3012 = vmatprep.subr.mxu0 0.0
    %3013 = vmatpush2.msra.mxu0 0.0
    %3014 = vmatprep.subr.mxu0 0.0
    %3015 = vmatpush2.msra.mxu0 0.0
    %3016 = vmatprep.subr.mxu0 0.0
    %3017 = vmatpush2.msra.mxu0 0.0
    %3018 = vmatprep.subr.mxu0 0.0
    %3019 = vmatpush2.msra.mxu0 0.0
    %3020 = vmatprep.subr.mxu0 0.0
    %3021 = vmatpush2.msra.mxu0 0.0
    %3022 = vmatprep.subr.mxu0 0.0
    %3023 = vmatpush2.msra.mxu0 0.0
    %3024 = vmatprep.subr.mxu0 0.0
    %3025 = vmatpush2.msra.mxu0 0.0
    %3026 = vmatprep.subr.mxu0 0.0
    %3027 = vmatpush2.msra.mxu0 0.0
    %3028 = vmatprep.subr.mxu0 0.0
    %3029 = vmatpush2.msra.mxu0 0.0
    %3030 = vmatprep.subr.mxu0 0.0
    %3031 = vmatpush2.msra.mxu0 0.0
    %3032 = vmatprep.mubr.f32.mxu0 0.0
    %3033 = vmatmul.mubr.f32.gmra.mxu0 %v2964
    %v3034 = vpop.f32.mrf.mxu0
    %v3035 = vadd.f32 0.0, %v3034
    %v3036 = vpop.f32.mrf.mxu0
    %3037 = vmatprep.mubr.f32.mxu0 0.0
    %3038 = vmatmul.mubr.f32.gmra.mxu0 %v2966
    %v3039 = vpop.f32.mrf.mxu0
    %v3040 = vadd.f32 0.0, %v3039
    %v3041 = vpop.f32.mrf.mxu0
    %3042 = vdwg.mxu0
    %v3043 = vadd.f32 %v2389, %v3035
    %v3044 = vadd.f32 %v2394, %v3040
    %v3045 = vxor.u32 %v3043, 2147483648
    %v3046 = vxor.u32 %v3044, 2147483648
    %v3047 = vmul.f32 %v3045, 1.442695
    %v3048 = vpow.pop %v3047
    %v3049 = vmul.f32 %v3046, 1.442695
    %v3050 = vpow.pop %v3049
    %v3051 = vadd.f32 %v3048, 1.0
    %v3052 = vadd.f32 %v3050, 1.0
    %v3053 = vrcp.pop %v3051
    %v3054 = vmul.f32 1.0, %v3053
    %v3055 = vrcp.pop %v3052
    %v3056 = vmul.f32 1.0, %v3055
    %v3057 = vtanh.pop %v3043
    %v3058 = vtanh.pop %v3044
    %v3059 = vmul.f32 %v3054, %v2944
    %v3060 = vmul.f32 %v3056, %v2945
    %3063 = vrot.lane.b32.xlu0 %v3057, 64
    %v3064 = vpop.permute.xlu0 %3063
    %3065 = vrot.lane.b32.xlu0 %v3058, 64
    %v3066 = vpop.permute.xlu0 %3065
    %v3069 = vmul.f32 %v3054, %v3064
    %v3070 = vmul.f32 %v3056, %v3066
    %3073 = vrot.lane.b32.xlu0 %v3069, 32
    %v3074 = vpop.permute.xlu0 %3073
    %3075 = vrot.lane.b32.xlu0 %v3070, 32
    %v3076 = vpop.permute.xlu0 %3075
    %v3079 = vadd.f32 %v3059, %v3074
    %v3080 = vadd.f32 %v3060, %v3076
    %v3081 = vtanh.pop %v3079
    %v3082 = vtanh.pop %v3080
    %3085 = vrot.lane.b32.xlu0 %v3081, 64
    %v3086 = vpop.permute.xlu0 %3085
    %3087 = vrot.lane.b32.xlu0 %v3082, 64
    %v3088 = vpop.permute.xlu0 %3087
    %v3091 = vmul.f32 %v3054, %v3086
    %v3092 = vmul.f32 %v3056, %v3088
    %3095 = vrot.lane.b32.xlu0 %v3091, 32
    %v3096 = vpop.permute.xlu0 %3095
    %3097 = vrot.lane.b32.xlu0 %v3092, 32
    %v3098 = vpop.permute.xlu0 %3097
    %v3099 = vsel %vm2559, %v3096, 0
    %v3101 = vsel %vm2559, %v3098, 0
    %3103 = vmatprep.subr.mxu0 0.0
    %3104 = vmatpush1.msra.mxu0 0.0
    %3105 = vmatprep.subr.mxu0 0.0
    %3106 = vmatpush1.msra.mxu0 0.0
    %3107 = vmatprep.subr.mxu0 0.0
    %3108 = vmatpush1.msra.mxu0 0.0
    %3109 = vmatprep.subr.mxu0 0.0
    %3110 = vmatpush1.msra.mxu0 0.0
    %3111 = vmatprep.subr.mxu0 0.0
    %3112 = vmatpush1.msra.mxu0 0.0
    %3113 = vmatprep.subr.mxu0 0.0
    %3114 = vmatpush1.msra.mxu0 0.0
    %3115 = vmatprep.subr.mxu0 0.0
    %3116 = vmatpush1.msra.mxu0 0.0
    %3117 = vmatprep.subr.mxu0 0.0
    %3118 = vmatpush1.msra.mxu0 0.0
    %3119 = vmatprep.subr.mxu0 0.0
    %3120 = vmatpush1.msra.mxu0 0.0
    %3121 = vmatprep.subr.mxu0 0.0
    %3122 = vmatpush1.msra.mxu0 0.0
    %3123 = vmatprep.subr.mxu0 0.0
    %3124 = vmatpush1.msra.mxu0 0.0
    %3125 = vmatprep.subr.mxu0 0.0
    %3126 = vmatpush1.msra.mxu0 0.0
    %3127 = vmatprep.subr.mxu0 0.0
    %3128 = vmatpush1.msra.mxu0 %v2065
    %3129 = vmatprep.subr.mxu0 0.0
    %3130 = vmatpush1.msra.mxu0 %v2064
    %3131 = vmatprep.subr.mxu0 0.0
    %3132 = vmatpush1.msra.mxu0 %v2063
    %3133 = vmatprep.subr.mxu0 0.0
    %3134 = vmatpush1.msra.mxu0 %v2062
    %3135 = vmatprep.subr.mxu0 0.0
    %3136 = vmatpush2.msra.mxu0 0.0
    %3137 = vmatprep.subr.mxu0 0.0
    %3138 = vmatpush2.msra.mxu0 0.0
    %3139 = vmatprep.subr.mxu0 0.0
    %3140 = vmatpush2.msra.mxu0 0.0
    %3141 = vmatprep.subr.mxu0 0.0
    %3142 = vmatpush2.msra.mxu0 0.0
    %3143 = vmatprep.subr.mxu0 0.0
    %3144 = vmatpush2.msra.mxu0 0.0
    %3145 = vmatprep.subr.mxu0 0.0
    %3146 = vmatpush2.msra.mxu0 0.0
    %3147 = vmatprep.subr.mxu0 0.0
    %3148 = vmatpush2.msra.mxu0 0.0
    %3149 = vmatprep.subr.mxu0 0.0
    %3150 = vmatpush2.msra.mxu0 0.0
    %3151 = vmatprep.subr.mxu0 0.0
    %3152 = vmatpush2.msra.mxu0 0.0
    %3153 = vmatprep.subr.mxu0 0.0
    %3154 = vmatpush2.msra.mxu0 0.0
    %3155 = vmatprep.subr.mxu0 0.0
    %3156 = vmatpush2.msra.mxu0 0.0
    %3157 = vmatprep.subr.mxu0 0.0
    %3158 = vmatpush2.msra.mxu0 0.0
    %3159 = vmatprep.subr.mxu0 0.0
    %3160 = vmatpush2.msra.mxu0 0.0
    %3161 = vmatprep.subr.mxu0 0.0
    %3162 = vmatpush2.msra.mxu0 0.0
    %3163 = vmatprep.subr.mxu0 0.0
    %3164 = vmatpush2.msra.mxu0 0.0
    %3165 = vmatprep.subr.mxu0 0.0
    %3166 = vmatpush2.msra.mxu0 0.0
    %3167 = vmatprep.mubr.f32.mxu0 0.0
    %3168 = vmatmul.mubr.f32.gmra.mxu0 %v3099
    %v3169 = vpop.f32.mrf.mxu0
    %v3170 = vadd.f32 0.0, %v3169
    %v3171 = vpop.f32.mrf.mxu0
    %3172 = vmatprep.mubr.f32.mxu0 0.0
    %3173 = vmatmul.mubr.f32.gmra.mxu0 %v3101
    %v3174 = vpop.f32.mrf.mxu0
    %v3175 = vadd.f32 0.0, %v3174
    %v3176 = vpop.f32.mrf.mxu0
    %3177 = vdwg.mxu0
    %v3178 = vadd.f32 %v2470, %v3170
    %v3179 = vadd.f32 %v2475, %v3175
    %v3180 = vxor.u32 %v3178, 2147483648
    %v3181 = vxor.u32 %v3179, 2147483648
    %v3182 = vmul.f32 %v3180, 1.442695
    %v3183 = vpow.pop %v3182
    %v3184 = vmul.f32 %v3181, 1.442695
    %v3185 = vpow.pop %v3184
    %v3186 = vadd.f32 %v3183, 1.0
    %v3187 = vadd.f32 %v3185, 1.0
    %v3188 = vrcp.pop %v3186
    %v3189 = vmul.f32 1.0, %v3188
    %v3190 = vrcp.pop %v3187
    %v3191 = vmul.f32 1.0, %v3190
    %v3192 = vtanh.pop %v3178
    %v3193 = vtanh.pop %v3179
    %v3194 = vmul.f32 %v3189, %v3079
    %v3195 = vmul.f32 %v3191, %v3080
    %3198 = vrot.lane.b32.xlu0 %v3192, 64
    %v3199 = vpop.permute.xlu0 %3198
    %3200 = vrot.lane.b32.xlu0 %v3193, 64
    %v3201 = vpop.permute.xlu0 %3200
    %v3204 = vmul.f32 %v3189, %v3199
    %v3205 = vmul.f32 %v3191, %v3201
    %3208 = vrot.lane.b32.xlu0 %v3204, 32
    %v3209 = vpop.permute.xlu0 %3208
    %3210 = vrot.lane.b32.xlu0 %v3205, 32
    %v3211 = vpop.permute.xlu0 %3210
    %v3214 = vadd.f32 %v3194, %v3209
    %v3215 = vadd.f32 %v3195, %v3211
    %v3216 = vtanh.pop %v3214
    %v3217 = vtanh.pop %v3215
    %3220 = vrot.lane.b32.xlu0 %v3216, 64
    %v3221 = vpop.permute.xlu0 %3220
    %3222 = vrot.lane.b32.xlu0 %v3217, 64
    %v3223 = vpop.permute.xlu0 %3222
    %v3226 = vmul.f32 %v3189, %v3221
    %v3227 = vmul.f32 %v3191, %v3223
    %3230 = vrot.lane.b32.xlu0 %v3226, 32
    %v3231 = vpop.permute.xlu0 %3230
    %3232 = vrot.lane.b32.xlu0 %v3227, 32
    %v3233 = vpop.permute.xlu0 %3232
    %v3234 = vsel %vm2559, %v3231, 0
    %v3236 = vsel %vm2559, %v3233, 0
    %3238 = vmatprep.subr.mxu0 0.0
    %3239 = vmatpush1.msra.mxu0 0.0
    %3240 = vmatprep.subr.mxu0 0.0
    %3241 = vmatpush1.msra.mxu0 0.0
    %3242 = vmatprep.subr.mxu0 0.0
    %3243 = vmatpush1.msra.mxu0 0.0
    %3244 = vmatprep.subr.mxu0 0.0
    %3245 = vmatpush1.msra.mxu0 0.0
    %3246 = vmatprep.subr.mxu0 0.0
    %3247 = vmatpush1.msra.mxu0 0.0
    %3248 = vmatprep.subr.mxu0 0.0
    %3249 = vmatpush1.msra.mxu0 0.0
    %3250 = vmatprep.subr.mxu0 0.0
    %3251 = vmatpush1.msra.mxu0 0.0
    %3252 = vmatprep.subr.mxu0 0.0
    %3253 = vmatpush1.msra.mxu0 0.0
    %3254 = vmatprep.subr.mxu0 0.0
    %3255 = vmatpush1.msra.mxu0 0.0
    %3256 = vmatprep.subr.mxu0 0.0
    %3257 = vmatpush1.msra.mxu0 0.0
    %3258 = vmatprep.subr.mxu0 0.0
    %3259 = vmatpush1.msra.mxu0 0.0
    %3260 = vmatprep.subr.mxu0 0.0
    %3261 = vmatpush1.msra.mxu0 0.0
    %3262 = vmatprep.subr.mxu0 0.0
    %3263 = vmatpush1.msra.mxu0 %v2065
    %3264 = vmatprep.subr.mxu0 0.0
    %3265 = vmatpush1.msra.mxu0 %v2064
    %3266 = vmatprep.subr.mxu0 0.0
    %3267 = vmatpush1.msra.mxu0 %v2063
    %3268 = vmatprep.subr.mxu0 0.0
    %3269 = vmatpush1.msra.mxu0 %v2062
    %3270 = vmatprep.subr.mxu0 0.0
    %3271 = vmatpush2.msra.mxu0 0.0
    %3272 = vmatprep.subr.mxu0 0.0
    %3273 = vmatpush2.msra.mxu0 0.0
    %3274 = vmatprep.subr.mxu0 0.0
    %3275 = vmatpush2.msra.mxu0 0.0
    %3276 = vmatprep.subr.mxu0 0.0
    %3277 = vmatpush2.msra.mxu0 0.0
    %3278 = vmatprep.subr.mxu0 0.0
    %3279 = vmatpush2.msra.mxu0 0.0
    %3280 = vmatprep.subr.mxu0 0.0
    %3281 = vmatpush2.msra.mxu0 0.0
    %3282 = vmatprep.subr.mxu0 0.0
    %3283 = vmatpush2.msra.mxu0 0.0
    %3284 = vmatprep.subr.mxu0 0.0
    %3285 = vmatpush2.msra.mxu0 0.0
    %3286 = vmatprep.subr.mxu0 0.0
    %3287 = vmatpush2.msra.mxu0 0.0
    %3288 = vmatprep.subr.mxu0 0.0
    %3289 = vmatpush2.msra.mxu0 0.0
    %3290 = vmatprep.subr.mxu0 0.0
    %3291 = vmatpush2.msra.mxu0 0.0
    %3292 = vmatprep.subr.mxu0 0.0
    %3293 = vmatpush2.msra.mxu0 0.0
    %3294 = vmatprep.subr.mxu0 0.0
    %3295 = vmatpush2.msra.mxu0 0.0
    %3296 = vmatprep.subr.mxu0 0.0
    %3297 = vmatpush2.msra.mxu0 0.0
    %3298 = vmatprep.subr.mxu0 0.0
    %3299 = vmatpush2.msra.mxu0 0.0
    %3300 = vmatprep.subr.mxu0 0.0
    %3301 = vmatpush2.msra.mxu0 0.0
    %3302 = vmatprep.mubr.f32.mxu0 0.0
    %3303 = vmatmul.mubr.f32.gmra.mxu0 %v3234
    %v3304 = vpop.f32.mrf.mxu0
    %v3305 = vadd.f32 0.0, %v3304
    %v3306 = vpop.f32.mrf.mxu0
    %3307 = vmatprep.mubr.f32.mxu0 0.0
    %3308 = vmatmul.mubr.f32.gmra.mxu0 %v3236
    %v3309 = vpop.f32.mrf.mxu0
    %v3310 = vadd.f32 0.0, %v3309
    %v3311 = vpop.f32.mrf.mxu0
    %3312 = vdwg.mxu0
    %v3313 = vadd.f32 %v2551, %v3305
    %v3314 = vadd.f32 %v2556, %v3310
    %v3315 = vxor.u32 %v3313, 2147483648
    %v3316 = vxor.u32 %v3314, 2147483648
    %v3317 = vmul.f32 %v3315, 1.442695
    %v3318 = vpow.pop %v3317
    %v3319 = vmul.f32 %v3316, 1.442695
    %v3320 = vpow.pop %v3319
    %v3321 = vadd.f32 %v3318, 1.0
    %v3322 = vadd.f32 %v3320, 1.0
    %v3323 = vrcp.pop %v3321
    %v3324 = vmul.f32 1.0, %v3323
    %v3325 = vrcp.pop %v3322
    %v3326 = vmul.f32 1.0, %v3325
    %v3327 = vtanh.pop %v3313
    %v3328 = vtanh.pop %v3314
    %v3329 = vmul.f32 %v3324, %v3214
    %v3330 = vmul.f32 %v3326, %v3215
    %3333 = vrot.lane.b32.xlu0 %v3327, 64
    %v3334 = vpop.permute.xlu0 %3333
    %3335 = vrot.lane.b32.xlu0 %v3328, 64
    %v3336 = vpop.permute.xlu0 %3335
    %v3339 = vmul.f32 %v3324, %v3334
    %v3340 = vmul.f32 %v3326, %v3336
    %3343 = vrot.lane.b32.xlu0 %v3339, 32
    %v3344 = vpop.permute.xlu0 %3343
    %3345 = vrot.lane.b32.xlu0 %v3340, 32
    %v3346 = vpop.permute.xlu0 %3345
    %v3349 = vadd.f32 %v3329, %v3344
    %v3350 = vadd.f32 %v3330, %v3346
    %v3351 = vtanh.pop %v3349
    %v3352 = vtanh.pop %v3350
    %3355 = vrot.lane.b32.xlu0 %v3351, 64
    %v3356 = vpop.permute.xlu0 %3355
    %3357 = vrot.lane.b32.xlu0 %v3352, 64
    %v3358 = vpop.permute.xlu0 %3357
    %v3361 = vmul.f32 %v3324, %v3356
    %v3362 = vmul.f32 %v3326, %v3358
    %v3363 = vld [vmem:[#allocation7] sm:$0xff]
    %v3364 = vld [vmem:[#allocation7 + $0x8] sm:$0xff]
    %v3365 = vld [vmem:[#allocation7 + $0x10] sm:$0xff]
    %v3366 = vld [vmem:[#allocation7 + $0x18] sm:$0xff]
    %v3367 = vld [vmem:[#allocation8] sm:$0xff]
    %v3368 = vld [vmem:[#allocation8 + $0x8] sm:$0xff]
    %v3369 = vld [vmem:[#allocation8 + $0x10] sm:$0xff]
    %v3370 = vld [vmem:[#allocation8 + $0x18] sm:$0xff]
    %v3371 = vld [vmem:[%s9] sm:$0x1]
    %v3373 = vlaneseq
    %v3374 = vshrl.u32 %v3373, 7
    %v3375 = vsub.s32 0, %v3374
    %v3376 = vrot.slane %v3371, %v3375
    %3378 = vmatprep.subr.mxu0 0.0
    %3379 = vmatpush1.msra.mxu0 0.0
    %3380 = vmatprep.subr.mxu0 0.0
    %3381 = vmatpush1.msra.mxu0 0.0
    %3382 = vmatprep.subr.mxu0 0.0
    %3383 = vmatpush1.msra.mxu0 0.0
    %3384 = vmatprep.subr.mxu0 0.0
    %3385 = vmatpush1.msra.mxu0 0.0
    %3386 = vmatprep.subr.mxu0 0.0
    %3387 = vmatpush1.msra.mxu0 0.0
    %3388 = vmatprep.subr.mxu0 0.0
    %3389 = vmatpush1.msra.mxu0 0.0
    %3390 = vmatprep.subr.mxu0 0.0
    %3391 = vmatpush1.msra.mxu0 0.0
    %3392 = vmatprep.subr.mxu0 0.0
    %3393 = vmatpush1.msra.mxu0 0.0
    %3394 = vmatprep.subr.mxu0 0.0
    %3395 = vmatpush1.msra.mxu0 0.0
    %3396 = vmatprep.subr.mxu0 0.0
    %3397 = vmatpush1.msra.mxu0 0.0
    %3398 = vmatprep.subr.mxu0 0.0
    %3399 = vmatpush1.msra.mxu0 0.0
    %3400 = vmatprep.subr.mxu0 0.0
    %3401 = vmatpush1.msra.mxu0 0.0
    %3402 = vmatprep.subr.mxu0 0.0
    %3403 = vmatpush1.msra.mxu0 %v3366
    %3404 = vmatprep.subr.mxu0 0.0
    %3405 = vmatpush1.msra.mxu0 %v3365
    %3406 = vmatprep.subr.mxu0 0.0
    %3407 = vmatpush1.msra.mxu0 %v3364
    %3408 = vmatprep.subr.mxu0 0.0
    %3409 = vmatpush1.msra.mxu0 %v3363
    %3410 = vmatprep.subr.mxu0 0.0
    %3411 = vmatpush2.msra.mxu0 0.0
    %3412 = vmatprep.subr.mxu0 0.0
    %3413 = vmatpush2.msra.mxu0 0.0
    %3414 = vmatprep.subr.mxu0 0.0
    %3415 = vmatpush2.msra.mxu0 0.0
    %3416 = vmatprep.subr.mxu0 0.0
    %3417 = vmatpush2.msra.mxu0 0.0
    %3418 = vmatprep.subr.mxu0 0.0
    %3419 = vmatpush2.msra.mxu0 0.0
    %3420 = vmatprep.subr.mxu0 0.0
    %3421 = vmatpush2.msra.mxu0 0.0
    %3422 = vmatprep.subr.mxu0 0.0
    %3423 = vmatpush2.msra.mxu0 0.0
    %3424 = vmatprep.subr.mxu0 0.0
    %3425 = vmatpush2.msra.mxu0 0.0
    %3426 = vmatprep.subr.mxu0 0.0
    %3427 = vmatpush2.msra.mxu0 0.0
    %3428 = vmatprep.subr.mxu0 0.0
    %3429 = vmatpush2.msra.mxu0 0.0
    %3430 = vmatprep.subr.mxu0 0.0
    %3431 = vmatpush2.msra.mxu0 0.0
    %3432 = vmatprep.subr.mxu0 0.0
    %3433 = vmatpush2.msra.mxu0 0.0
    %3434 = vmatprep.subr.mxu0 0.0
    %3435 = vmatpush2.msra.mxu0 0.0
    %3436 = vmatprep.subr.mxu0 0.0
    %3437 = vmatpush2.msra.mxu0 0.0
    %3438 = vmatprep.subr.mxu0 0.0
    %3439 = vmatpush2.msra.mxu0 0.0
    %3440 = vmatprep.subr.mxu0 0.0
    %3441 = vmatpush2.msra.mxu0 0.0
    %3442 = vmatprep.mubr.f32.mxu0 0.0
    %3443 = vmatmul.mubr.f32.gmra.mxu0 %v2694
    %v3444 = vpop.f32.mrf.mxu0
    %v3445 = vadd.f32 %v3376, %v3444
    %v3446 = vpop.f32.mrf.mxu0
    %3447 = vmatprep.mubr.f32.mxu0 0.0
    %3448 = vmatmul.mubr.f32.gmra.mxu0 %v2696
    %v3449 = vpop.f32.mrf.mxu0
    %v3450 = vadd.f32 %v3376, %v3449
    %v3451 = vpop.f32.mrf.mxu0
    %3452 = vdwg.mxu0
    %3453 = vmatprep.subr.mxu0 0.0
    %3454 = vmatpush1.msra.mxu0 0.0
    %3455 = vmatprep.subr.mxu0 0.0
    %3456 = vmatpush1.msra.mxu0 0.0
    %3457 = vmatprep.subr.mxu0 0.0
    %3458 = vmatpush1.msra.mxu0 0.0
    %3459 = vmatprep.subr.mxu0 0.0
    %3460 = vmatpush1.msra.mxu0 0.0
    %3461 = vmatprep.subr.mxu0 0.0
    %3462 = vmatpush1.msra.mxu0 0.0
    %3463 = vmatprep.subr.mxu0 0.0
    %3464 = vmatpush1.msra.mxu0 0.0
    %3465 = vmatprep.subr.mxu0 0.0
    %3466 = vmatpush1.msra.mxu0 0.0
    %3467 = vmatprep.subr.mxu0 0.0
    %3468 = vmatpush1.msra.mxu0 0.0
    %3469 = vmatprep.subr.mxu0 0.0
    %3470 = vmatpush1.msra.mxu0 0.0
    %3471 = vmatprep.subr.mxu0 0.0
    %3472 = vmatpush1.msra.mxu0 0.0
    %3473 = vmatprep.subr.mxu0 0.0
    %3474 = vmatpush1.msra.mxu0 0.0
    %3475 = vmatprep.subr.mxu0 0.0
    %3476 = vmatpush1.msra.mxu0 0.0
    %3477 = vmatprep.subr.mxu0 0.0
    %3478 = vmatpush1.msra.mxu0 %v3366
    %3479 = vmatprep.subr.mxu0 0.0
    %3480 = vmatpush1.msra.mxu0 %v3365
    %3481 = vmatprep.subr.mxu0 0.0
    %3482 = vmatpush1.msra.mxu0 %v3364
    %3483 = vmatprep.subr.mxu0 0.0
    %3484 = vmatpush1.msra.mxu0 %v3363
    %3485 = vmatprep.subr.mxu0 0.0
    %3486 = vmatpush2.msra.mxu0 0.0
    %3487 = vmatprep.subr.mxu0 0.0
    %3488 = vmatpush2.msra.mxu0 0.0
    %3489 = vmatprep.subr.mxu0 0.0
    %3490 = vmatpush2.msra.mxu0 0.0
    %3491 = vmatprep.subr.mxu0 0.0
    %3492 = vmatpush2.msra.mxu0 0.0
    %3493 = vmatprep.subr.mxu0 0.0
    %3494 = vmatpush2.msra.mxu0 0.0
    %3495 = vmatprep.subr.mxu0 0.0
    %3496 = vmatpush2.msra.mxu0 0.0
    %3497 = vmatprep.subr.mxu0 0.0
    %3498 = vmatpush2.msra.mxu0 0.0
    %3499 = vmatprep.subr.mxu0 0.0
    %3500 = vmatpush2.msra.mxu0 0.0
    %3501 = vmatprep.subr.mxu0 0.0
    %3502 = vmatpush2.msra.mxu0 0.0
    %3503 = vmatprep.subr.mxu0 0.0
    %3504 = vmatpush2.msra.mxu0 0.0
    %3505 = vmatprep.subr.mxu0 0.0
    %3506 = vmatpush2.msra.mxu0 0.0
    %3507 = vmatprep.subr.mxu0 0.0
    %3508 = vmatpush2.msra.mxu0 0.0
    %3509 = vmatprep.subr.mxu0 0.0
    %3510 = vmatpush2.msra.mxu0 0.0
    %3511 = vmatprep.subr.mxu0 0.0
    %3512 = vmatpush2.msra.mxu0 0.0
    %3513 = vmatprep.subr.mxu0 0.0
    %3514 = vmatpush2.msra.mxu0 0.0
    %3515 = vmatprep.subr.mxu0 0.0
    %3516 = vmatpush2.msra.mxu0 0.0
    %3517 = vmatprep.mubr.f32.mxu0 0.0
    %3518 = vmatmul.mubr.f32.gmra.mxu0 %v2829
    %v3519 = vpop.f32.mrf.mxu0
    %v3520 = vadd.f32 %v3376, %v3519
    %v3521 = vpop.f32.mrf.mxu0
    %3522 = vmatprep.mubr.f32.mxu0 0.0
    %3523 = vmatmul.mubr.f32.gmra.mxu0 %v2831
    %v3524 = vpop.f32.mrf.mxu0
    %v3525 = vadd.f32 %v3376, %v3524
    %v3526 = vpop.f32.mrf.mxu0
    %3527 = vdwg.mxu0
    %3528 = vmatprep.subr.mxu0 0.0
    %3529 = vmatpush1.msra.mxu0 0.0
    %3530 = vmatprep.subr.mxu0 0.0
    %3531 = vmatpush1.msra.mxu0 0.0
    %3532 = vmatprep.subr.mxu0 0.0
    %3533 = vmatpush1.msra.mxu0 0.0
    %3534 = vmatprep.subr.mxu0 0.0
    %3535 = vmatpush1.msra.mxu0 0.0
    %3536 = vmatprep.subr.mxu0 0.0
    %3537 = vmatpush1.msra.mxu0 0.0
    %3538 = vmatprep.subr.mxu0 0.0
    %3539 = vmatpush1.msra.mxu0 0.0
    %3540 = vmatprep.subr.mxu0 0.0
    %3541 = vmatpush1.msra.mxu0 0.0
    %3542 = vmatprep.subr.mxu0 0.0
    %3543 = vmatpush1.msra.mxu0 0.0
    %3544 = vmatprep.subr.mxu0 0.0
    %3545 = vmatpush1.msra.mxu0 0.0
    %3546 = vmatprep.subr.mxu0 0.0
    %3547 = vmatpush1.msra.mxu0 0.0
    %3548 = vmatprep.subr.mxu0 0.0
    %3549 = vmatpush1.msra.mxu0 0.0
    %3550 = vmatprep.subr.mxu0 0.0
    %3551 = vmatpush1.msra.mxu0 0.0
    %3552 = vmatprep.subr.mxu0 0.0
    %3553 = vmatpush1.msra.mxu0 %v3366
    %3554 = vmatprep.subr.mxu0 0.0
    %3555 = vmatpush1.msra.mxu0 %v3365
    %3556 = vmatprep.subr.mxu0 0.0
    %3557 = vmatpush1.msra.mxu0 %v3364
    %3558 = vmatprep.subr.mxu0 0.0
    %3559 = vmatpush1.msra.mxu0 %v3363
    %3560 = vmatprep.subr.mxu0 0.0
    %3561 = vmatpush2.msra.mxu0 0.0
    %3562 = vmatprep.subr.mxu0 0.0
    %3563 = vmatpush2.msra.mxu0 0.0
    %3564 = vmatprep.subr.mxu0 0.0
    %3565 = vmatpush2.msra.mxu0 0.0
    %3566 = vmatprep.subr.mxu0 0.0
    %3567 = vmatpush2.msra.mxu0 0.0
    %3568 = vmatprep.subr.mxu0 0.0
    %3569 = vmatpush2.msra.mxu0 0.0
    %3570 = vmatprep.subr.mxu0 0.0
    %3571 = vmatpush2.msra.mxu0 0.0
    %3572 = vmatprep.subr.mxu0 0.0
    %3573 = vmatpush2.msra.mxu0 0.0
    %3574 = vmatprep.subr.mxu0 0.0
    %3575 = vmatpush2.msra.mxu0 0.0
    %3576 = vmatprep.subr.mxu0 0.0
    %3577 = vmatpush2.msra.mxu0 0.0
    %3578 = vmatprep.subr.mxu0 0.0
    %3579 = vmatpush2.msra.mxu0 0.0
    %3580 = vmatprep.subr.mxu0 0.0
    %3581 = vmatpush2.msra.mxu0 0.0
    %3582 = vmatprep.subr.mxu0 0.0
    %3583 = vmatpush2.msra.mxu0 0.0
    %3584 = vmatprep.subr.mxu0 0.0
    %3585 = vmatpush2.msra.mxu0 0.0
    %3586 = vmatprep.subr.mxu0 0.0
    %3587 = vmatpush2.msra.mxu0 0.0
    %3588 = vmatprep.subr.mxu0 0.0
    %3589 = vmatpush2.msra.mxu0 0.0
    %3590 = vmatprep.subr.mxu0 0.0
    %3591 = vmatpush2.msra.mxu0 0.0
    %3592 = vmatprep.mubr.f32.mxu0 0.0
    %3593 = vmatmul.mubr.f32.gmra.mxu0 %v2964
    %v3594 = vpop.f32.mrf.mxu0
    %v3595 = vadd.f32 %v3376, %v3594
    %v3596 = vpop.f32.mrf.mxu0
    %3597 = vmatprep.mubr.f32.mxu0 0.0
    %3598 = vmatmul.mubr.f32.gmra.mxu0 %v2966
    %v3599 = vpop.f32.mrf.mxu0
    %v3600 = vadd.f32 %v3376, %v3599
    %v3601 = vpop.f32.mrf.mxu0
    %3602 = vdwg.mxu0
    %3603 = vmatprep.subr.mxu0 0.0
    %3604 = vmatpush1.msra.mxu0 0.0
    %3605 = vmatprep.subr.mxu0 0.0
    %3606 = vmatpush1.msra.mxu0 0.0
    %3607 = vmatprep.subr.mxu0 0.0
    %3608 = vmatpush1.msra.mxu0 0.0
    %3609 = vmatprep.subr.mxu0 0.0
    %3610 = vmatpush1.msra.mxu0 0.0
    %3611 = vmatprep.subr.mxu0 0.0
    %3612 = vmatpush1.msra.mxu0 0.0
    %3613 = vmatprep.subr.mxu0 0.0
    %3614 = vmatpush1.msra.mxu0 0.0
    %3615 = vmatprep.subr.mxu0 0.0
    %3616 = vmatpush1.msra.mxu0 0.0
    %3617 = vmatprep.subr.mxu0 0.0
    %3618 = vmatpush1.msra.mxu0 0.0
    %3619 = vmatprep.subr.mxu0 0.0
    %3620 = vmatpush1.msra.mxu0 0.0
    %3621 = vmatprep.subr.mxu0 0.0
    %3622 = vmatpush1.msra.mxu0 0.0
    %3623 = vmatprep.subr.mxu0 0.0
    %3624 = vmatpush1.msra.mxu0 0.0
    %3625 = vmatprep.subr.mxu0 0.0
    %3626 = vmatpush1.msra.mxu0 0.0
    %3627 = vmatprep.subr.mxu0 0.0
    %3628 = vmatpush1.msra.mxu0 %v3366
    %3629 = vmatprep.subr.mxu0 0.0
    %3630 = vmatpush1.msra.mxu0 %v3365
    %3631 = vmatprep.subr.mxu0 0.0
    %3632 = vmatpush1.msra.mxu0 %v3364
    %3633 = vmatprep.subr.mxu0 0.0
    %3634 = vmatpush1.msra.mxu0 %v3363
    %3635 = vmatprep.subr.mxu0 0.0
    %3636 = vmatpush2.msra.mxu0 0.0
    %3637 = vmatprep.subr.mxu0 0.0
    %3638 = vmatpush2.msra.mxu0 0.0
    %3639 = vmatprep.subr.mxu0 0.0
    %3640 = vmatpush2.msra.mxu0 0.0
    %3641 = vmatprep.subr.mxu0 0.0
    %3642 = vmatpush2.msra.mxu0 0.0
    %3643 = vmatprep.subr.mxu0 0.0
    %3644 = vmatpush2.msra.mxu0 0.0
    %3645 = vmatprep.subr.mxu0 0.0
    %3646 = vmatpush2.msra.mxu0 0.0
    %3647 = vmatprep.subr.mxu0 0.0
    %3648 = vmatpush2.msra.mxu0 0.0
    %3649 = vmatprep.subr.mxu0 0.0
    %3650 = vmatpush2.msra.mxu0 0.0
    %3651 = vmatprep.subr.mxu0 0.0
    %3652 = vmatpush2.msra.mxu0 0.0
    %3653 = vmatprep.subr.mxu0 0.0
    %3654 = vmatpush2.msra.mxu0 0.0
    %3655 = vmatprep.subr.mxu0 0.0
    %3656 = vmatpush2.msra.mxu0 0.0
    %3657 = vmatprep.subr.mxu0 0.0
    %3658 = vmatpush2.msra.mxu0 0.0
    %3659 = vmatprep.subr.mxu0 0.0
    %3660 = vmatpush2.msra.mxu0 0.0
    %3661 = vmatprep.subr.mxu0 0.0
    %3662 = vmatpush2.msra.mxu0 0.0
    %3663 = vmatprep.subr.mxu0 0.0
    %3664 = vmatpush2.msra.mxu0 0.0
    %3665 = vmatprep.subr.mxu0 0.0
    %3666 = vmatpush2.msra.mxu0 0.0
    %3667 = vmatprep.mubr.f32.mxu0 0.0
    %3668 = vmatmul.mubr.f32.gmra.mxu0 %v3099
    %v3669 = vpop.f32.mrf.mxu0
    %v3670 = vadd.f32 %v3376, %v3669
    %v3671 = vpop.f32.mrf.mxu0
    %3672 = vmatprep.mubr.f32.mxu0 0.0
    %3673 = vmatmul.mubr.f32.gmra.mxu0 %v3101
    %v3674 = vpop.f32.mrf.mxu0
    %v3675 = vadd.f32 %v3376, %v3674
    %v3676 = vpop.f32.mrf.mxu0
    %3677 = vdwg.mxu0
    %3678 = vmatprep.subr.mxu0 0.0
    %3679 = vmatpush1.msra.mxu0 0.0
    %3680 = vmatprep.subr.mxu0 0.0
    %3681 = vmatpush1.msra.mxu0 0.0
    %3682 = vmatprep.subr.mxu0 0.0
    %3683 = vmatpush1.msra.mxu0 0.0
    %3684 = vmatprep.subr.mxu0 0.0
    %3685 = vmatpush1.msra.mxu0 0.0
    %3686 = vmatprep.subr.mxu0 0.0
    %3687 = vmatpush1.msra.mxu0 0.0
    %3688 = vmatprep.subr.mxu0 0.0
    %3689 = vmatpush1.msra.mxu0 0.0
    %3690 = vmatprep.subr.mxu0 0.0
    %3691 = vmatpush1.msra.mxu0 0.0
    %3692 = vmatprep.subr.mxu0 0.0
    %3693 = vmatpush1.msra.mxu0 0.0
    %3694 = vmatprep.subr.mxu0 0.0
    %3695 = vmatpush1.msra.mxu0 0.0
    %3696 = vmatprep.subr.mxu0 0.0
    %3697 = vmatpush1.msra.mxu0 0.0
    %3698 = vmatprep.subr.mxu0 0.0
    %3699 = vmatpush1.msra.mxu0 0.0
    %3700 = vmatprep.subr.mxu0 0.0
    %3701 = vmatpush1.msra.mxu0 0.0
    %3702 = vmatprep.subr.mxu0 0.0
    %3703 = vmatpush1.msra.mxu0 %v3366
    %3704 = vmatprep.subr.mxu0 0.0
    %3705 = vmatpush1.msra.mxu0 %v3365
    %3706 = vmatprep.subr.mxu0 0.0
    %3707 = vmatpush1.msra.mxu0 %v3364
    %3708 = vmatprep.subr.mxu0 0.0
    %3709 = vmatpush1.msra.mxu0 %v3363
    %3710 = vmatprep.subr.mxu0 0.0
    %3711 = vmatpush2.msra.mxu0 0.0
    %3712 = vmatprep.subr.mxu0 0.0
    %3713 = vmatpush2.msra.mxu0 0.0
    %3714 = vmatprep.subr.mxu0 0.0
    %3715 = vmatpush2.msra.mxu0 0.0
    %3716 = vmatprep.subr.mxu0 0.0
    %3717 = vmatpush2.msra.mxu0 0.0
    %3718 = vmatprep.subr.mxu0 0.0
    %3719 = vmatpush2.msra.mxu0 0.0
    %3720 = vmatprep.subr.mxu0 0.0
    %3721 = vmatpush2.msra.mxu0 0.0
    %3722 = vmatprep.subr.mxu0 0.0
    %3723 = vmatpush2.msra.mxu0 0.0
    %3724 = vmatprep.subr.mxu0 0.0
    %3725 = vmatpush2.msra.mxu0 0.0
    %3726 = vmatprep.subr.mxu0 0.0
    %3727 = vmatpush2.msra.mxu0 0.0
    %3728 = vmatprep.subr.mxu0 0.0
    %3729 = vmatpush2.msra.mxu0 0.0
    %3730 = vmatprep.subr.mxu0 0.0
    %3731 = vmatpush2.msra.mxu0 0.0
    %3732 = vmatprep.subr.mxu0 0.0
    %3733 = vmatpush2.msra.mxu0 0.0
    %3734 = vmatprep.subr.mxu0 0.0
    %3735 = vmatpush2.msra.mxu0 0.0
    %3736 = vmatprep.subr.mxu0 0.0
    %3737 = vmatpush2.msra.mxu0 0.0
    %3738 = vmatprep.subr.mxu0 0.0
    %3739 = vmatpush2.msra.mxu0 0.0
    %3740 = vmatprep.subr.mxu0 0.0
    %3741 = vmatpush2.msra.mxu0 0.0
    %3742 = vmatprep.mubr.f32.mxu0 0.0
    %3743 = vmatmul.mubr.f32.gmra.mxu0 %v3234
    %v3744 = vpop.f32.mrf.mxu0
    %v3745 = vadd.f32 %v3376, %v3744
    %v3746 = vpop.f32.mrf.mxu0
    %3747 = vmatprep.mubr.f32.mxu0 0.0
    %3748 = vmatmul.mubr.f32.gmra.mxu0 %v3236
    %v3749 = vpop.f32.mrf.mxu0
    %v3750 = vadd.f32 %v3376, %v3749
    %v3751 = vpop.f32.mrf.mxu0
    %3752 = vdwg.mxu0
    %3755 = vrot.lane.b32.xlu0 %v3361, 32
    %v3756 = vpop.permute.xlu0 %3755
    %3757 = vrot.lane.b32.xlu0 %v3362, 32
    %v3758 = vpop.permute.xlu0 %3757
    %v3759 = vsel %vm2559, %v3756, 0
    %v3761 = vsel %vm2559, %v3758, 0
    %3763 = vmatprep.subr.mxu0 0.0
    %3764 = vmatpush1.msra.mxu0 0.0
    %3765 = vmatprep.subr.mxu0 0.0
    %3766 = vmatpush1.msra.mxu0 0.0
    %3767 = vmatprep.subr.mxu0 0.0
    %3768 = vmatpush1.msra.mxu0 0.0
    %3769 = vmatprep.subr.mxu0 0.0
    %3770 = vmatpush1.msra.mxu0 0.0
    %3771 = vmatprep.subr.mxu0 0.0
    %3772 = vmatpush1.msra.mxu0 0.0
    %3773 = vmatprep.subr.mxu0 0.0
    %3774 = vmatpush1.msra.mxu0 0.0
    %3775 = vmatprep.subr.mxu0 0.0
    %3776 = vmatpush1.msra.mxu0 0.0
    %3777 = vmatprep.subr.mxu0 0.0
    %3778 = vmatpush1.msra.mxu0 0.0
    %3779 = vmatprep.subr.mxu0 0.0
    %3780 = vmatpush1.msra.mxu0 0.0
    %3781 = vmatprep.subr.mxu0 0.0
    %3782 = vmatpush1.msra.mxu0 0.0
    %3783 = vmatprep.subr.mxu0 0.0
    %3784 = vmatpush1.msra.mxu0 0.0
    %3785 = vmatprep.subr.mxu0 0.0
    %3786 = vmatpush1.msra.mxu0 0.0
    %3787 = vmatprep.subr.mxu0 0.0
    %3788 = vmatpush1.msra.mxu0 %v3366
    %3789 = vmatprep.subr.mxu0 0.0
    %3790 = vmatpush1.msra.mxu0 %v3365
    %3791 = vmatprep.subr.mxu0 0.0
    %3792 = vmatpush1.msra.mxu0 %v3364
    %3793 = vmatprep.subr.mxu0 0.0
    %3794 = vmatpush1.msra.mxu0 %v3363
    %3795 = vmatprep.subr.mxu0 0.0
    %3796 = vmatpush2.msra.mxu0 0.0
    %3797 = vmatprep.subr.mxu0 0.0
    %3798 = vmatpush2.msra.mxu0 0.0
    %3799 = vmatprep.subr.mxu0 0.0
    %3800 = vmatpush2.msra.mxu0 0.0
    %3801 = vmatprep.subr.mxu0 0.0
    %3802 = vmatpush2.msra.mxu0 0.0
    %3803 = vmatprep.subr.mxu0 0.0
    %3804 = vmatpush2.msra.mxu0 0.0
    %3805 = vmatprep.subr.mxu0 0.0
    %3806 = vmatpush2.msra.mxu0 0.0
    %3807 = vmatprep.subr.mxu0 0.0
    %3808 = vmatpush2.msra.mxu0 0.0
    %3809 = vmatprep.subr.mxu0 0.0
    %3810 = vmatpush2.msra.mxu0 0.0
    %3811 = vmatprep.subr.mxu0 0.0
    %3812 = vmatpush2.msra.mxu0 0.0
    %3813 = vmatprep.subr.mxu0 0.0
    %3814 = vmatpush2.msra.mxu0 0.0
    %3815 = vmatprep.subr.mxu0 0.0
    %3816 = vmatpush2.msra.mxu0 0.0
    %3817 = vmatprep.subr.mxu0 0.0
    %3818 = vmatpush2.msra.mxu0 0.0
    %3819 = vmatprep.subr.mxu0 0.0
    %3820 = vmatpush2.msra.mxu0 0.0
    %3821 = vmatprep.subr.mxu0 0.0
    %3822 = vmatpush2.msra.mxu0 0.0
    %3823 = vmatprep.subr.mxu0 0.0
    %3824 = vmatpush2.msra.mxu0 0.0
    %3825 = vmatprep.subr.mxu0 0.0
    %3826 = vmatpush2.msra.mxu0 0.0
    %3827 = vmatprep.mubr.f32.mxu0 0.0
    %3828 = vmatmul.mubr.f32.gmra.mxu0 %v3759
    %v3829 = vpop.f32.mrf.mxu0
    %v3830 = vadd.f32 %v3376, %v3829
    %v3831 = vpop.f32.mrf.mxu0
    %3832 = vmatprep.mubr.f32.mxu0 0.0
    %3833 = vmatmul.mubr.f32.gmra.mxu0 %v3761
    %v3834 = vpop.f32.mrf.mxu0
    %v3835 = vadd.f32 %v3376, %v3834
    %v3836 = vpop.f32.mrf.mxu0
    %3837 = vdwg.mxu0
    %3838 = vmatprep.subr.mxu0 0.0
    %3839 = vmatpush1.msra.mxu0 0.0
    %3840 = vmatprep.subr.mxu0 0.0
    %3841 = vmatpush1.msra.mxu0 0.0
    %3842 = vmatprep.subr.mxu0 0.0
    %3843 = vmatpush1.msra.mxu0 0.0
    %3844 = vmatprep.subr.mxu0 0.0
    %3845 = vmatpush1.msra.mxu0 0.0
    %3846 = vmatprep.subr.mxu0 0.0
    %3847 = vmatpush1.msra.mxu0 0.0
    %3848 = vmatprep.subr.mxu0 0.0
    %3849 = vmatpush1.msra.mxu0 0.0
    %3850 = vmatprep.subr.mxu0 0.0
    %3851 = vmatpush1.msra.mxu0 0.0
    %3852 = vmatprep.subr.mxu0 0.0
    %3853 = vmatpush1.msra.mxu0 0.0
    %3854 = vmatprep.subr.mxu0 0.0
    %3855 = vmatpush1.msra.mxu0 0.0
    %3856 = vmatprep.subr.mxu0 0.0
    %3857 = vmatpush1.msra.mxu0 0.0
    %3858 = vmatprep.subr.mxu0 0.0
    %3859 = vmatpush1.msra.mxu0 0.0
    %3860 = vmatprep.subr.mxu0 0.0
    %3861 = vmatpush1.msra.mxu0 0.0
    %3862 = vmatprep.subr.mxu0 0.0
    %3863 = vmatpush1.msra.mxu0 %v3370
    %3864 = vmatprep.subr.mxu0 0.0
    %3865 = vmatpush1.msra.mxu0 %v3369
    %3866 = vmatprep.subr.mxu0 0.0
    %3867 = vmatpush1.msra.mxu0 %v3368
    %3868 = vmatprep.subr.mxu0 0.0
    %3869 = vmatpush1.msra.mxu0 %v3367
    %3870 = vmatprep.subr.mxu0 0.0
    %3871 = vmatpush2.msra.mxu0 0.0
    %3872 = vmatprep.subr.mxu0 0.0
    %3873 = vmatpush2.msra.mxu0 0.0
    %3874 = vmatprep.subr.mxu0 0.0
    %3875 = vmatpush2.msra.mxu0 0.0
    %3876 = vmatprep.subr.mxu0 0.0
    %3877 = vmatpush2.msra.mxu0 0.0
    %3878 = vmatprep.subr.mxu0 0.0
    %3879 = vmatpush2.msra.mxu0 0.0
    %3880 = vmatprep.subr.mxu0 0.0
    %3881 = vmatpush2.msra.mxu0 0.0
    %3882 = vmatprep.subr.mxu0 0.0
    %3883 = vmatpush2.msra.mxu0 0.0
    %3884 = vmatprep.subr.mxu0 0.0
    %3885 = vmatpush2.msra.mxu0 0.0
    %3886 = vmatprep.subr.mxu0 0.0
    %3887 = vmatpush2.msra.mxu0 0.0
    %3888 = vmatprep.subr.mxu0 0.0
    %3889 = vmatpush2.msra.mxu0 0.0
    %3890 = vmatprep.subr.mxu0 0.0
    %3891 = vmatpush2.msra.mxu0 0.0
    %3892 = vmatprep.subr.mxu0 0.0
    %3893 = vmatpush2.msra.mxu0 0.0
    %3894 = vmatprep.subr.mxu0 0.0
    %3895 = vmatpush2.msra.mxu0 0.0
    %3896 = vmatprep.subr.mxu0 0.0
    %3897 = vmatpush2.msra.mxu0 0.0
    %3898 = vmatprep.subr.mxu0 0.0
    %3899 = vmatpush2.msra.mxu0 0.0
    %3900 = vmatprep.subr.mxu0 0.0
    %3901 = vmatpush2.msra.mxu0 0.0
    %3902 = vmatprep.mubr.f32.mxu0 0.0
    %3903 = vmatmul.mubr.f32.gmra.mxu0 %v2561
    %v3904 = vpop.f32.mrf.mxu0
    %v3905 = vadd.f32 0.0, %v3904
    %v3906 = vpop.f32.mrf.mxu0
    %3907 = vmatprep.mubr.f32.mxu0 0.0
    %3908 = vmatmul.mubr.f32.gmra.mxu0 %v2561
    %v3909 = vpop.f32.mrf.mxu0
    %v3910 = vadd.f32 0.0, %v3909
    %v3911 = vpop.f32.mrf.mxu0
    %3912 = vdwg.mxu0
    %v3913 = vadd.f32 %v3445, %v3905
    %v3914 = vadd.f32 %v3450, %v3910
    %v3915 = vxor.u32 %v3913, 2147483648
    %v3916 = vxor.u32 %v3914, 2147483648
    %v3917 = vmul.f32 %v3915, 1.442695
    %v3918 = vpow.pop %v3917
    %v3919 = vmul.f32 %v3916, 1.442695
    %v3920 = vpow.pop %v3919
    %v3921 = vadd.f32 %v3918, 1.0
    %v3922 = vadd.f32 %v3920, 1.0
    %v3923 = vrcp.pop %v3921
    %v3924 = vmul.f32 1.0, %v3923
    %v3925 = vrcp.pop %v3922
    %v3926 = vmul.f32 1.0, %v3925
    %v3927 = vtanh.pop %v3913
    %v3928 = vtanh.pop %v3914
    %v3929 = vmul.f32 %v3924, 0.0
    %v3930 = vmul.f32 %v3926, 0.0
    %3933 = vrot.lane.b32.xlu0 %v3927, 64
    %v3934 = vpop.permute.xlu0 %3933
    %3935 = vrot.lane.b32.xlu0 %v3928, 64
    %v3936 = vpop.permute.xlu0 %3935
    %v3939 = vmul.f32 %v3924, %v3934
    %v3940 = vmul.f32 %v3926, %v3936
    %3943 = vrot.lane.b32.xlu0 %v3939, 32
    %v3944 = vpop.permute.xlu0 %3943
    %3945 = vrot.lane.b32.xlu0 %v3940, 32
    %v3946 = vpop.permute.xlu0 %3945
    %v3949 = vadd.f32 %v3929, %v3944
    %v3950 = vadd.f32 %v3930, %v3946
    %v3951 = vtanh.pop %v3949
    %v3952 = vtanh.pop %v3950
    %3955 = vrot.lane.b32.xlu0 %v3951, 64
    %v3956 = vpop.permute.xlu0 %3955
    %3957 = vrot.lane.b32.xlu0 %v3952, 64
    %v3958 = vpop.permute.xlu0 %3957
    %v3961 = vmul.f32 %v3924, %v3956
    %v3962 = vmul.f32 %v3926, %v3958
    %3965 = vrot.lane.b32.xlu0 %v3961, 32
    %v3966 = vpop.permute.xlu0 %3965
    %3967 = vrot.lane.b32.xlu0 %v3962, 32
    %v3968 = vpop.permute.xlu0 %3967
    %v3969 = vsel %vm2559, %v3966, 0
    %v3971 = vsel %vm2559, %v3968, 0
    %3973 = vmatprep.subr.mxu0 0.0
    %3974 = vmatpush1.msra.mxu0 0.0
    %3975 = vmatprep.subr.mxu0 0.0
    %3976 = vmatpush1.msra.mxu0 0.0
    %3977 = vmatprep.subr.mxu0 0.0
    %3978 = vmatpush1.msra.mxu0 0.0
    %3979 = vmatprep.subr.mxu0 0.0
    %3980 = vmatpush1.msra.mxu0 0.0
    %3981 = vmatprep.subr.mxu0 0.0
    %3982 = vmatpush1.msra.mxu0 0.0
    %3983 = vmatprep.subr.mxu0 0.0
    %3984 = vmatpush1.msra.mxu0 0.0
    %3985 = vmatprep.subr.mxu0 0.0
    %3986 = vmatpush1.msra.mxu0 0.0
    %3987 = vmatprep.subr.mxu0 0.0
    %3988 = vmatpush1.msra.mxu0 0.0
    %3989 = vmatprep.subr.mxu0 0.0
    %3990 = vmatpush1.msra.mxu0 0.0
    %3991 = vmatprep.subr.mxu0 0.0
    %3992 = vmatpush1.msra.mxu0 0.0
    %3993 = vmatprep.subr.mxu0 0.0
    %3994 = vmatpush1.msra.mxu0 0.0
    %3995 = vmatprep.subr.mxu0 0.0
    %3996 = vmatpush1.msra.mxu0 0.0
    %3997 = vmatprep.subr.mxu0 0.0
    %3998 = vmatpush1.msra.mxu0 %v3370
    %3999 = vmatprep.subr.mxu0 0.0
    %4000 = vmatpush1.msra.mxu0 %v3369
    %4001 = vmatprep.subr.mxu0 0.0
    %4002 = vmatpush1.msra.mxu0 %v3368
    %4003 = vmatprep.subr.mxu0 0.0
    %4004 = vmatpush1.msra.mxu0 %v3367
    %4005 = vmatprep.subr.mxu0 0.0
    %4006 = vmatpush2.msra.mxu0 0.0
    %4007 = vmatprep.subr.mxu0 0.0
    %4008 = vmatpush2.msra.mxu0 0.0
    %4009 = vmatprep.subr.mxu0 0.0
    %4010 = vmatpush2.msra.mxu0 0.0
    %4011 = vmatprep.subr.mxu0 0.0
    %4012 = vmatpush2.msra.mxu0 0.0
    %4013 = vmatprep.subr.mxu0 0.0
    %4014 = vmatpush2.msra.mxu0 0.0
    %4015 = vmatprep.subr.mxu0 0.0
    %4016 = vmatpush2.msra.mxu0 0.0
    %4017 = vmatprep.subr.mxu0 0.0
    %4018 = vmatpush2.msra.mxu0 0.0
    %4019 = vmatprep.subr.mxu0 0.0
    %4020 = vmatpush2.msra.mxu0 0.0
    %4021 = vmatprep.subr.mxu0 0.0
    %4022 = vmatpush2.msra.mxu0 0.0
    %4023 = vmatprep.subr.mxu0 0.0
    %4024 = vmatpush2.msra.mxu0 0.0
    %4025 = vmatprep.subr.mxu0 0.0
    %4026 = vmatpush2.msra.mxu0 0.0
    %4027 = vmatprep.subr.mxu0 0.0
    %4028 = vmatpush2.msra.mxu0 0.0
    %4029 = vmatprep.subr.mxu0 0.0
    %4030 = vmatpush2.msra.mxu0 0.0
    %4031 = vmatprep.subr.mxu0 0.0
    %4032 = vmatpush2.msra.mxu0 0.0
    %4033 = vmatprep.subr.mxu0 0.0
    %4034 = vmatpush2.msra.mxu0 0.0
    %4035 = vmatprep.subr.mxu0 0.0
    %4036 = vmatpush2.msra.mxu0 0.0
    %4037 = vmatprep.mubr.f32.mxu0 0.0
    %4038 = vmatmul.mubr.f32.gmra.mxu0 %v3969
    %v4039 = vpop.f32.mrf.mxu0
    %v4040 = vadd.f32 0.0, %v4039
    %v4041 = vpop.f32.mrf.mxu0
    %4042 = vmatprep.mubr.f32.mxu0 0.0
    %4043 = vmatmul.mubr.f32.gmra.mxu0 %v3971
    %v4044 = vpop.f32.mrf.mxu0
    %v4045 = vadd.f32 0.0, %v4044
    %v4046 = vpop.f32.mrf.mxu0
    %4047 = vdwg.mxu0
    %v4048 = vadd.f32 %v3520, %v4040
    %v4049 = vadd.f32 %v3525, %v4045
    %v4050 = vxor.u32 %v4048, 2147483648
    %v4051 = vxor.u32 %v4049, 2147483648
    %v4052 = vmul.f32 %v4050, 1.442695
    %v4053 = vpow.pop %v4052
    %v4054 = vmul.f32 %v4051, 1.442695
    %v4055 = vpow.pop %v4054
    %v4056 = vadd.f32 %v4053, 1.0
    %v4057 = vadd.f32 %v4055, 1.0
    %v4058 = vrcp.pop %v4056
    %v4059 = vmul.f32 1.0, %v4058
    %v4060 = vrcp.pop %v4057
    %v4061 = vmul.f32 1.0, %v4060
    %v4062 = vtanh.pop %v4048
    %v4063 = vtanh.pop %v4049
    %v4064 = vmul.f32 %v4059, %v3949
    %v4065 = vmul.f32 %v4061, %v3950
    %4068 = vrot.lane.b32.xlu0 %v4062, 64
    %v4069 = vpop.permute.xlu0 %4068
    %4070 = vrot.lane.b32.xlu0 %v4063, 64
    %v4071 = vpop.permute.xlu0 %4070
    %v4074 = vmul.f32 %v4059, %v4069
    %v4075 = vmul.f32 %v4061, %v4071
    %4078 = vrot.lane.b32.xlu0 %v4074, 32
    %v4079 = vpop.permute.xlu0 %4078
    %4080 = vrot.lane.b32.xlu0 %v4075, 32
    %v4081 = vpop.permute.xlu0 %4080
    %v4084 = vadd.f32 %v4064, %v4079
    %v4085 = vadd.f32 %v4065, %v4081
    %v4086 = vtanh.pop %v4084
    %v4087 = vtanh.pop %v4085
    %4090 = vrot.lane.b32.xlu0 %v4086, 64
    %v4091 = vpop.permute.xlu0 %4090
    %4092 = vrot.lane.b32.xlu0 %v4087, 64
    %v4093 = vpop.permute.xlu0 %4092
    %v4096 = vmul.f32 %v4059, %v4091
    %v4097 = vmul.f32 %v4061, %v4093
    %4100 = vrot.lane.b32.xlu0 %v4096, 32
    %v4101 = vpop.permute.xlu0 %4100
    %4102 = vrot.lane.b32.xlu0 %v4097, 32
    %v4103 = vpop.permute.xlu0 %4102
    %v4104 = vsel %vm2559, %v4101, 0
    %v4106 = vsel %vm2559, %v4103, 0
    %4108 = vmatprep.subr.mxu0 0.0
    %4109 = vmatpush1.msra.mxu0 0.0
    %4110 = vmatprep.subr.mxu0 0.0
    %4111 = vmatpush1.msra.mxu0 0.0
    %4112 = vmatprep.subr.mxu0 0.0
    %4113 = vmatpush1.msra.mxu0 0.0
    %4114 = vmatprep.subr.mxu0 0.0
    %4115 = vmatpush1.msra.mxu0 0.0
    %4116 = vmatprep.subr.mxu0 0.0
    %4117 = vmatpush1.msra.mxu0 0.0
    %4118 = vmatprep.subr.mxu0 0.0
    %4119 = vmatpush1.msra.mxu0 0.0
    %4120 = vmatprep.subr.mxu0 0.0
    %4121 = vmatpush1.msra.mxu0 0.0
    %4122 = vmatprep.subr.mxu0 0.0
    %4123 = vmatpush1.msra.mxu0 0.0
    %4124 = vmatprep.subr.mxu0 0.0
    %4125 = vmatpush1.msra.mxu0 0.0
    %4126 = vmatprep.subr.mxu0 0.0
    %4127 = vmatpush1.msra.mxu0 0.0
    %4128 = vmatprep.subr.mxu0 0.0
    %4129 = vmatpush1.msra.mxu0 0.0
    %4130 = vmatprep.subr.mxu0 0.0
    %4131 = vmatpush1.msra.mxu0 0.0
    %4132 = vmatprep.subr.mxu0 0.0
    %4133 = vmatpush1.msra.mxu0 %v3370
    %4134 = vmatprep.subr.mxu0 0.0
    %4135 = vmatpush1.msra.mxu0 %v3369
    %4136 = vmatprep.subr.mxu0 0.0
    %4137 = vmatpush1.msra.mxu0 %v3368
    %4138 = vmatprep.subr.mxu0 0.0
    %4139 = vmatpush1.msra.mxu0 %v3367
    %4140 = vmatprep.subr.mxu0 0.0
    %4141 = vmatpush2.msra.mxu0 0.0
    %4142 = vmatprep.subr.mxu0 0.0
    %4143 = vmatpush2.msra.mxu0 0.0
    %4144 = vmatprep.subr.mxu0 0.0
    %4145 = vmatpush2.msra.mxu0 0.0
    %4146 = vmatprep.subr.mxu0 0.0
    %4147 = vmatpush2.msra.mxu0 0.0
    %4148 = vmatprep.subr.mxu0 0.0
    %4149 = vmatpush2.msra.mxu0 0.0
    %4150 = vmatprep.subr.mxu0 0.0
    %4151 = vmatpush2.msra.mxu0 0.0
    %4152 = vmatprep.subr.mxu0 0.0
    %4153 = vmatpush2.msra.mxu0 0.0
    %4154 = vmatprep.subr.mxu0 0.0
    %4155 = vmatpush2.msra.mxu0 0.0
    %4156 = vmatprep.subr.mxu0 0.0
    %4157 = vmatpush2.msra.mxu0 0.0
    %4158 = vmatprep.subr.mxu0 0.0
    %4159 = vmatpush2.msra.mxu0 0.0
    %4160 = vmatprep.subr.mxu0 0.0
    %4161 = vmatpush2.msra.mxu0 0.0
    %4162 = vmatprep.subr.mxu0 0.0
    %4163 = vmatpush2.msra.mxu0 0.0
    %4164 = vmatprep.subr.mxu0 0.0
    %4165 = vmatpush2.msra.mxu0 0.0
    %4166 = vmatprep.subr.mxu0 0.0
    %4167 = vmatpush2.msra.mxu0 0.0
    %4168 = vmatprep.subr.mxu0 0.0
    %4169 = vmatpush2.msra.mxu0 0.0
    %4170 = vmatprep.subr.mxu0 0.0
    %4171 = vmatpush2.msra.mxu0 0.0
    %4172 = vmatprep.mubr.f32.mxu0 0.0
    %4173 = vmatmul.mubr.f32.gmra.mxu0 %v4104
    %v4174 = vpop.f32.mrf.mxu0
    %v4175 = vadd.f32 0.0, %v4174
    %v4176 = vpop.f32.mrf.mxu0
    %4177 = vmatprep.mubr.f32.mxu0 0.0
    %4178 = vmatmul.mubr.f32.gmra.mxu0 %v4106
    %v4179 = vpop.f32.mrf.mxu0
    %v4180 = vadd.f32 0.0, %v4179
    %v4181 = vpop.f32.mrf.mxu0
    %4182 = vdwg.mxu0
    %v4183 = vadd.f32 %v3595, %v4175
    %v4184 = vadd.f32 %v3600, %v4180
    %v4185 = vxor.u32 %v4183, 2147483648
    %v4186 = vxor.u32 %v4184, 2147483648
    %v4187 = vmul.f32 %v4185, 1.442695
    %v4188 = vpow.pop %v4187
    %v4189 = vmul.f32 %v4186, 1.442695
    %v4190 = vpow.pop %v4189
    %v4191 = vadd.f32 %v4188, 1.0
    %v4192 = vadd.f32 %v4190, 1.0
    %v4193 = vrcp.pop %v4191
    %v4194 = vmul.f32 1.0, %v4193
    %v4195 = vrcp.pop %v4192
    %v4196 = vmul.f32 1.0, %v4195
    %v4197 = vtanh.pop %v4183
    %v4198 = vtanh.pop %v4184
    %v4199 = vmul.f32 %v4194, %v4084
    %v4200 = vmul.f32 %v4196, %v4085
    %4203 = vrot.lane.b32.xlu0 %v4197, 64
    %v4204 = vpop.permute.xlu0 %4203
    %4205 = vrot.lane.b32.xlu0 %v4198, 64
    %v4206 = vpop.permute.xlu0 %4205
    %v4209 = vmul.f32 %v4194, %v4204
    %v4210 = vmul.f32 %v4196, %v4206
    %4213 = vrot.lane.b32.xlu0 %v4209, 32
    %v4214 = vpop.permute.xlu0 %4213
    %4215 = vrot.lane.b32.xlu0 %v4210, 32
    %v4216 = vpop.permute.xlu0 %4215
    %v4219 = vadd.f32 %v4199, %v4214
    %v4220 = vadd.f32 %v4200, %v4216
    %v4221 = vtanh.pop %v4219
    %v4222 = vtanh.pop %v4220
    %4225 = vrot.lane.b32.xlu0 %v4221, 64
    %v4226 = vpop.permute.xlu0 %4225
    %4227 = vrot.lane.b32.xlu0 %v4222, 64
    %v4228 = vpop.permute.xlu0 %4227
    %v4231 = vmul.f32 %v4194, %v4226
    %v4232 = vmul.f32 %v4196, %v4228
    %4235 = vrot.lane.b32.xlu0 %v4231, 32
    %v4236 = vpop.permute.xlu0 %4235
    %4237 = vrot.lane.b32.xlu0 %v4232, 32
    %v4238 = vpop.permute.xlu0 %4237
    %v4239 = vsel %vm2559, %v4236, 0
    %v4241 = vsel %vm2559, %v4238, 0
    %4243 = vmatprep.subr.mxu0 0.0
    %4244 = vmatpush1.msra.mxu0 0.0
    %4245 = vmatprep.subr.mxu0 0.0
    %4246 = vmatpush1.msra.mxu0 0.0
    %4247 = vmatprep.subr.mxu0 0.0
    %4248 = vmatpush1.msra.mxu0 0.0
    %4249 = vmatprep.subr.mxu0 0.0
    %4250 = vmatpush1.msra.mxu0 0.0
    %4251 = vmatprep.subr.mxu0 0.0
    %4252 = vmatpush1.msra.mxu0 0.0
    %4253 = vmatprep.subr.mxu0 0.0
    %4254 = vmatpush1.msra.mxu0 0.0
    %4255 = vmatprep.subr.mxu0 0.0
    %4256 = vmatpush1.msra.mxu0 0.0
    %4257 = vmatprep.subr.mxu0 0.0
    %4258 = vmatpush1.msra.mxu0 0.0
    %4259 = vmatprep.subr.mxu0 0.0
    %4260 = vmatpush1.msra.mxu0 0.0
    %4261 = vmatprep.subr.mxu0 0.0
    %4262 = vmatpush1.msra.mxu0 0.0
    %4263 = vmatprep.subr.mxu0 0.0
    %4264 = vmatpush1.msra.mxu0 0.0
    %4265 = vmatprep.subr.mxu0 0.0
    %4266 = vmatpush1.msra.mxu0 0.0
    %4267 = vmatprep.subr.mxu0 0.0
    %4268 = vmatpush1.msra.mxu0 %v3370
    %4269 = vmatprep.subr.mxu0 0.0
    %4270 = vmatpush1.msra.mxu0 %v3369
    %4271 = vmatprep.subr.mxu0 0.0
    %4272 = vmatpush1.msra.mxu0 %v3368
    %4273 = vmatprep.subr.mxu0 0.0
    %4274 = vmatpush1.msra.mxu0 %v3367
    %4275 = vmatprep.subr.mxu0 0.0
    %4276 = vmatpush2.msra.mxu0 0.0
    %4277 = vmatprep.subr.mxu0 0.0
    %4278 = vmatpush2.msra.mxu0 0.0
    %4279 = vmatprep.subr.mxu0 0.0
    %4280 = vmatpush2.msra.mxu0 0.0
    %4281 = vmatprep.subr.mxu0 0.0
    %4282 = vmatpush2.msra.mxu0 0.0
    %4283 = vmatprep.subr.mxu0 0.0
    %4284 = vmatpush2.msra.mxu0 0.0
    %4285 = vmatprep.subr.mxu0 0.0
    %4286 = vmatpush2.msra.mxu0 0.0
    %4287 = vmatprep.subr.mxu0 0.0
    %4288 = vmatpush2.msra.mxu0 0.0
    %4289 = vmatprep.subr.mxu0 0.0
    %4290 = vmatpush2.msra.mxu0 0.0
    %4291 = vmatprep.subr.mxu0 0.0
    %4292 = vmatpush2.msra.mxu0 0.0
    %4293 = vmatprep.subr.mxu0 0.0
    %4294 = vmatpush2.msra.mxu0 0.0
    %4295 = vmatprep.subr.mxu0 0.0
    %4296 = vmatpush2.msra.mxu0 0.0
    %4297 = vmatprep.subr.mxu0 0.0
    %4298 = vmatpush2.msra.mxu0 0.0
    %4299 = vmatprep.subr.mxu0 0.0
    %4300 = vmatpush2.msra.mxu0 0.0
    %4301 = vmatprep.subr.mxu0 0.0
    %4302 = vmatpush2.msra.mxu0 0.0
    %4303 = vmatprep.subr.mxu0 0.0
    %4304 = vmatpush2.msra.mxu0 0.0
    %4305 = vmatprep.subr.mxu0 0.0
    %4306 = vmatpush2.msra.mxu0 0.0
    %4307 = vmatprep.mubr.f32.mxu0 0.0
    %4308 = vmatmul.mubr.f32.gmra.mxu0 %v4239
    %v4309 = vpop.f32.mrf.mxu0
    %v4310 = vadd.f32 0.0, %v4309
    %v4311 = vpop.f32.mrf.mxu0
    %4312 = vmatprep.mubr.f32.mxu0 0.0
    %4313 = vmatmul.mubr.f32.gmra.mxu0 %v4241
    %v4314 = vpop.f32.mrf.mxu0
    %v4315 = vadd.f32 0.0, %v4314
    %v4316 = vpop.f32.mrf.mxu0
    %4317 = vdwg.mxu0
    %v4318 = vadd.f32 %v3670, %v4310
    %v4319 = vadd.f32 %v3675, %v4315
    %v4320 = vxor.u32 %v4318, 2147483648
    %v4321 = vxor.u32 %v4319, 2147483648
    %v4322 = vmul.f32 %v4320, 1.442695
    %v4323 = vpow.pop %v4322
    %v4324 = vmul.f32 %v4321, 1.442695
    %v4325 = vpow.pop %v4324
    %v4326 = vadd.f32 %v4323, 1.0
    %v4327 = vadd.f32 %v4325, 1.0
    %v4328 = vrcp.pop %v4326
    %v4329 = vmul.f32 1.0, %v4328
    %v4330 = vrcp.pop %v4327
    %v4331 = vmul.f32 1.0, %v4330
    %v4332 = vtanh.pop %v4318
    %v4333 = vtanh.pop %v4319
    %v4334 = vmul.f32 %v4329, %v4219
    %v4335 = vmul.f32 %v4331, %v4220
    %4338 = vrot.lane.b32.xlu0 %v4332, 64
    %v4339 = vpop.permute.xlu0 %4338
    %4340 = vrot.lane.b32.xlu0 %v4333, 64
    %v4341 = vpop.permute.xlu0 %4340
    %v4344 = vmul.f32 %v4329, %v4339
    %v4345 = vmul.f32 %v4331, %v4341
    %4348 = vrot.lane.b32.xlu0 %v4344, 32
    %v4349 = vpop.permute.xlu0 %4348
    %4350 = vrot.lane.b32.xlu0 %v4345, 32
    %v4351 = vpop.permute.xlu0 %4350
    %v4354 = vadd.f32 %v4334, %v4349
    %v4355 = vadd.f32 %v4335, %v4351
    %v4356 = vtanh.pop %v4354
    %v4357 = vtanh.pop %v4355
    %4360 = vrot.lane.b32.xlu0 %v4356, 64
    %v4361 = vpop.permute.xlu0 %4360
    %4362 = vrot.lane.b32.xlu0 %v4357, 64
    %v4363 = vpop.permute.xlu0 %4362
    %v4366 = vmul.f32 %v4329, %v4361
    %v4367 = vmul.f32 %v4331, %v4363
    %4370 = vrot.lane.b32.xlu0 %v4366, 32
    %v4371 = vpop.permute.xlu0 %4370
    %4372 = vrot.lane.b32.xlu0 %v4367, 32
    %v4373 = vpop.permute.xlu0 %4372
    %v4374 = vsel %vm2559, %v4371, 0
    %v4376 = vsel %vm2559, %v4373, 0
    %4378 = vmatprep.subr.mxu0 0.0
    %4379 = vmatpush1.msra.mxu0 0.0
    %4380 = vmatprep.subr.mxu0 0.0
    %4381 = vmatpush1.msra.mxu0 0.0
    %4382 = vmatprep.subr.mxu0 0.0
    %4383 = vmatpush1.msra.mxu0 0.0
    %4384 = vmatprep.subr.mxu0 0.0
    %4385 = vmatpush1.msra.mxu0 0.0
    %4386 = vmatprep.subr.mxu0 0.0
    %4387 = vmatpush1.msra.mxu0 0.0
    %4388 = vmatprep.subr.mxu0 0.0
    %4389 = vmatpush1.msra.mxu0 0.0
    %4390 = vmatprep.subr.mxu0 0.0
    %4391 = vmatpush1.msra.mxu0 0.0
    %4392 = vmatprep.subr.mxu0 0.0
    %4393 = vmatpush1.msra.mxu0 0.0
    %4394 = vmatprep.subr.mxu0 0.0
    %4395 = vmatpush1.msra.mxu0 0.0
    %4396 = vmatprep.subr.mxu0 0.0
    %4397 = vmatpush1.msra.mxu0 0.0
    %4398 = vmatprep.subr.mxu0 0.0
    %4399 = vmatpush1.msra.mxu0 0.0
    %4400 = vmatprep.subr.mxu0 0.0
    %4401 = vmatpush1.msra.mxu0 0.0
    %4402 = vmatprep.subr.mxu0 0.0
    %4403 = vmatpush1.msra.mxu0 %v3370
    %4404 = vmatprep.subr.mxu0 0.0
    %4405 = vmatpush1.msra.mxu0 %v3369
    %4406 = vmatprep.subr.mxu0 0.0
    %4407 = vmatpush1.msra.mxu0 %v3368
    %4408 = vmatprep.subr.mxu0 0.0
    %4409 = vmatpush1.msra.mxu0 %v3367
    %4410 = vmatprep.subr.mxu0 0.0
    %4411 = vmatpush2.msra.mxu0 0.0
    %4412 = vmatprep.subr.mxu0 0.0
    %4413 = vmatpush2.msra.mxu0 0.0
    %4414 = vmatprep.subr.mxu0 0.0
    %4415 = vmatpush2.msra.mxu0 0.0
    %4416 = vmatprep.subr.mxu0 0.0
    %4417 = vmatpush2.msra.mxu0 0.0
    %4418 = vmatprep.subr.mxu0 0.0
    %4419 = vmatpush2.msra.mxu0 0.0
    %4420 = vmatprep.subr.mxu0 0.0
    %4421 = vmatpush2.msra.mxu0 0.0
    %4422 = vmatprep.subr.mxu0 0.0
    %4423 = vmatpush2.msra.mxu0 0.0
    %4424 = vmatprep.subr.mxu0 0.0
    %4425 = vmatpush2.msra.mxu0 0.0
    %4426 = vmatprep.subr.mxu0 0.0
    %4427 = vmatpush2.msra.mxu0 0.0
    %4428 = vmatprep.subr.mxu0 0.0
    %4429 = vmatpush2.msra.mxu0 0.0
    %4430 = vmatprep.subr.mxu0 0.0
    %4431 = vmatpush2.msra.mxu0 0.0
    %4432 = vmatprep.subr.mxu0 0.0
    %4433 = vmatpush2.msra.mxu0 0.0
    %4434 = vmatprep.subr.mxu0 0.0
    %4435 = vmatpush2.msra.mxu0 0.0
    %4436 = vmatprep.subr.mxu0 0.0
    %4437 = vmatpush2.msra.mxu0 0.0
    %4438 = vmatprep.subr.mxu0 0.0
    %4439 = vmatpush2.msra.mxu0 0.0
    %4440 = vmatprep.subr.mxu0 0.0
    %4441 = vmatpush2.msra.mxu0 0.0
    %4442 = vmatprep.mubr.f32.mxu0 0.0
    %4443 = vmatmul.mubr.f32.gmra.mxu0 %v4374
    %v4444 = vpop.f32.mrf.mxu0
    %v4445 = vadd.f32 0.0, %v4444
    %v4446 = vpop.f32.mrf.mxu0
    %4447 = vmatprep.mubr.f32.mxu0 0.0
    %4448 = vmatmul.mubr.f32.gmra.mxu0 %v4376
    %v4449 = vpop.f32.mrf.mxu0
    %v4450 = vadd.f32 0.0, %v4449
    %v4451 = vpop.f32.mrf.mxu0
    %4452 = vdwg.mxu0
    %v4453 = vadd.f32 %v3745, %v4445
    %v4454 = vadd.f32 %v3750, %v4450
    %v4455 = vxor.u32 %v4453, 2147483648
    %v4456 = vxor.u32 %v4454, 2147483648
    %v4457 = vmul.f32 %v4455, 1.442695
    %v4458 = vpow.pop %v4457
    %v4459 = vmul.f32 %v4456, 1.442695
    %v4460 = vpow.pop %v4459
    %v4461 = vadd.f32 %v4458, 1.0
    %v4462 = vadd.f32 %v4460, 1.0
    %v4463 = vrcp.pop %v4461
    %v4464 = vmul.f32 1.0, %v4463
    %v4465 = vrcp.pop %v4462
    %v4466 = vmul.f32 1.0, %v4465
    %v4467 = vtanh.pop %v4453
    %v4468 = vtanh.pop %v4454
    %v4469 = vmul.f32 %v4464, %v4354
    %v4470 = vmul.f32 %v4466, %v4355
    %4473 = vrot.lane.b32.xlu0 %v4467, 64
    %v4474 = vpop.permute.xlu0 %4473
    %4475 = vrot.lane.b32.xlu0 %v4468, 64
    %v4476 = vpop.permute.xlu0 %4475
    %v4479 = vmul.f32 %v4464, %v4474
    %v4480 = vmul.f32 %v4466, %v4476
    %4483 = vrot.lane.b32.xlu0 %v4479, 32
    %v4484 = vpop.permute.xlu0 %4483
    %4485 = vrot.lane.b32.xlu0 %v4480, 32
    %v4486 = vpop.permute.xlu0 %4485
    %v4489 = vadd.f32 %v4469, %v4484
    %v4490 = vadd.f32 %v4470, %v4486
    %v4491 = vtanh.pop %v4489
    %v4492 = vtanh.pop %v4490
    %4495 = vrot.lane.b32.xlu0 %v4491, 64
    %v4496 = vpop.permute.xlu0 %4495
    %4497 = vrot.lane.b32.xlu0 %v4492, 64
    %v4498 = vpop.permute.xlu0 %4497
    %v4501 = vmul.f32 %v4464, %v4496
    %v4502 = vmul.f32 %v4466, %v4498
    %4505 = vrot.lane.b32.xlu0 %v4501, 32
    %v4506 = vpop.permute.xlu0 %4505
    %4507 = vrot.lane.b32.xlu0 %v4502, 32
    %v4508 = vpop.permute.xlu0 %4507
    %v4509 = vsel %vm2559, %v4506, 0
    %v4511 = vsel %vm2559, %v4508, 0
    %4513 = vmatprep.subr.mxu0 0.0
    %4514 = vmatpush1.msra.mxu0 0.0
    %4515 = vmatprep.subr.mxu0 0.0
    %4516 = vmatpush1.msra.mxu0 0.0
    %4517 = vmatprep.subr.mxu0 0.0
    %4518 = vmatpush1.msra.mxu0 0.0
    %4519 = vmatprep.subr.mxu0 0.0
    %4520 = vmatpush1.msra.mxu0 0.0
    %4521 = vmatprep.subr.mxu0 0.0
    %4522 = vmatpush1.msra.mxu0 0.0
    %4523 = vmatprep.subr.mxu0 0.0
    %4524 = vmatpush1.msra.mxu0 0.0
    %4525 = vmatprep.subr.mxu0 0.0
    %4526 = vmatpush1.msra.mxu0 0.0
    %4527 = vmatprep.subr.mxu0 0.0
    %4528 = vmatpush1.msra.mxu0 0.0
    %4529 = vmatprep.subr.mxu0 0.0
    %4530 = vmatpush1.msra.mxu0 0.0
    %4531 = vmatprep.subr.mxu0 0.0
    %4532 = vmatpush1.msra.mxu0 0.0
    %4533 = vmatprep.subr.mxu0 0.0
    %4534 = vmatpush1.msra.mxu0 0.0
    %4535 = vmatprep.subr.mxu0 0.0
    %4536 = vmatpush1.msra.mxu0 0.0
    %4537 = vmatprep.subr.mxu0 0.0
    %4538 = vmatpush1.msra.mxu0 %v3370
    %4539 = vmatprep.subr.mxu0 0.0
    %4540 = vmatpush1.msra.mxu0 %v3369
    %4541 = vmatprep.subr.mxu0 0.0
    %4542 = vmatpush1.msra.mxu0 %v3368
    %4543 = vmatprep.subr.mxu0 0.0
    %4544 = vmatpush1.msra.mxu0 %v3367
    %4545 = vmatprep.subr.mxu0 0.0
    %4546 = vmatpush2.msra.mxu0 0.0
    %4547 = vmatprep.subr.mxu0 0.0
    %4548 = vmatpush2.msra.mxu0 0.0
    %4549 = vmatprep.subr.mxu0 0.0
    %4550 = vmatpush2.msra.mxu0 0.0
    %4551 = vmatprep.subr.mxu0 0.0
    %4552 = vmatpush2.msra.mxu0 0.0
    %4553 = vmatprep.subr.mxu0 0.0
    %4554 = vmatpush2.msra.mxu0 0.0
    %4555 = vmatprep.subr.mxu0 0.0
    %4556 = vmatpush2.msra.mxu0 0.0
    %4557 = vmatprep.subr.mxu0 0.0
    %4558 = vmatpush2.msra.mxu0 0.0
    %4559 = vmatprep.subr.mxu0 0.0
    %4560 = vmatpush2.msra.mxu0 0.0
    %4561 = vmatprep.subr.mxu0 0.0
    %4562 = vmatpush2.msra.mxu0 0.0
    %4563 = vmatprep.subr.mxu0 0.0
    %4564 = vmatpush2.msra.mxu0 0.0
    %4565 = vmatprep.subr.mxu0 0.0
    %4566 = vmatpush2.msra.mxu0 0.0
    %4567 = vmatprep.subr.mxu0 0.0
    %4568 = vmatpush2.msra.mxu0 0.0
    %4569 = vmatprep.subr.mxu0 0.0
    %4570 = vmatpush2.msra.mxu0 0.0
    %4571 = vmatprep.subr.mxu0 0.0
    %4572 = vmatpush2.msra.mxu0 0.0
    %4573 = vmatprep.subr.mxu0 0.0
    %4574 = vmatpush2.msra.mxu0 0.0
    %4575 = vmatprep.subr.mxu0 0.0
    %4576 = vmatpush2.msra.mxu0 0.0
    %4577 = vmatprep.mubr.f32.mxu0 0.0
    %4578 = vmatmul.mubr.f32.gmra.mxu0 %v4509
    %v4579 = vpop.f32.mrf.mxu0
    %v4580 = vadd.f32 0.0, %v4579
    %v4581 = vpop.f32.mrf.mxu0
    %4582 = vmatprep.mubr.f32.mxu0 0.0
    %4583 = vmatmul.mubr.f32.gmra.mxu0 %v4511
    %v4584 = vpop.f32.mrf.mxu0
    %v4585 = vadd.f32 0.0, %v4584
    %v4586 = vpop.f32.mrf.mxu0
    %4587 = vdwg.mxu0
    %v4588 = vadd.f32 %v3830, %v4580
    %v4589 = vadd.f32 %v3835, %v4585
    %v4590 = vxor.u32 %v4588, 2147483648
    %v4591 = vxor.u32 %v4589, 2147483648
    %v4592 = vmul.f32 %v4590, 1.442695
    %v4593 = vpow.pop %v4592
    %v4594 = vmul.f32 %v4591, 1.442695
    %v4595 = vpow.pop %v4594
    %v4596 = vadd.f32 %v4593, 1.0
    %v4597 = vadd.f32 %v4595, 1.0
    %v4598 = vrcp.pop %v4596
    %v4599 = vmul.f32 1.0, %v4598
    %v4600 = vrcp.pop %v4597
    %v4601 = vmul.f32 1.0, %v4600
    %v4602 = vtanh.pop %v4588
    %v4603 = vtanh.pop %v4589
    %v4604 = vmul.f32 %v4599, %v4489
    %v4605 = vmul.f32 %v4601, %v4490
    %4608 = vrot.lane.b32.xlu0 %v4602, 64
    %v4609 = vpop.permute.xlu0 %4608
    %4610 = vrot.lane.b32.xlu0 %v4603, 64
    %v4611 = vpop.permute.xlu0 %4610
    %v4614 = vmul.f32 %v4599, %v4609
    %v4615 = vmul.f32 %v4601, %v4611
    %4618 = vrot.lane.b32.xlu0 %v4614, 32
    %v4619 = vpop.permute.xlu0 %4618
    %4620 = vrot.lane.b32.xlu0 %v4615, 32
    %v4621 = vpop.permute.xlu0 %4620
    %v4624 = vadd.f32 %v4604, %v4619
    %v4625 = vadd.f32 %v4605, %v4621
    %v4626 = vtanh.pop %v4624
    %v4627 = vtanh.pop %v4625
    %4630 = vrot.lane.b32.xlu0 %v4626, 64
    %v4631 = vpop.permute.xlu0 %4630
    %4632 = vrot.lane.b32.xlu0 %v4627, 64
    %v4633 = vpop.permute.xlu0 %4632
    %v4636 = vmul.f32 %v4599, %v4631
    %v4637 = vmul.f32 %v4601, %v4633
    %4640 = vrot.lane.b32.xlu0 %v4636, 32
    %v4641 = vpop.permute.xlu0 %4640
    %4642 = vrot.lane.b32.xlu0 %v4637, 32
    %v4643 = vpop.permute.xlu0 %4642
    %4646 = vst.msk [vmem:[#allocation10] sm:$0xff] %vm2559, %v4641
    %4647 = vst.msk [vmem:[#allocation10 + $0x8] sm:$0xff] %vm2559, %v4643
    // Predicated region
    $region58: #{tpu_custom_call.1} parent=1 // pred_check
      _
    $region59: #{tpu_custom_call.1} parent=1 // pred_check_branch
      %4649 = sbr.rel (0) target = $region61
    $region60: #{tpu_custom_call.1} parent=1 // pred_region
      %s4651 = ssub.s32 256, 256
      %4652 = vsyncadd [#allocation4], %s4651
      %s4653 = sshll.u32 [#allocation10], 4
      %s4654 = int_to_ptr.vmem [resolvable:$true] %s4653
      %4659 = dma.vmem_to_hbm [thread:$0]  %s4654, 256, %s10, [#allocation4], 128, 128, 8
    $region61: #{tpu_custom_call.1} parent=1 // pred_fallthru
      _
    // Predicated region
    $region62: #{tpu_custom_call.1} parent=1 // pred_check
      _
    $region63: #{tpu_custom_call.1} parent=1 // pred_check_branch
      %4661 = sbr.rel (0) target = $region65
    $region64: #{tpu_custom_call.1} parent=1 // pred_region
      %4662 = dma.done [#allocation4], 256
    $region65: #{tpu_custom_call.1} parent=1 // pred_fallthru
      _
    %4663 = vsyncpa [#allocation3], 1
    %4664 = vsyncpa [#allocation6], 1
    %4665 = vsyncpa [#allocation9], 1
    %4666 = vsyncpa [#allocation4], 1

</llo_original>
